<compile_context>
chip_gen: v5e
topology: v5e:2x2
jax: 0.10.0
libtpu: 0.0.40
codegen_flags: <defaults>
</compile_context>

<pallas_src>
import functools

import jax
import jax.numpy as jnp
from jax import lax
from jax.experimental import pallas as pl
from jax.experimental.pallas import tpu as pltpu

BN_EPS = 1e-5
NORM_EPS = 1e-12
HIDDEN = 4096


def _embedding_kernel(x_ref, w1_ref, bn_ref, w2_ref, b2_ref, z_ref):
    """One grid step = one tile_h-wide slab of the 4096 hidden units."""
    k = pl.program_id(0)

    # ---- pre_feature: Linear slab -> BatchNorm1d (batch stats) -> ReLU -------
    x = x_ref[...]                                                # (B, F) bf16
    h = jnp.dot(x, w1_ref[...], preferred_element_type=jnp.float32)  # (B, tile_h) f32
    h = h + bn_ref[0:1, :]                                        # + b1

    mean = jnp.mean(h, axis=0, keepdims=True)
    var = jnp.mean(h * h, axis=0, keepdims=True) - mean * mean    # biased var (PyTorch BN)
    scale = bn_ref[1:2, :] * lax.rsqrt(var + BN_EPS)              # gamma * rsqrt(var+eps)
    shift = bn_ref[2:3, :] - mean * scale                         # beta - mean*scale
    h = jnp.maximum(h * scale + shift, 0.0)

    # ---- subspace: accumulate partial z = h @ W2_slab directly in the output -
    @pl.when(k == 0)
    def _():
        z_ref[...] = jnp.zeros_like(z_ref)

    z_ref[...] += jnp.dot(h.astype(jnp.bfloat16), w2_ref[...],
                          preferred_element_type=jnp.float32)

    # ---- finalize: add bias, row-wise L2 normalize (F.normalize, dim=1) ------
    @pl.when(k == pl.num_programs(0) - 1)
    def _():
        z = z_ref[...] + b2_ref[...]
        ssq = jnp.sum(z * z, axis=-1, keepdims=True)
        # 1 / max(||z||, eps) == rsqrt(max(ssq, eps^2))
        z_ref[...] = z * lax.rsqrt(jnp.maximum(ssq, NORM_EPS * NORM_EPS))


def prepack_params(params, *, tile_h=2048):
    """One-time repack of the f32 master params into the kernel streaming layout."""
    w1, b1, gamma, beta, w2, b2 = (
        params["w1"], params["b1"], params["gamma"],
        params["beta"], params["w2"], params["b2"],
    )
    F, H = w1.shape
    assert H % tile_h == 0
    n_slabs = H // tile_h
    # Each hidden slab of W1 becomes one contiguous (F, tile_h) block in HBM.
    w1_packed = (w1.astype(jnp.bfloat16)
                   .reshape(F, n_slabs, tile_h)
                   .transpose(1, 0, 2))                       # (n_slabs, F, tile_h)
    bn_packed = jnp.stack([b1, gamma, beta], axis=0).astype(jnp.float32)  # (3, H)
    return {
        "w1p": w1_packed,
        "bn": bn_packed,
        "w2": w2.astype(jnp.bfloat16),                        # (H, Z) row slabs contiguous
        "b2": b2.reshape(1, -1).astype(jnp.float32),          # (1, Z)
    }


@jax.jit
def manifold_embedding(x, packed):
    """is_feature=True forward: x (B, F) f32 -> L2-normalized z (B, Z) f32.

    NOTE: BatchNorm uses training-mode batch statistics (no running stats),
    matching the intent of the fused forward.
    """
    w1p, bn, w2, b2 = packed["w1p"], packed["bn"], packed["w2"], packed["b2"]
    n_slabs, F, tile_h = w1p.shape
    H, Z = w2.shape
    B = x.shape[0]
    assert x.shape[1] == F and H == n_slabs * tile_h
    assert F % 128 == 0 and Z % 128 == 0
    # Whole batch must fit one block: BN batch stats + z accumulator span full B.
    assert B <= 512

    x_bf16 = x.astype(jnp.bfloat16)

    return pl.pallas_call(
        _embedding_kernel,
        out_shape=jax.ShapeDtypeStruct((B, Z), jnp.float32),
        grid_spec=pltpu.PrefetchScalarGridSpec(
            num_scalar_prefetch=0,
            grid=(n_slabs,),
            in_specs=[
                pl.BlockSpec((B, F), lambda k: (0, 0)),               # x (resident)
                pl.BlockSpec((None, F, tile_h), lambda k: (k, 0, 0)), # W1 slab (contiguous)
                pl.BlockSpec((3, tile_h), lambda k: (0, k)),          # [b1; gamma; beta]
                pl.BlockSpec((tile_h, Z), lambda k: (k, 0)),          # W2 slab
                pl.BlockSpec((1, Z), lambda k: (0, 0)),               # b2
            ],
            out_specs=pl.BlockSpec((B, Z), lambda k: (0, 0)),         # z (output-resident acc)
        ),
        compiler_params=pltpu.CompilerParams(
            dimension_semantics=("arbitrary",),   # hidden dim is a reduction axis
            vmem_limit_bytes=32 * 1024 * 1024,
        ),
    )(x_bf16, w1p, bn, w2, b2)


def init_params(key, feature_dims, z_dims, hidden=HIDDEN):
    """Deterministic init mimicking PyTorch defaults (U(-1/sqrt(fan_in), ...))."""
    k1, k2, k3, k4 = jax.random.split(key, 4)
    bound1 = 1.0 / jnp.sqrt(feature_dims)
    bound2 = 1.0 / jnp.sqrt(hidden)
    return {
        "w1": jax.random.uniform(k1, (feature_dims, hidden), jnp.float32,
                                 -bound1, bound1),
        "b1": jax.random.uniform(k2, (hidden,), jnp.float32, -bound1, bound1),
        "gamma": jnp.ones((hidden,), jnp.float32),   # BatchNorm1d weight
        "beta": jnp.zeros((hidden,), jnp.float32),   # BatchNorm1d bias
        "w2": jax.random.uniform(k3, (hidden, z_dims), jnp.float32,
                                 -bound2, bound2),
        "b2": jax.random.uniform(k4, (z_dims,), jnp.float32, -bound2, bound2),
    }


def _reference_f32(x, params):
    """Pure-JAX f32 reference of the original forward (training-mode BN)."""
    h = x @ params["w1"] + params["b1"]
    mean = jnp.mean(h, axis=0, keepdims=True)
    var = jnp.mean((h - mean) ** 2, axis=0, keepdims=True)
    h = (h - mean) * lax.rsqrt(var + BN_EPS) * params["gamma"] + params["beta"]
    h = jnp.maximum(h, 0.0)
    z = h @ params["w2"] + params["b2"]
    norm = jnp.sqrt(jnp.sum(z * z, axis=-1, keepdims=True))
    return z / jnp.maximum(norm, NORM_EPS)


def _reference_bf16(x, params):
    """Reference using the same arithmetic as the kernel (bf16 weights, f32 acc)."""
    xb = x.astype(jnp.bfloat16)
    w1b = params["w1"].astype(jnp.bfloat16)
    w2b = params["w2"].astype(jnp.bfloat16)
    h = jnp.dot(xb, w1b, preferred_element_type=jnp.float32) + params["b1"]
    mean = jnp.mean(h, axis=0, keepdims=True)
    var = jnp.mean(h * h, axis=0, keepdims=True) - mean * mean
    scale = params["gamma"] * lax.rsqrt(var + BN_EPS)
    shift = params["beta"] - mean * scale
    h = jnp.maximum(h * scale + shift, 0.0)
    z = jnp.dot(h.astype(jnp.bfloat16), w2b,
                preferred_element_type=jnp.float32) + params["b2"]
    ssq = jnp.sum(z * z, axis=-1, keepdims=True)
    return z * lax.rsqrt(jnp.maximum(ssq, NORM_EPS * NORM_EPS))


if __name__ == "__main__":
    key = jax.random.PRNGKey(0)
    kx, kp = jax.random.split(key)

    B, FEATURE_DIMS, Z_DIMS = 8, 512, 128
    x = jax.random.normal(kx, (B, FEATURE_DIMS), jnp.float32)
    params = init_params(kp, FEATURE_DIMS, Z_DIMS)
    packed = prepack_params(params, tile_h=2048)

    z = manifold_embedding(x, packed)
    z = jax.block_until_ready(z)
    assert z.shape == (B, Z_DIMS)

    # Tight check vs. a reference that uses identical bf16-weight arithmetic.
    z_ref = _reference_bf16(x, params)
    err = float(jnp.max(jnp.abs(z - z_ref)))
    assert err < 5e-4, err

    # Loose sanity check vs. the pure-f32 forward of the original module.
    z_ref32 = _reference_f32(x, params)
    err32 = float(jnp.max(jnp.abs(z - z_ref32)))
    assert err32 < 5e-2, err32

    # Output rows must be unit-norm (F.normalize).
    norms = jnp.linalg.norm(z, axis=-1)
    assert bool(jnp.allclose(norms, 1.0, atol=1e-3))

    print("KERNEL_OK")
</pallas_src>

<mosaic_0001>
module attributes {stable_mosaic.version = 11 : i64} {
  func.func @_embedding_kernel(%arg0: i32, %arg1: memref<8x512xbf16, #tpu.memory_space<vmem>>, %arg2: memref<1x512x2048xbf16, #tpu.memory_space<vmem>>, %arg3: memref<3x2048xf32, #tpu.memory_space<vmem>>, %arg4: memref<2048x128xbf16, #tpu.memory_space<vmem>>, %arg5: memref<1x128xf32, #tpu.memory_space<vmem>>, %arg6: memref<8x128xf32, #tpu.memory_space<vmem>>) attributes {dimension_semantics = [#tpu.dimension_semantics<arbitrary>], iteration_bounds = array<i64: 2>, scalar_prefetch = 0 : i64, scratch_operands = 0 : i64, tpu.core_type = #tpu.core_type<tc>, window_params = [{pipeline_mode = #tpu.pipeline_mode<synchronous>, transform_indices = @transform_0, window_bounds = array<i64: 8, 512>}, {transform_indices = @transform_1, window_bounds = array<i64: 1, 512, 2048>}, {transform_indices = @transform_2, window_bounds = array<i64: 3, 2048>}, {transform_indices = @transform_3, window_bounds = array<i64: 2048, 128>}, {pipeline_mode = #tpu.pipeline_mode<synchronous>, transform_indices = @transform_4, window_bounds = array<i64: 1, 128>}, {pipeline_mode = #tpu.pipeline_mode<synchronous>, transform_indices = @transform_5, window_bounds = array<i64: 8, 128>}]} {
    %c0 = arith.constant 0 : index
    %c0_0 = arith.constant 0 : index
    %0 = vector.load %arg1[%c0, %c0_0] : memref<8x512xbf16, #tpu.memory_space<vmem>>, vector<8x512xbf16>
    %c0_1 = arith.constant 0 : index
    %c0_2 = arith.constant 0 : index
    %c0_3 = arith.constant 0 : index
    %1 = vector.load %arg2[%c0_1, %c0_2, %c0_3] : memref<1x512x2048xbf16, #tpu.memory_space<vmem>>, vector<1x512x2048xbf16>
    %2 = vector.shape_cast %1 : vector<1x512x2048xbf16> to vector<512x2048xbf16>
    %cst = arith.constant dense<0.000000e+00> : vector<8x2048xf32>
    %3 = tpu.matmul %0, %2, %cst {dimension_numbers = #tpu.dot_dimension_numbers<[1], [0], [0], [1], [0, 0, 1, 1], [], []>} : vector<8x512xbf16>, vector<512x2048xbf16>, vector<8x2048xf32> -> vector<8x2048xf32>
    %c0_4 = arith.constant 0 : index
    %c0_5 = arith.constant 0 : index
    %4 = vector.load %arg3[%c0_4, %c0_5] : memref<3x2048xf32, #tpu.memory_space<vmem>>, vector<1x2048xf32>
    %5 = vector.broadcast %4 : vector<1x2048xf32> to vector<8x2048xf32>
    %6 = arith.addf %3, %5 : vector<8x2048xf32>
    %cst_6 = arith.constant dense<0.000000e+00> : vector<2048xf32>
    %7 = vector.multi_reduction <add>, %6, %cst_6 [0] : vector<8x2048xf32> to vector<2048xf32>
    %8 = vector.shape_cast %7 : vector<2048xf32> to vector<1x2048xf32>
    %cst_7 = arith.constant 8.000000e+00 : f32
    %9 = vector.broadcast %cst_7 : f32 to vector<1x2048xf32>
    %10 = arith.divf %8, %9 : vector<1x2048xf32>
    %11 = arith.mulf %6, %6 : vector<8x2048xf32>
    %cst_8 = arith.constant dense<0.000000e+00> : vector<2048xf32>
    %12 = vector.multi_reduction <add>, %11, %cst_8 [0] : vector<8x2048xf32> to vector<2048xf32>
    %13 = vector.shape_cast %12 : vector<2048xf32> to vector<1x2048xf32>
    %cst_9 = arith.constant 8.000000e+00 : f32
    %14 = vector.broadcast %cst_9 : f32 to vector<1x2048xf32>
    %15 = arith.divf %13, %14 : vector<1x2048xf32>
    %16 = arith.mulf %10, %10 : vector<1x2048xf32>
    %17 = arith.subf %15, %16 : vector<1x2048xf32>
    %c1 = arith.constant 1 : index
    %c0_10 = arith.constant 0 : index
    %18 = vector.load %arg3[%c1, %c0_10] : memref<3x2048xf32, #tpu.memory_space<vmem>>, vector<1x2048xf32>
    %cst_11 = arith.constant 9.99999974E-6 : f32
    %19 = vector.broadcast %cst_11 : f32 to vector<1x2048xf32>
    %20 = arith.addf %17, %19 : vector<1x2048xf32>
    %21 = math.rsqrt %20 : vector<1x2048xf32>
    %22 = arith.mulf %18, %21 : vector<1x2048xf32>
    %c2 = arith.constant 2 : index
    %c0_12 = arith.constant 0 : index
    %23 = vector.load %arg3[%c2, %c0_12] : memref<3x2048xf32, #tpu.memory_space<vmem>>, vector<1x2048xf32>
    %24 = arith.mulf %10, %22 : vector<1x2048xf32>
    %25 = arith.subf %23, %24 : vector<1x2048xf32>
    %26 = vector.broadcast %22 : vector<1x2048xf32> to vector<8x2048xf32>
    %27 = arith.mulf %6, %26 : vector<8x2048xf32>
    %28 = vector.broadcast %25 : vector<1x2048xf32> to vector<8x2048xf32>
    %29 = arith.addf %27, %28 : vector<8x2048xf32>
    %cst_13 = arith.constant 0.000000e+00 : f32
    %30 = vector.broadcast %cst_13 : f32 to vector<8x2048xf32>
    %31 = arith.maximumf %29, %30 : vector<8x2048xf32>
    %c0_i32 = arith.constant 0 : i32
    %32 = arith.cmpi eq, %arg0, %c0_i32 : i32
    %33 = arith.extui %32 : i1 to i32
    %c0_i32_14 = arith.constant 0 : i32
    %34 = arith.cmpi ne, %33, %c0_i32_14 : i32
    scf.if %34 {
      %cst_23 = arith.constant 0.000000e+00 : f32
      %44 = vector.broadcast %cst_23 : f32 to vector<8x128xf32>
      %c0_24 = arith.constant 0 : index
      %c0_25 = arith.constant 0 : index
      %45 = vector.load %arg6[%c0_24, %c0_25] : memref<8x128xf32, #tpu.memory_space<vmem>>, vector<8x128xf32>
      tpu.vector_store %arg6[%c0_24, %c0_25], %44 {strides = array<i32>} : memref<8x128xf32, #tpu.memory_space<vmem>>, vector<8x128xf32>,
    } else {
    }
    %c0_15 = arith.constant 0 : index
    %c0_16 = arith.constant 0 : index
    %35 = vector.load %arg6[%c0_15, %c0_16] : memref<8x128xf32, #tpu.memory_space<vmem>>, vector<8x128xf32>
    %36 = arith.truncf %31 : vector<8x2048xf32> to vector<8x2048xbf16>
    %c0_17 = arith.constant 0 : index
    %c0_18 = arith.constant 0 : index
    %37 = vector.load %arg4[%c0_17, %c0_18] : memref<2048x128xbf16, #tpu.memory_space<vmem>>, vector<2048x128xbf16>
    %cst_19 = arith.constant dense<0.000000e+00> : vector<8x128xf32>
    %38 = tpu.matmul %36, %37, %cst_19 {dimension_numbers = #tpu.dot_dimension_numbers<[1], [0], [0], [1], [0, 0, 1, 1], [], []>} : vector<8x2048xbf16>, vector<2048x128xbf16>, vector<8x128xf32> -> vector<8x128xf32>
    %39 = arith.addf %35, %38 : vector<8x128xf32>
    %c0_20 = arith.constant 0 : index
    %c0_21 = arith.constant 0 : index
    %40 = vector.load %arg6[%c0_20, %c0_21] : memref<8x128xf32, #tpu.memory_space<vmem>>, vector<8x128xf32>
    tpu.vector_store %arg6[%c0_20, %c0_21], %39 {strides = array<i32>} : memref<8x128xf32, #tpu.memory_space<vmem>>, vector<8x128xf32>,
    %c1_i32 = arith.constant 1 : i32
    %41 = arith.cmpi eq, %arg0, %c1_i32 : i32
    %42 = arith.extui %41 : i1 to i32
    %c0_i32_22 = arith.constant 0 : i32
    %43 = arith.cmpi ne, %42, %c0_i32_22 : i32
    scf.if %43 {
      %c0_23 = arith.constant 0 : index
      %c0_24 = arith.constant 0 : index
      %44 = vector.load %arg6[%c0_23, %c0_24] : memref<8x128xf32, #tpu.memory_space<vmem>>, vector<8x128xf32>
      %c0_25 = arith.constant 0 : index
      %c0_26 = arith.constant 0 : index
      %45 = vector.load %arg5[%c0_25, %c0_26] : memref<1x128xf32, #tpu.memory_space<vmem>>, vector<1x128xf32>
      %46 = vector.broadcast %45 : vector<1x128xf32> to vector<8x128xf32>
      %47 = arith.addf %44, %46 : vector<8x128xf32>
      %48 = arith.mulf %47, %47 : vector<8x128xf32>
      %cst_27 = arith.constant dense<0.000000e+00> : vector<8xf32>
      %49 = vector.multi_reduction <add>, %48, %cst_27 [1] : vector<8x128xf32> to vector<8xf32>
      %50 = vector.shape_cast %49 : vector<8xf32> to vector<8x1xf32>
      %cst_28 = arith.constant 1.000000e-24 : f32
      %51 = vector.broadcast %cst_28 : f32 to vector<8x1xf32>
      %52 = arith.maximumf %50, %51 : vector<8x1xf32>
      %53 = math.rsqrt %52 : vector<8x1xf32>
      %54 = vector.broadcast %53 : vector<8x1xf32> to vector<8x128xf32>
      %55 = arith.mulf %47, %54 : vector<8x128xf32>
      %c0_29 = arith.constant 0 : index
      %c0_30 = arith.constant 0 : index
      %56 = vector.load %arg6[%c0_29, %c0_30] : memref<8x128xf32, #tpu.memory_space<vmem>>, vector<8x128xf32>
      tpu.vector_store %arg6[%c0_29, %c0_30], %55 {strides = array<i32>} : memref<8x128xf32, #tpu.memory_space<vmem>>, vector<8x128xf32>,
    } else {
    }
    return
  }
  func.func @transform_0(%arg0: i32) -> (i32, i32) {
    %c0_i32 = arith.constant 0 : i32
    %c0_i32_0 = arith.constant 0 : i32
    %c0_i32_1 = arith.constant 0 : i32
    return %c0_i32, %c0_i32_0 : i32, i32
  }
  func.func @transform_1(%arg0: i32) -> (i32, i32, i32) {
    %c0_i32 = arith.constant 0 : i32
    %c0_i32_0 = arith.constant 0 : i32
    %c0_i32_1 = arith.constant 0 : i32
    return %arg0, %c0_i32, %c0_i32_0 : i32, i32, i32
  }
  func.func @transform_2(%arg0: i32) -> (i32, i32) {
    %c0_i32 = arith.constant 0 : i32
    %c0_i32_0 = arith.constant 0 : i32
    return %c0_i32, %arg0 : i32, i32
  }
  func.func @transform_3(%arg0: i32) -> (i32, i32) {
    %c0_i32 = arith.constant 0 : i32
    %c0_i32_0 = arith.constant 0 : i32
    return %arg0, %c0_i32 : i32, i32
  }
  func.func @transform_4(%arg0: i32) -> (i32, i32) {
    %c0_i32 = arith.constant 0 : i32
    %c0_i32_0 = arith.constant 0 : i32
    %c0_i32_1 = arith.constant 0 : i32
    return %c0_i32, %c0_i32_0 : i32, i32
  }
  func.func @transform_5(%arg0: i32) -> (i32, i32) {
    %c0_i32 = arith.constant 0 : i32
    %c0_i32_0 = arith.constant 0 : i32
    %c0_i32_1 = arith.constant 0 : i32
    return %c0_i32, %c0_i32_0 : i32, i32
  }
}

</mosaic_0001>

<llo_original>
// kernel: manifold_embedding.1
$region0: #{manifold_embedding.1}
  #allocation0 [shape = 'u32[]', space=smem, size = 0x4, offset = 0x4, fixed_abs, tag = 'smem constant byte address 0x4 - core index']
  #allocation1 [shape = 'u32[72,128]{1,0:T(1,128)}', space=vmem, size = 0x9000, scoped, tag = 'internal scratch']
  %s0 = inlined_call_operand.vmem [shape: bf16[8,512], index: 0, kind: input, shape index: {}]
  %s1 = inlined_call_operand.hbm [shape: bf16[2,512,2048], index: 1, kind: input, shape index: {}]
  %s2 = inlined_call_operand.hbm [shape: f32[3,4096], index: 2, kind: input, shape index: {}]
  %s3 = inlined_call_operand.hbm [shape: bf16[4096,128], index: 3, kind: input, shape index: {}]
  %s4 = inlined_call_operand.hbm [shape: f32[1,128], index: 4, kind: input, shape index: {}]
  %s5 = inlined_call_operand.hbm [shape: f32[8,128], index: 5, kind: output, shape index: {}]
  %s6 = sld [smem:[#allocation0]]
  $region77: #{manifold_embedding.1} parent=0
    _
  %s8 = ssub.s32 1, %s6
  %s9 = scalar_select 0, %s8, %s6
  $region1: #{manifold_embedding.1} parent=0
    #allocation2 [shape = 'u8[4194304]{0}', space=vmem, size = 0x400000, scoped, tag = 'input window, operand 1']
    #allocation3 [shape = 's32[2]{0}', space=sflag, size = 0x8, scoped, tag = 'scoped memory for manifold_embedding.1']
    #allocation4 [shape = 's32[2]{0}', space=sflag, size = 0x8, scoped, tag = 'scoped memory for manifold_embedding.1']
    #allocation5 [shape = 'u8[65536]{0}', space=vmem, size = 0x10000, scoped, tag = 'input window, operand 2']
    #allocation6 [shape = 's32[2]{0}', space=sflag, size = 0x8, scoped, tag = 'scoped memory for manifold_embedding.1']
    #allocation7 [shape = 'u8[1048576]{0}', space=vmem, size = 0x100000, scoped, tag = 'input window, operand 3']
    #allocation8 [shape = 'u8[512]{0}', space=vmem, size = 0x400, scoped, tag = 'input window, operand 4, single buffered']
    #allocation9 [shape = 's32[1]{0}', space=sflag, size = 0x4, scoped, tag = 'scoped memory for manifold_embedding.1']
    #allocation10 [shape = 'u8[4096]{0}', space=vmem, size = 0x1000, scoped, tag = 'output window, operand 0, single buffered']
    %10 = vsyncpa [#allocation3], 0
    %s11 = scalar_lea.sflag [#allocation3], 1
    %12 = vsyncpa %s11, 0
    %13 = vsyncpa [#allocation6], 0
    %s14 = scalar_lea.sflag [#allocation6], 1
    %15 = vsyncpa %s14, 0
    %16 = vsyncpa [#allocation9], 0
    %17 = vsyncpa [#allocation4], 0
    loop: start=0, step=1, limit=4
    $region2: #{manifold_embedding.1} parent=1 // loop_pre_header
      _
    $region3: #{manifold_embedding.1} parent=1 // loop_header
      %s19 = sphi 0, %s23
      %p20 = scmp.ge.s32.totalorder %s19, 4
      %s27 = sphi 0, %s27
      %s29 = sphi 0, %s27
      %s30 = sphi 0, %s29
      %s44 = sphi 0, %s30
      %s50 = sphi 0, %s52
      %s53 = sphi 0, %s50
      %s54 = sphi 0, %s53
      %s70 = sphi 0, %s54
      %s76 = sphi 0, %s78
      %s79 = sphi 0, %s76
      %s80 = sphi 0, %s79
      %s96 = sphi 0, %s80
      %s102 = sphi 0, %s104
      %s105 = sphi 0, %s102
      %s106 = sphi 0, %s105
      %s122 = sphi 0, %s106
      %s126 = sphi 0, %s126
      %s128 = sphi 0, %s126
      %s129 = sphi 0, %s128
      %s143 = sphi 0, %s129
      %s147 = sphi 0, %s147
      %s149 = sphi 0, %s147
      %s150 = sphi 0, %s149
      %s164 = sphi 0, %s150
    $region4: #{manifold_embedding.1} parent=1 // loop_header_branch
      %22 = sbr.rel (%p20) target = $region8
    $region5: #{manifold_embedding.1} parent=1 // loop_body
      %s24 = ssub.s32 %s19, 1
      %s25 = ssub.s32 %s19, 2
      %s26 = sadd.s32 %s19, 1
      %s28 = sadd.s32 %s27, 1
      %p31 = scmp.eq.s32.totalorder %s19, 1
      %p32 = scmp.ne.s32.totalorder %s27, %s29
      %p33 = scmp.eq.s32.totalorder %s19, 0
      %p34 = por %p32, %p33
      %p35 = scmp.ne.s32.totalorder %s27, %s29
      %p36 = scmp.eq.s32.totalorder %s24, 1
      %p37 = por %p35, %p36
      %p38 = scmp.ne.s32.totalorder %s29, %s30
      %p39 = scmp.eq.s32.totalorder %s24, 0
      %p40 = por %p38, %p39
      %p41 = scmp.ne.s32.totalorder %s29, %s30
      %p42 = scmp.eq.s32.totalorder %s25, 1
      %p43 = por %p41, %p42
      %p45 = scmp.ne.s32.totalorder %s30, %s44
      %p46 = scmp.eq.s32.totalorder %s25, 0
      %p47 = por %p45, %p46
      %s48 = ssub.s32 %s19, %s26
      %p49 = scmp.eq.s32.totalorder %s48, 0
      %s51 = sadd.s32 %s50, 1
      %s52 = scalar_select %p49, %s50, %s51
      %p55 = pneg %p49
      %p56 = scmp.eq.s32.totalorder %s19, 1
      %p57 = por %p55, %p56
      %p58 = scmp.ne.s32.totalorder %s50, %s53
      %p59 = scmp.eq.s32.totalorder %s19, 0
      %p60 = por %p58, %p59
      %p61 = scmp.ne.s32.totalorder %s50, %s53
      %p62 = scmp.eq.s32.totalorder %s24, 1
      %p63 = por %p61, %p62
      %p64 = scmp.ne.s32.totalorder %s53, %s54
      %p65 = scmp.eq.s32.totalorder %s24, 0
      %p66 = por %p64, %p65
      %p67 = scmp.ne.s32.totalorder %s53, %s54
      %p68 = scmp.eq.s32.totalorder %s25, 1
      %p69 = por %p67, %p68
      %p71 = scmp.ne.s32.totalorder %s54, %s70
      %p72 = scmp.eq.s32.totalorder %s25, 0
      %p73 = por %p71, %p72
      %s74 = ssub.s32 %s19, %s26
      %p75 = scmp.eq.s32.totalorder %s74, 0
      %s77 = sadd.s32 %s76, 1
      %s78 = scalar_select %p75, %s76, %s77
      %p81 = pneg %p75
      %p82 = scmp.eq.s32.totalorder %s19, 1
      %p83 = por %p81, %p82
      %p84 = scmp.ne.s32.totalorder %s76, %s79
      %p85 = scmp.eq.s32.totalorder %s19, 0
      %p86 = por %p84, %p85
      %p87 = scmp.ne.s32.totalorder %s76, %s79
      %p88 = scmp.eq.s32.totalorder %s24, 1
      %p89 = por %p87, %p88
      %p90 = scmp.ne.s32.totalorder %s79, %s80
      %p91 = scmp.eq.s32.totalorder %s24, 0
      %p92 = por %p90, %p91
      %p93 = scmp.ne.s32.totalorder %s79, %s80
      %p94 = scmp.eq.s32.totalorder %s25, 1
      %p95 = por %p93, %p94
      %p97 = scmp.ne.s32.totalorder %s80, %s96
      %p98 = scmp.eq.s32.totalorder %s25, 0
      %p99 = por %p97, %p98
      %s100 = ssub.s32 %s19, %s26
      %p101 = scmp.eq.s32.totalorder %s100, 0
      %s103 = sadd.s32 %s102, 1
      %s104 = scalar_select %p101, %s102, %s103
      %p107 = pneg %p101
      %p108 = scmp.eq.s32.totalorder %s19, 1
      %p109 = por %p107, %p108
      %p110 = scmp.ne.s32.totalorder %s102, %s105
      %p111 = scmp.eq.s32.totalorder %s19, 0
      %p112 = por %p110, %p111
      %p113 = scmp.ne.s32.totalorder %s102, %s105
      %p114 = scmp.eq.s32.totalorder %s24, 1
      %p115 = por %p113, %p114
      %p116 = scmp.ne.s32.totalorder %s105, %s106
      %p117 = scmp.eq.s32.totalorder %s24, 0
      %p118 = por %p116, %p117
      %p119 = scmp.ne.s32.totalorder %s105, %s106
      %p120 = scmp.eq.s32.totalorder %s25, 1
      %p121 = por %p119, %p120
      %p123 = scmp.ne.s32.totalorder %s106, %s122
      %p124 = scmp.eq.s32.totalorder %s25, 0
      %p125 = por %p123, %p124
      %s127 = sadd.s32 %s126, 1
      %p130 = scmp.eq.s32.totalorder %s19, 1
      %p131 = scmp.ne.s32.totalorder %s126, %s128
      %p132 = scmp.eq.s32.totalorder %s19, 0
      %p133 = por %p131, %p132
      %p134 = scmp.ne.s32.totalorder %s126, %s128
      %p135 = scmp.eq.s32.totalorder %s24, 1
      %p136 = por %p134, %p135
      %p137 = scmp.ne.s32.totalorder %s128, %s129
      %p138 = scmp.eq.s32.totalorder %s24, 0
      %p139 = por %p137, %p138
      %p140 = scmp.ne.s32.totalorder %s128, %s129
      %p141 = scmp.eq.s32.totalorder %s25, 1
      %p142 = por %p140, %p141
      %p144 = scmp.ne.s32.totalorder %s129, %s143
      %p145 = scmp.eq.s32.totalorder %s25, 0
      %p146 = por %p144, %p145
      %s148 = sadd.s32 %s147, 1
      %p151 = scmp.eq.s32.totalorder %s19, 1
      %p152 = scmp.ne.s32.totalorder %s147, %s149
      %p153 = scmp.eq.s32.totalorder %s19, 0
      %p154 = por %p152, %p153
      %p155 = scmp.ne.s32.totalorder %s147, %s149
      %p156 = scmp.eq.s32.totalorder %s24, 1
      %p157 = por %p155, %p156
      %p158 = scmp.ne.s32.totalorder %s149, %s150
      %p159 = scmp.eq.s32.totalorder %s24, 0
      %p160 = por %p158, %p159
      %p161 = scmp.ne.s32.totalorder %s149, %s150
      %p162 = scmp.eq.s32.totalorder %s25, 1
      %p163 = por %p161, %p162
      %p165 = scmp.ne.s32.totalorder %s150, %s164
      %p166 = scmp.eq.s32.totalorder %s25, 0
      %p167 = por %p165, %p166
      %p168 = scmp.le.s32.totalorder 1, %s19
      %p169 = scmp.lt.s32.totalorder %s19, 3
      %p170 = pnand %p168, %p169
      %p171 = pneg %p170
      // Predicated region
      $region9: #{manifold_embedding.1} parent=5 // pred_check
        _
      $region10: #{manifold_embedding.1} parent=5 // pred_check_branch
        %173 = sbr.rel (%p170) target = $region12
      $region11: #{manifold_embedding.1} parent=5 // pred_region
        %s174 = ssub.s32 %s19, 1
        // Predicated region
        $region13: #{manifold_embedding.1} parent=11 // pred_check
          %p175 = pneg %p40
        $region14: #{manifold_embedding.1} parent=11 // pred_check_branch
          %177 = sbr.rel (%p175) target = $region16
        $region15: #{manifold_embedding.1} parent=11 // pred_region
          _
        $region16: #{manifold_embedding.1} parent=11 // pred_fallthru
          _
        // Predicated region
        $region17: #{manifold_embedding.1} parent=11 // pred_check
          %p178 = pneg %p139
        $region18: #{manifold_embedding.1} parent=11 // pred_check_branch
          %180 = sbr.rel (%p178) target = $region20
        $region19: #{manifold_embedding.1} parent=11 // pred_region
          %182 = vsyncadd [#allocation9], 0
          %s184 = sshll.u32 %s4, 4
          %s185 = int_to_ptr.hbm [resolvable:$true] %s184
          %s186 = sshll.u32 [#allocation8], 4
          %s187 = int_to_ptr.vmem [resolvable:$true] %s186
          %189 = dma.hbm_to_vmem [thread:$0]  %s185, 16, %s187, [#allocation9]
        $region20: #{manifold_embedding.1} parent=11 // pred_fallthru
          _
      $region12: #{manifold_embedding.1} parent=5 // pred_fallthru
        _
      %p190 = scmp.lt.s32.totalorder %s19, 2
      // Predicated region
      $region21: #{manifold_embedding.1} parent=5 // pred_check
        %p191 = pneg %p190
      $region22: #{manifold_embedding.1} parent=5 // pred_check_branch
        %193 = sbr.rel (%p191) target = $region24
      $region23: #{manifold_embedding.1} parent=5 // pred_region
        // Predicated region
        $region25: #{manifold_embedding.1} parent=23 // pred_check
          %p194 = pneg %p60
        $region26: #{manifold_embedding.1} parent=23 // pred_check_branch
          %196 = sbr.rel (%p194) target = $region28
        $region27: #{manifold_embedding.1} parent=23 // pred_region
          %s197 = sand.u32 %s50, 1
          %s198 = scalar_lea.sflag [#allocation3], %s197
          %s199 = sand.u32 %s50, 1
          %s200 = smul.addr %s199, 4096
          %s201 = scalar_lea.vmem [#allocation2], %s200
          %203 = vsyncadd %s198, 0
          %s204 = smul.addr %s19, 1024
          %s205 = smul.addr %s204, 4
          %s206 = scalar_lea.hbm %s1, %s205
          %s207 = sshll.u32 %s206, 4
          %s208 = int_to_ptr.hbm [resolvable:$true] %s207
          %s209 = sshll.u32 %s201, 4
          %s210 = int_to_ptr.vmem [resolvable:$true] %s209
          %215 = dma.hbm_to_vmem [thread:$0]  %s208, 65536, %s210, %s198, 1024, 1024, 64
        $region28: #{manifold_embedding.1} parent=23 // pred_fallthru
          _
        // Predicated region
        $region29: #{manifold_embedding.1} parent=23 // pred_check
          %p216 = pneg %p86
        $region30: #{manifold_embedding.1} parent=23 // pred_check_branch
          %218 = sbr.rel (%p216) target = $region32
        $region31: #{manifold_embedding.1} parent=23 // pred_region
          %s219 = sand.u32 %s19, 1
          %s220 = scalar_lea.sflag [#allocation6], %s219
          %s221 = sand.u32 %s76, 1
          %s222 = smul.addr %s221, 64
          %s223 = scalar_lea.vmem [#allocation5], %s222
          %s224 = smul.u32 16, %s19
          %226 = vsyncadd %s220, 0
          %s227 = smul.addr %s224, 4
          %s228 = scalar_lea.hbm %s2, %s227
          %s230 = sshll.u32 %s228, 4
          %s231 = int_to_ptr.hbm [resolvable:$true] %s230
          %s232 = sshll.u32 %s223, 4
          %s233 = int_to_ptr.vmem [resolvable:$true] %s232
          %235 = dma.hbm_to_vmem [thread:$0]  %s231, 1024, %s233, %s220
        $region32: #{manifold_embedding.1} parent=23 // pred_fallthru
          _
        // Predicated region
        $region33: #{manifold_embedding.1} parent=23 // pred_check
          %p236 = pneg %p112
        $region34: #{manifold_embedding.1} parent=23 // pred_check_branch
          %238 = sbr.rel (%p236) target = $region36
        $region35: #{manifold_embedding.1} parent=23 // pred_region
          %s239 = sand.u32 %s19, 1
          %s240 = scalar_lea.sflag [#allocation6], %s239
          %s241 = sand.u32 %s102, 1
          %s242 = smul.addr %s241, 1024
          %s243 = scalar_lea.vmem [#allocation7], %s242
          %s244 = smul.u32 256, %s19
          %246 = vsyncadd %s240, 0
          %s247 = smul.addr %s244, 4
          %s248 = scalar_lea.hbm %s3, %s247
          %s249 = sshll.u32 %s248, 4
          %s250 = int_to_ptr.hbm [resolvable:$true] %s249
          %s251 = sshll.u32 %s243, 4
          %s252 = int_to_ptr.vmem [resolvable:$true] %s251
          %257 = dma.hbm_to_vmem [thread:$0]  %s250, 16384, %s252, %s240, 64, 64, 4
        $region36: #{manifold_embedding.1} parent=23 // pred_fallthru
          _
      $region24: #{manifold_embedding.1} parent=5 // pred_fallthru
        _
      %p258 = scmp.le.s32.totalorder 1, %s19
      %p259 = scmp.lt.s32.totalorder %s19, 3
      %p260 = pnand %p258, %p259
      %p261 = pneg %p260
      // Predicated region
      $region37: #{manifold_embedding.1} parent=5 // pred_check
        _
      $region38: #{manifold_embedding.1} parent=5 // pred_check_branch
        %263 = sbr.rel (%p260) target = $region40
      $region39: #{manifold_embedding.1} parent=5 // pred_region
        %s264 = ssub.s32 %s19, 1
        %s265 = sand.u32 %s53, 1
        %s266 = scalar_lea.sflag [#allocation3], %s265
        %s267 = sand.u32 %s53, 1
        %s268 = smul.addr %s267, 4096
        %s269 = scalar_lea.vmem [#allocation2], %s268
        // Predicated region
        $region41: #{manifold_embedding.1} parent=39 // pred_check
          %p270 = pneg %p66
        $region42: #{manifold_embedding.1} parent=39 // pred_check_branch
          %272 = sbr.rel (%p270) target = $region44
        $region43: #{manifold_embedding.1} parent=39 // pred_region
          %274 = dma.done %s266, 65536
        $region44: #{manifold_embedding.1} parent=39 // pred_fallthru
          _
        %s275 = sand.u32 %s24, 1
        %s276 = scalar_lea.sflag [#allocation6], %s275
        %s277 = sand.u32 %s79, 1
        %s278 = smul.addr %s277, 64
        %s279 = scalar_lea.vmem [#allocation5], %s278
        // Predicated region
        $region45: #{manifold_embedding.1} parent=39 // pred_check
          %p280 = pneg %p92
        $region46: #{manifold_embedding.1} parent=39 // pred_check_branch
          %282 = sbr.rel (%p280) target = $region48
        $region47: #{manifold_embedding.1} parent=39 // pred_region
          %284 = dma.done %s276, 1024
        $region48: #{manifold_embedding.1} parent=39 // pred_fallthru
          _
        %s285 = sand.u32 %s24, 1
        %s286 = scalar_lea.sflag [#allocation6], %s285
        %s287 = sand.u32 %s105, 1
        %s288 = smul.addr %s287, 1024
        %s289 = scalar_lea.vmem [#allocation7], %s288
        // Predicated region
        $region49: #{manifold_embedding.1} parent=39 // pred_check
          %p290 = pneg %p118
        $region50: #{manifold_embedding.1} parent=39 // pred_check_branch
          %292 = sbr.rel (%p290) target = $region52
        $region51: #{manifold_embedding.1} parent=39 // pred_region
          %294 = dma.done %s286, 16384
        $region52: #{manifold_embedding.1} parent=39 // pred_fallthru
          _
        // Predicated region
        $region53: #{manifold_embedding.1} parent=39 // pred_check
          %p295 = pneg %p139
        $region54: #{manifold_embedding.1} parent=39 // pred_check_branch
          %297 = sbr.rel (%p295) target = $region56
        $region55: #{manifold_embedding.1} parent=39 // pred_region
          %299 = dma.done [#allocation9], 16
        $region56: #{manifold_embedding.1} parent=39 // pred_fallthru
          _
        %p300 = pneg %p40
        %p301 = pneg %p37
        %s302 = sand.u32 %s53, 1
        %s303 = scalar_lea.sflag [#allocation3], %s302
        %s304 = sand.u32 %s53, 1
        %s305 = smul.addr %s304, 4096
        %s306 = scalar_lea.vmem [#allocation2], %s305
        %p307 = pneg %p66
        %p308 = pneg %p63
        %s309 = sand.u32 %s24, 1
        %s310 = scalar_lea.sflag [#allocation6], %s309
        %s311 = sand.u32 %s79, 1
        %s312 = smul.addr %s311, 64
        %s313 = scalar_lea.vmem [#allocation5], %s312
        %p314 = pneg %p92
        %p315 = pneg %p89
        %s316 = sand.u32 %s24, 1
        %s317 = scalar_lea.sflag [#allocation6], %s316
        %s318 = sand.u32 %s105, 1
        %s319 = smul.addr %s318, 1024
        %s320 = scalar_lea.vmem [#allocation7], %s319
        %p321 = pneg %p118
        %p322 = pneg %p115
        %p323 = pneg %p139
        %p324 = pneg %p136
        %p325 = pneg %p160
        %p326 = pneg %p157
        %s327 = smul.u32 16, %s24
        %s328 = smul.u32 256, %s24
        %v329 = vld [vmem:[%s0] sm:$0xff]
        %v330 = vld [vmem:[%s0 + $0x8] sm:$0xff]
        %v331 = vld [vmem:[%s269] sm:$0xff]
        %v332 = vld [vmem:[%s269 + $0x8] sm:$0xff]
        %v333 = vld [vmem:[%s269 + $0x10] sm:$0xff]
        %v334 = vld [vmem:[%s269 + $0x18] sm:$0xff]
        %v335 = vld [vmem:[%s269 + $0x20] sm:$0xff]
        %v336 = vld [vmem:[%s269 + $0x28] sm:$0xff]
        %v337 = vld [vmem:[%s269 + $0x30] sm:$0xff]
        %v338 = vld [vmem:[%s269 + $0x38] sm:$0xff]
        %v339 = vld [vmem:[%s269 + $0x40] sm:$0xff]
        %v340 = vld [vmem:[%s269 + $0x48] sm:$0xff]
        %v341 = vld [vmem:[%s269 + $0x50] sm:$0xff]
        %v342 = vld [vmem:[%s269 + $0x58] sm:$0xff]
        %v343 = vld [vmem:[%s269 + $0x60] sm:$0xff]
        %v344 = vld [vmem:[%s269 + $0x68] sm:$0xff]
        %v345 = vld [vmem:[%s269 + $0x70] sm:$0xff]
        %v346 = vld [vmem:[%s269 + $0x78] sm:$0xff]
        %v347 = vld [vmem:[%s269 + $0x80] sm:$0xff]
        %v348 = vld [vmem:[%s269 + $0x88] sm:$0xff]
        %v349 = vld [vmem:[%s269 + $0x90] sm:$0xff]
        %v350 = vld [vmem:[%s269 + $0x98] sm:$0xff]
        %v351 = vld [vmem:[%s269 + $0xa0] sm:$0xff]
        %v352 = vld [vmem:[%s269 + $0xa8] sm:$0xff]
        %v353 = vld [vmem:[%s269 + $0xb0] sm:$0xff]
        %v354 = vld [vmem:[%s269 + $0xb8] sm:$0xff]
        %v355 = vld [vmem:[%s269 + $0xc0] sm:$0xff]
        %v356 = vld [vmem:[%s269 + $0xc8] sm:$0xff]
        %v357 = vld [vmem:[%s269 + $0xd0] sm:$0xff]
        %v358 = vld [vmem:[%s269 + $0xd8] sm:$0xff]
        %v359 = vld [vmem:[%s269 + $0xe0] sm:$0xff]
        %v360 = vld [vmem:[%s269 + $0xe8] sm:$0xff]
        %v361 = vld [vmem:[%s269 + $0xf0] sm:$0xff]
        %v362 = vld [vmem:[%s269 + $0xf8] sm:$0xff]
        %v363 = vld [vmem:[%s269 + $0x100] sm:$0xff]
        %v364 = vld [vmem:[%s269 + $0x108] sm:$0xff]
        %v365 = vld [vmem:[%s269 + $0x110] sm:$0xff]
        %v366 = vld [vmem:[%s269 + $0x118] sm:$0xff]
        %v367 = vld [vmem:[%s269 + $0x120] sm:$0xff]
        %v368 = vld [vmem:[%s269 + $0x128] sm:$0xff]
        %v369 = vld [vmem:[%s269 + $0x130] sm:$0xff]
        %v370 = vld [vmem:[%s269 + $0x138] sm:$0xff]
        %v371 = vld [vmem:[%s269 + $0x140] sm:$0xff]
        %v372 = vld [vmem:[%s269 + $0x148] sm:$0xff]
        %v373 = vld [vmem:[%s269 + $0x150] sm:$0xff]
        %v374 = vld [vmem:[%s269 + $0x158] sm:$0xff]
        %v375 = vld [vmem:[%s269 + $0x160] sm:$0xff]
        %v376 = vld [vmem:[%s269 + $0x168] sm:$0xff]
        %v377 = vld [vmem:[%s269 + $0x170] sm:$0xff]
        %v378 = vld [vmem:[%s269 + $0x178] sm:$0xff]
        %v379 = vld [vmem:[%s269 + $0x180] sm:$0xff]
        %v380 = vld [vmem:[%s269 + $0x188] sm:$0xff]
        %v381 = vld [vmem:[%s269 + $0x190] sm:$0xff]
        %v382 = vld [vmem:[%s269 + $0x198] sm:$0xff]
        %v383 = vld [vmem:[%s269 + $0x1a0] sm:$0xff]
        %v384 = vld [vmem:[%s269 + $0x1a8] sm:$0xff]
        %v385 = vld [vmem:[%s269 + $0x1b0] sm:$0xff]
        %v386 = vld [vmem:[%s269 + $0x1b8] sm:$0xff]
        %v387 = vld [vmem:[%s269 + $0x1c0] sm:$0xff]
        %v388 = vld [vmem:[%s269 + $0x1c8] sm:$0xff]
        %v389 = vld [vmem:[%s269 + $0x1d0] sm:$0xff]
        %v390 = vld [vmem:[%s269 + $0x1d8] sm:$0xff]
        %v391 = vld [vmem:[%s269 + $0x1e0] sm:$0xff]
        %v392 = vld [vmem:[%s269 + $0x1e8] sm:$0xff]
        %v393 = vld [vmem:[%s269 + $0x1f0] sm:$0xff]
        %v394 = vld [vmem:[%s269 + $0x1f8] sm:$0xff]
        %v395 = vld [vmem:[%s269 + $0x200] sm:$0xff]
        %v396 = vld [vmem:[%s269 + $0x208] sm:$0xff]
        %v397 = vld [vmem:[%s269 + $0x210] sm:$0xff]
        %v398 = vld [vmem:[%s269 + $0x218] sm:$0xff]
        %v399 = vld [vmem:[%s269 + $0x220] sm:$0xff]
        %v400 = vld [vmem:[%s269 + $0x228] sm:$0xff]
        %v401 = vld [vmem:[%s269 + $0x230] sm:$0xff]
        %v402 = vld [vmem:[%s269 + $0x238] sm:$0xff]
        %v403 = vld [vmem:[%s269 + $0x240] sm:$0xff]
        %v404 = vld [vmem:[%s269 + $0x248] sm:$0xff]
        %v405 = vld [vmem:[%s269 + $0x250] sm:$0xff]
        %v406 = vld [vmem:[%s269 + $0x258] sm:$0xff]
        %v407 = vld [vmem:[%s269 + $0x260] sm:$0xff]
        %v408 = vld [vmem:[%s269 + $0x268] sm:$0xff]
        %v409 = vld [vmem:[%s269 + $0x270] sm:$0xff]
        %v410 = vld [vmem:[%s269 + $0x278] sm:$0xff]
        %v411 = vld [vmem:[%s269 + $0x280] sm:$0xff]
        %v412 = vld [vmem:[%s269 + $0x288] sm:$0xff]
        %v413 = vld [vmem:[%s269 + $0x290] sm:$0xff]
        %v414 = vld [vmem:[%s269 + $0x298] sm:$0xff]
        %v415 = vld [vmem:[%s269 + $0x2a0] sm:$0xff]
        %v416 = vld [vmem:[%s269 + $0x2a8] sm:$0xff]
        %v417 = vld [vmem:[%s269 + $0x2b0] sm:$0xff]
        %v418 = vld [vmem:[%s269 + $0x2b8] sm:$0xff]
        %v419 = vld [vmem:[%s269 + $0x2c0] sm:$0xff]
        %v420 = vld [vmem:[%s269 + $0x2c8] sm:$0xff]
        %v421 = vld [vmem:[%s269 + $0x2d0] sm:$0xff]
        %v422 = vld [vmem:[%s269 + $0x2d8] sm:$0xff]
        %v423 = vld [vmem:[%s269 + $0x2e0] sm:$0xff]
        %v424 = vld [vmem:[%s269 + $0x2e8] sm:$0xff]
        %v425 = vld [vmem:[%s269 + $0x2f0] sm:$0xff]
        %v426 = vld [vmem:[%s269 + $0x2f8] sm:$0xff]
        %v427 = vld [vmem:[%s269 + $0x300] sm:$0xff]
        %v428 = vld [vmem:[%s269 + $0x308] sm:$0xff]
        %v429 = vld [vmem:[%s269 + $0x310] sm:$0xff]
        %v430 = vld [vmem:[%s269 + $0x318] sm:$0xff]
        %v431 = vld [vmem:[%s269 + $0x320] sm:$0xff]
        %v432 = vld [vmem:[%s269 + $0x328] sm:$0xff]
        %v433 = vld [vmem:[%s269 + $0x330] sm:$0xff]
        %v434 = vld [vmem:[%s269 + $0x338] sm:$0xff]
        %v435 = vld [vmem:[%s269 + $0x340] sm:$0xff]
        %v436 = vld [vmem:[%s269 + $0x348] sm:$0xff]
        %v437 = vld [vmem:[%s269 + $0x350] sm:$0xff]
        %v438 = vld [vmem:[%s269 + $0x358] sm:$0xff]
        %v439 = vld [vmem:[%s269 + $0x360] sm:$0xff]
        %v440 = vld [vmem:[%s269 + $0x368] sm:$0xff]
        %v441 = vld [vmem:[%s269 + $0x370] sm:$0xff]
        %v442 = vld [vmem:[%s269 + $0x378] sm:$0xff]
        %v443 = vld [vmem:[%s269 + $0x380] sm:$0xff]
        %v444 = vld [vmem:[%s269 + $0x388] sm:$0xff]
        %v445 = vld [vmem:[%s269 + $0x390] sm:$0xff]
        %v446 = vld [vmem:[%s269 + $0x398] sm:$0xff]
        %v447 = vld [vmem:[%s269 + $0x3a0] sm:$0xff]
        %v448 = vld [vmem:[%s269 + $0x3a8] sm:$0xff]
        %v449 = vld [vmem:[%s269 + $0x3b0] sm:$0xff]
        %v450 = vld [vmem:[%s269 + $0x3b8] sm:$0xff]
        %v451 = vld [vmem:[%s269 + $0x3c0] sm:$0xff]
        %v452 = vld [vmem:[%s269 + $0x3c8] sm:$0xff]
        %v453 = vld [vmem:[%s269 + $0x3d0] sm:$0xff]
        %v454 = vld [vmem:[%s269 + $0x3d8] sm:$0xff]
        %v455 = vld [vmem:[%s269 + $0x3e0] sm:$0xff]
        %v456 = vld [vmem:[%s269 + $0x3e8] sm:$0xff]
        %v457 = vld [vmem:[%s269 + $0x3f0] sm:$0xff]
        %v458 = vld [vmem:[%s269 + $0x3f8] sm:$0xff]
        %v459 = vld [vmem:[%s269 + $0x400] sm:$0xff]
        %v460 = vld [vmem:[%s269 + $0x408] sm:$0xff]
        %v461 = vld [vmem:[%s269 + $0x410] sm:$0xff]
        %v462 = vld [vmem:[%s269 + $0x418] sm:$0xff]
        %v463 = vld [vmem:[%s269 + $0x420] sm:$0xff]
        %v464 = vld [vmem:[%s269 + $0x428] sm:$0xff]
        %v465 = vld [vmem:[%s269 + $0x430] sm:$0xff]
        %v466 = vld [vmem:[%s269 + $0x438] sm:$0xff]
        %v467 = vld [vmem:[%s269 + $0x440] sm:$0xff]
        %v468 = vld [vmem:[%s269 + $0x448] sm:$0xff]
        %v469 = vld [vmem:[%s269 + $0x450] sm:$0xff]
        %v470 = vld [vmem:[%s269 + $0x458] sm:$0xff]
        %v471 = vld [vmem:[%s269 + $0x460] sm:$0xff]
        %v472 = vld [vmem:[%s269 + $0x468] sm:$0xff]
        %v473 = vld [vmem:[%s269 + $0x470] sm:$0xff]
        %v474 = vld [vmem:[%s269 + $0x478] sm:$0xff]
        %v475 = vld [vmem:[%s269 + $0x480] sm:$0xff]
        %v476 = vld [vmem:[%s269 + $0x488] sm:$0xff]
        %v477 = vld [vmem:[%s269 + $0x490] sm:$0xff]
        %v478 = vld [vmem:[%s269 + $0x498] sm:$0xff]
        %v479 = vld [vmem:[%s269 + $0x4a0] sm:$0xff]
        %v480 = vld [vmem:[%s269 + $0x4a8] sm:$0xff]
        %v481 = vld [vmem:[%s269 + $0x4b0] sm:$0xff]
        %v482 = vld [vmem:[%s269 + $0x4b8] sm:$0xff]
        %v483 = vld [vmem:[%s269 + $0x4c0] sm:$0xff]
        %v484 = vld [vmem:[%s269 + $0x4c8] sm:$0xff]
        %v485 = vld [vmem:[%s269 + $0x4d0] sm:$0xff]
        %v486 = vld [vmem:[%s269 + $0x4d8] sm:$0xff]
        %v487 = vld [vmem:[%s269 + $0x4e0] sm:$0xff]
        %v488 = vld [vmem:[%s269 + $0x4e8] sm:$0xff]
        %v489 = vld [vmem:[%s269 + $0x4f0] sm:$0xff]
        %v490 = vld [vmem:[%s269 + $0x4f8] sm:$0xff]
        %v491 = vld [vmem:[%s269 + $0x500] sm:$0xff]
        %v492 = vld [vmem:[%s269 + $0x508] sm:$0xff]
        %v493 = vld [vmem:[%s269 + $0x510] sm:$0xff]
        %v494 = vld [vmem:[%s269 + $0x518] sm:$0xff]
        %v495 = vld [vmem:[%s269 + $0x520] sm:$0xff]
        %v496 = vld [vmem:[%s269 + $0x528] sm:$0xff]
        %v497 = vld [vmem:[%s269 + $0x530] sm:$0xff]
        %v498 = vld [vmem:[%s269 + $0x538] sm:$0xff]
        %v499 = vld [vmem:[%s269 + $0x540] sm:$0xff]
        %v500 = vld [vmem:[%s269 + $0x548] sm:$0xff]
        %v501 = vld [vmem:[%s269 + $0x550] sm:$0xff]
        %v502 = vld [vmem:[%s269 + $0x558] sm:$0xff]
        %v503 = vld [vmem:[%s269 + $0x560] sm:$0xff]
        %v504 = vld [vmem:[%s269 + $0x568] sm:$0xff]
        %v505 = vld [vmem:[%s269 + $0x570] sm:$0xff]
        %v506 = vld [vmem:[%s269 + $0x578] sm:$0xff]
        %v507 = vld [vmem:[%s269 + $0x580] sm:$0xff]
        %v508 = vld [vmem:[%s269 + $0x588] sm:$0xff]
        %v509 = vld [vmem:[%s269 + $0x590] sm:$0xff]
        %v510 = vld [vmem:[%s269 + $0x598] sm:$0xff]
        %v511 = vld [vmem:[%s269 + $0x5a0] sm:$0xff]
        %v512 = vld [vmem:[%s269 + $0x5a8] sm:$0xff]
        %v513 = vld [vmem:[%s269 + $0x5b0] sm:$0xff]
        %v514 = vld [vmem:[%s269 + $0x5b8] sm:$0xff]
        %v515 = vld [vmem:[%s269 + $0x5c0] sm:$0xff]
        %v516 = vld [vmem:[%s269 + $0x5c8] sm:$0xff]
        %v517 = vld [vmem:[%s269 + $0x5d0] sm:$0xff]
        %v518 = vld [vmem:[%s269 + $0x5d8] sm:$0xff]
        %v519 = vld [vmem:[%s269 + $0x5e0] sm:$0xff]
        %v520 = vld [vmem:[%s269 + $0x5e8] sm:$0xff]
        %v521 = vld [vmem:[%s269 + $0x5f0] sm:$0xff]
        %v522 = vld [vmem:[%s269 + $0x5f8] sm:$0xff]
        %v523 = vld [vmem:[%s269 + $0x600] sm:$0xff]
        %v524 = vld [vmem:[%s269 + $0x608] sm:$0xff]
        %v525 = vld [vmem:[%s269 + $0x610] sm:$0xff]
        %v526 = vld [vmem:[%s269 + $0x618] sm:$0xff]
        %v527 = vld [vmem:[%s269 + $0x620] sm:$0xff]
        %v528 = vld [vmem:[%s269 + $0x628] sm:$0xff]
        %v529 = vld [vmem:[%s269 + $0x630] sm:$0xff]
        %v530 = vld [vmem:[%s269 + $0x638] sm:$0xff]
        %v531 = vld [vmem:[%s269 + $0x640] sm:$0xff]
        %v532 = vld [vmem:[%s269 + $0x648] sm:$0xff]
        %v533 = vld [vmem:[%s269 + $0x650] sm:$0xff]
        %v534 = vld [vmem:[%s269 + $0x658] sm:$0xff]
        %v535 = vld [vmem:[%s269 + $0x660] sm:$0xff]
        %v536 = vld [vmem:[%s269 + $0x668] sm:$0xff]
        %v537 = vld [vmem:[%s269 + $0x670] sm:$0xff]
        %v538 = vld [vmem:[%s269 + $0x678] sm:$0xff]
        %v539 = vld [vmem:[%s269 + $0x680] sm:$0xff]
        %v540 = vld [vmem:[%s269 + $0x688] sm:$0xff]
        %v541 = vld [vmem:[%s269 + $0x690] sm:$0xff]
        %v542 = vld [vmem:[%s269 + $0x698] sm:$0xff]
        %v543 = vld [vmem:[%s269 + $0x6a0] sm:$0xff]
        %v544 = vld [vmem:[%s269 + $0x6a8] sm:$0xff]
        %v545 = vld [vmem:[%s269 + $0x6b0] sm:$0xff]
        %v546 = vld [vmem:[%s269 + $0x6b8] sm:$0xff]
        %v547 = vld [vmem:[%s269 + $0x6c0] sm:$0xff]
        %v548 = vld [vmem:[%s269 + $0x6c8] sm:$0xff]
        %v549 = vld [vmem:[%s269 + $0x6d0] sm:$0xff]
        %v550 = vld [vmem:[%s269 + $0x6d8] sm:$0xff]
        %v551 = vld [vmem:[%s269 + $0x6e0] sm:$0xff]
        %v552 = vld [vmem:[%s269 + $0x6e8] sm:$0xff]
        %v553 = vld [vmem:[%s269 + $0x6f0] sm:$0xff]
        %v554 = vld [vmem:[%s269 + $0x6f8] sm:$0xff]
        %v555 = vld [vmem:[%s269 + $0x700] sm:$0xff]
        %v556 = vld [vmem:[%s269 + $0x708] sm:$0xff]
        %v557 = vld [vmem:[%s269 + $0x710] sm:$0xff]
        %v558 = vld [vmem:[%s269 + $0x718] sm:$0xff]
        %v559 = vld [vmem:[%s269 + $0x720] sm:$0xff]
        %v560 = vld [vmem:[%s269 + $0x728] sm:$0xff]
        %v561 = vld [vmem:[%s269 + $0x730] sm:$0xff]
        %v562 = vld [vmem:[%s269 + $0x738] sm:$0xff]
        %v563 = vld [vmem:[%s269 + $0x740] sm:$0xff]
        %v564 = vld [vmem:[%s269 + $0x748] sm:$0xff]
        %v565 = vld [vmem:[%s269 + $0x750] sm:$0xff]
        %v566 = vld [vmem:[%s269 + $0x758] sm:$0xff]
        %v567 = vld [vmem:[%s269 + $0x760] sm:$0xff]
        %v568 = vld [vmem:[%s269 + $0x768] sm:$0xff]
        %v569 = vld [vmem:[%s269 + $0x770] sm:$0xff]
        %v570 = vld [vmem:[%s269 + $0x778] sm:$0xff]
        %v571 = vld [vmem:[%s269 + $0x780] sm:$0xff]
        %v572 = vld [vmem:[%s269 + $0x788] sm:$0xff]
        %v573 = vld [vmem:[%s269 + $0x790] sm:$0xff]
        %v574 = vld [vmem:[%s269 + $0x798] sm:$0xff]
        %v575 = vld [vmem:[%s269 + $0x7a0] sm:$0xff]
        %v576 = vld [vmem:[%s269 + $0x7a8] sm:$0xff]
        %v577 = vld [vmem:[%s269 + $0x7b0] sm:$0xff]
        %v578 = vld [vmem:[%s269 + $0x7b8] sm:$0xff]
        %v579 = vld [vmem:[%s269 + $0x7c0] sm:$0xff]
        %v580 = vld [vmem:[%s269 + $0x7c8] sm:$0xff]
        %v581 = vld [vmem:[%s269 + $0x7d0] sm:$0xff]
        %v582 = vld [vmem:[%s269 + $0x7d8] sm:$0xff]
        %v583 = vld [vmem:[%s269 + $0x7e0] sm:$0xff]
        %v584 = vld [vmem:[%s269 + $0x7e8] sm:$0xff]
        %v585 = vld [vmem:[%s269 + $0x7f0] sm:$0xff]
        %v586 = vld [vmem:[%s269 + $0x7f8] sm:$0xff]
        %v587 = vld [vmem:[%s269 + $0x800] sm:$0xff]
        %v588 = vld [vmem:[%s269 + $0x808] sm:$0xff]
        %v589 = vld [vmem:[%s269 + $0x810] sm:$0xff]
        %v590 = vld [vmem:[%s269 + $0x818] sm:$0xff]
        %v591 = vld [vmem:[%s269 + $0x820] sm:$0xff]
        %v592 = vld [vmem:[%s269 + $0x828] sm:$0xff]
        %v593 = vld [vmem:[%s269 + $0x830] sm:$0xff]
        %v594 = vld [vmem:[%s269 + $0x838] sm:$0xff]
        %v595 = vld [vmem:[%s269 + $0x840] sm:$0xff]
        %v596 = vld [vmem:[%s269 + $0x848] sm:$0xff]
        %v597 = vld [vmem:[%s269 + $0x850] sm:$0xff]
        %v598 = vld [vmem:[%s269 + $0x858] sm:$0xff]
        %v599 = vld [vmem:[%s269 + $0x860] sm:$0xff]
        %v600 = vld [vmem:[%s269 + $0x868] sm:$0xff]
        %v601 = vld [vmem:[%s269 + $0x870] sm:$0xff]
        %v602 = vld [vmem:[%s269 + $0x878] sm:$0xff]
        %v603 = vld [vmem:[%s269 + $0x880] sm:$0xff]
        %v604 = vld [vmem:[%s269 + $0x888] sm:$0xff]
        %v605 = vld [vmem:[%s269 + $0x890] sm:$0xff]
        %v606 = vld [vmem:[%s269 + $0x898] sm:$0xff]
        %v607 = vld [vmem:[%s269 + $0x8a0] sm:$0xff]
        %v608 = vld [vmem:[%s269 + $0x8a8] sm:$0xff]
        %v609 = vld [vmem:[%s269 + $0x8b0] sm:$0xff]
        %v610 = vld [vmem:[%s269 + $0x8b8] sm:$0xff]
        %v611 = vld [vmem:[%s269 + $0x8c0] sm:$0xff]
        %v612 = vld [vmem:[%s269 + $0x8c8] sm:$0xff]
        %v613 = vld [vmem:[%s269 + $0x8d0] sm:$0xff]
        %v614 = vld [vmem:[%s269 + $0x8d8] sm:$0xff]
        %v615 = vld [vmem:[%s269 + $0x8e0] sm:$0xff]
        %v616 = vld [vmem:[%s269 + $0x8e8] sm:$0xff]
        %v617 = vld [vmem:[%s269 + $0x8f0] sm:$0xff]
        %v618 = vld [vmem:[%s269 + $0x8f8] sm:$0xff]
        %v619 = vld [vmem:[%s269 + $0x900] sm:$0xff]
        %v620 = vld [vmem:[%s269 + $0x908] sm:$0xff]
        %v621 = vld [vmem:[%s269 + $0x910] sm:$0xff]
        %v622 = vld [vmem:[%s269 + $0x918] sm:$0xff]
        %v623 = vld [vmem:[%s269 + $0x920] sm:$0xff]
        %v624 = vld [vmem:[%s269 + $0x928] sm:$0xff]
        %v625 = vld [vmem:[%s269 + $0x930] sm:$0xff]
        %v626 = vld [vmem:[%s269 + $0x938] sm:$0xff]
        %v627 = vld [vmem:[%s269 + $0x940] sm:$0xff]
        %v628 = vld [vmem:[%s269 + $0x948] sm:$0xff]
        %v629 = vld [vmem:[%s269 + $0x950] sm:$0xff]
        %v630 = vld [vmem:[%s269 + $0x958] sm:$0xff]
        %v631 = vld [vmem:[%s269 + $0x960] sm:$0xff]
        %v632 = vld [vmem:[%s269 + $0x968] sm:$0xff]
        %v633 = vld [vmem:[%s269 + $0x970] sm:$0xff]
        %v634 = vld [vmem:[%s269 + $0x978] sm:$0xff]
        %v635 = vld [vmem:[%s269 + $0x980] sm:$0xff]
        %v636 = vld [vmem:[%s269 + $0x988] sm:$0xff]
        %v637 = vld [vmem:[%s269 + $0x990] sm:$0xff]
        %v638 = vld [vmem:[%s269 + $0x998] sm:$0xff]
        %v639 = vld [vmem:[%s269 + $0x9a0] sm:$0xff]
        %v640 = vld [vmem:[%s269 + $0x9a8] sm:$0xff]
        %v641 = vld [vmem:[%s269 + $0x9b0] sm:$0xff]
        %v642 = vld [vmem:[%s269 + $0x9b8] sm:$0xff]
        %v643 = vld [vmem:[%s269 + $0x9c0] sm:$0xff]
        %v644 = vld [vmem:[%s269 + $0x9c8] sm:$0xff]
        %v645 = vld [vmem:[%s269 + $0x9d0] sm:$0xff]
        %v646 = vld [vmem:[%s269 + $0x9d8] sm:$0xff]
        %v647 = vld [vmem:[%s269 + $0x9e0] sm:$0xff]
        %v648 = vld [vmem:[%s269 + $0x9e8] sm:$0xff]
        %v649 = vld [vmem:[%s269 + $0x9f0] sm:$0xff]
        %v650 = vld [vmem:[%s269 + $0x9f8] sm:$0xff]
        %v651 = vld [vmem:[%s269 + $0xa00] sm:$0xff]
        %v652 = vld [vmem:[%s269 + $0xa08] sm:$0xff]
        %v653 = vld [vmem:[%s269 + $0xa10] sm:$0xff]
        %v654 = vld [vmem:[%s269 + $0xa18] sm:$0xff]
        %v655 = vld [vmem:[%s269 + $0xa20] sm:$0xff]
        %v656 = vld [vmem:[%s269 + $0xa28] sm:$0xff]
        %v657 = vld [vmem:[%s269 + $0xa30] sm:$0xff]
        %v658 = vld [vmem:[%s269 + $0xa38] sm:$0xff]
        %v659 = vld [vmem:[%s269 + $0xa40] sm:$0xff]
        %v660 = vld [vmem:[%s269 + $0xa48] sm:$0xff]
        %v661 = vld [vmem:[%s269 + $0xa50] sm:$0xff]
        %v662 = vld [vmem:[%s269 + $0xa58] sm:$0xff]
        %v663 = vld [vmem:[%s269 + $0xa60] sm:$0xff]
        %v664 = vld [vmem:[%s269 + $0xa68] sm:$0xff]
        %v665 = vld [vmem:[%s269 + $0xa70] sm:$0xff]
        %v666 = vld [vmem:[%s269 + $0xa78] sm:$0xff]
        %v667 = vld [vmem:[%s269 + $0xa80] sm:$0xff]
        %v668 = vld [vmem:[%s269 + $0xa88] sm:$0xff]
        %v669 = vld [vmem:[%s269 + $0xa90] sm:$0xff]
        %v670 = vld [vmem:[%s269 + $0xa98] sm:$0xff]
        %v671 = vld [vmem:[%s269 + $0xaa0] sm:$0xff]
        %v672 = vld [vmem:[%s269 + $0xaa8] sm:$0xff]
        %v673 = vld [vmem:[%s269 + $0xab0] sm:$0xff]
        %v674 = vld [vmem:[%s269 + $0xab8] sm:$0xff]
        %v675 = vld [vmem:[%s269 + $0xac0] sm:$0xff]
        %v676 = vld [vmem:[%s269 + $0xac8] sm:$0xff]
        %v677 = vld [vmem:[%s269 + $0xad0] sm:$0xff]
        %v678 = vld [vmem:[%s269 + $0xad8] sm:$0xff]
        %v679 = vld [vmem:[%s269 + $0xae0] sm:$0xff]
        %v680 = vld [vmem:[%s269 + $0xae8] sm:$0xff]
        %v681 = vld [vmem:[%s269 + $0xaf0] sm:$0xff]
        %v682 = vld [vmem:[%s269 + $0xaf8] sm:$0xff]
        %v683 = vld [vmem:[%s269 + $0xb00] sm:$0xff]
        %v684 = vld [vmem:[%s269 + $0xb08] sm:$0xff]
        %v685 = vld [vmem:[%s269 + $0xb10] sm:$0xff]
        %v686 = vld [vmem:[%s269 + $0xb18] sm:$0xff]
        %v687 = vld [vmem:[%s269 + $0xb20] sm:$0xff]
        %v688 = vld [vmem:[%s269 + $0xb28] sm:$0xff]
        %v689 = vld [vmem:[%s269 + $0xb30] sm:$0xff]
        %v690 = vld [vmem:[%s269 + $0xb38] sm:$0xff]
        %v691 = vld [vmem:[%s269 + $0xb40] sm:$0xff]
        %v692 = vld [vmem:[%s269 + $0xb48] sm:$0xff]
        %v693 = vld [vmem:[%s269 + $0xb50] sm:$0xff]
        %v694 = vld [vmem:[%s269 + $0xb58] sm:$0xff]
        %v695 = vld [vmem:[%s269 + $0xb60] sm:$0xff]
        %v696 = vld [vmem:[%s269 + $0xb68] sm:$0xff]
        %v697 = vld [vmem:[%s269 + $0xb70] sm:$0xff]
        %v698 = vld [vmem:[%s269 + $0xb78] sm:$0xff]
        %v699 = vld [vmem:[%s269 + $0xb80] sm:$0xff]
        %v700 = vld [vmem:[%s269 + $0xb88] sm:$0xff]
        %v701 = vld [vmem:[%s269 + $0xb90] sm:$0xff]
        %v702 = vld [vmem:[%s269 + $0xb98] sm:$0xff]
        %v703 = vld [vmem:[%s269 + $0xba0] sm:$0xff]
        %v704 = vld [vmem:[%s269 + $0xba8] sm:$0xff]
        %v705 = vld [vmem:[%s269 + $0xbb0] sm:$0xff]
        %v706 = vld [vmem:[%s269 + $0xbb8] sm:$0xff]
        %v707 = vld [vmem:[%s269 + $0xbc0] sm:$0xff]
        %v708 = vld [vmem:[%s269 + $0xbc8] sm:$0xff]
        %v709 = vld [vmem:[%s269 + $0xbd0] sm:$0xff]
        %v710 = vld [vmem:[%s269 + $0xbd8] sm:$0xff]
        %v711 = vld [vmem:[%s269 + $0xbe0] sm:$0xff]
        %v712 = vld [vmem:[%s269 + $0xbe8] sm:$0xff]
        %v713 = vld [vmem:[%s269 + $0xbf0] sm:$0xff]
        %v714 = vld [vmem:[%s269 + $0xbf8] sm:$0xff]
        %v715 = vld [vmem:[%s269 + $0xc00] sm:$0xff]
        %v716 = vld [vmem:[%s269 + $0xc08] sm:$0xff]
        %v717 = vld [vmem:[%s269 + $0xc10] sm:$0xff]
        %v718 = vld [vmem:[%s269 + $0xc18] sm:$0xff]
        %v719 = vld [vmem:[%s269 + $0xc20] sm:$0xff]
        %v720 = vld [vmem:[%s269 + $0xc28] sm:$0xff]
        %v721 = vld [vmem:[%s269 + $0xc30] sm:$0xff]
        %v722 = vld [vmem:[%s269 + $0xc38] sm:$0xff]
        %v723 = vld [vmem:[%s269 + $0xc40] sm:$0xff]
        %v724 = vld [vmem:[%s269 + $0xc48] sm:$0xff]
        %v725 = vld [vmem:[%s269 + $0xc50] sm:$0xff]
        %v726 = vld [vmem:[%s269 + $0xc58] sm:$0xff]
        %v727 = vld [vmem:[%s269 + $0xc60] sm:$0xff]
        %v728 = vld [vmem:[%s269 + $0xc68] sm:$0xff]
        %v729 = vld [vmem:[%s269 + $0xc70] sm:$0xff]
        %v730 = vld [vmem:[%s269 + $0xc78] sm:$0xff]
        %v731 = vld [vmem:[%s269 + $0xc80] sm:$0xff]
        %v732 = vld [vmem:[%s269 + $0xc88] sm:$0xff]
        %v733 = vld [vmem:[%s269 + $0xc90] sm:$0xff]
        %v734 = vld [vmem:[%s269 + $0xc98] sm:$0xff]
        %v735 = vld [vmem:[%s269 + $0xca0] sm:$0xff]
        %v736 = vld [vmem:[%s269 + $0xca8] sm:$0xff]
        %v737 = vld [vmem:[%s269 + $0xcb0] sm:$0xff]
        %v738 = vld [vmem:[%s269 + $0xcb8] sm:$0xff]
        %v739 = vld [vmem:[%s269 + $0xcc0] sm:$0xff]
        %v740 = vld [vmem:[%s269 + $0xcc8] sm:$0xff]
        %v741 = vld [vmem:[%s269 + $0xcd0] sm:$0xff]
        %v742 = vld [vmem:[%s269 + $0xcd8] sm:$0xff]
        %v743 = vld [vmem:[%s269 + $0xce0] sm:$0xff]
        %v744 = vld [vmem:[%s269 + $0xce8] sm:$0xff]
        %v745 = vld [vmem:[%s269 + $0xcf0] sm:$0xff]
        %v746 = vld [vmem:[%s269 + $0xcf8] sm:$0xff]
        %v747 = vld [vmem:[%s269 + $0xd00] sm:$0xff]
        %v748 = vld [vmem:[%s269 + $0xd08] sm:$0xff]
        %v749 = vld [vmem:[%s269 + $0xd10] sm:$0xff]
        %v750 = vld [vmem:[%s269 + $0xd18] sm:$0xff]
        %v751 = vld [vmem:[%s269 + $0xd20] sm:$0xff]
        %v752 = vld [vmem:[%s269 + $0xd28] sm:$0xff]
        %v753 = vld [vmem:[%s269 + $0xd30] sm:$0xff]
        %v754 = vld [vmem:[%s269 + $0xd38] sm:$0xff]
        %v755 = vld [vmem:[%s269 + $0xd40] sm:$0xff]
        %v756 = vld [vmem:[%s269 + $0xd48] sm:$0xff]
        %v757 = vld [vmem:[%s269 + $0xd50] sm:$0xff]
        %v758 = vld [vmem:[%s269 + $0xd58] sm:$0xff]
        %v759 = vld [vmem:[%s269 + $0xd60] sm:$0xff]
        %v760 = vld [vmem:[%s269 + $0xd68] sm:$0xff]
        %v761 = vld [vmem:[%s269 + $0xd70] sm:$0xff]
        %v762 = vld [vmem:[%s269 + $0xd78] sm:$0xff]
        %v763 = vld [vmem:[%s269 + $0xd80] sm:$0xff]
        %v764 = vld [vmem:[%s269 + $0xd88] sm:$0xff]
        %v765 = vld [vmem:[%s269 + $0xd90] sm:$0xff]
        %v766 = vld [vmem:[%s269 + $0xd98] sm:$0xff]
        %v767 = vld [vmem:[%s269 + $0xda0] sm:$0xff]
        %v768 = vld [vmem:[%s269 + $0xda8] sm:$0xff]
        %v769 = vld [vmem:[%s269 + $0xdb0] sm:$0xff]
        %v770 = vld [vmem:[%s269 + $0xdb8] sm:$0xff]
        %v771 = vld [vmem:[%s269 + $0xdc0] sm:$0xff]
        %v772 = vld [vmem:[%s269 + $0xdc8] sm:$0xff]
        %v773 = vld [vmem:[%s269 + $0xdd0] sm:$0xff]
        %v774 = vld [vmem:[%s269 + $0xdd8] sm:$0xff]
        %v775 = vld [vmem:[%s269 + $0xde0] sm:$0xff]
        %v776 = vld [vmem:[%s269 + $0xde8] sm:$0xff]
        %v777 = vld [vmem:[%s269 + $0xdf0] sm:$0xff]
        %v778 = vld [vmem:[%s269 + $0xdf8] sm:$0xff]
        %v779 = vld [vmem:[%s269 + $0xe00] sm:$0xff]
        %v780 = vld [vmem:[%s269 + $0xe08] sm:$0xff]
        %v781 = vld [vmem:[%s269 + $0xe10] sm:$0xff]
        %v782 = vld [vmem:[%s269 + $0xe18] sm:$0xff]
        %v783 = vld [vmem:[%s269 + $0xe20] sm:$0xff]
        %v784 = vld [vmem:[%s269 + $0xe28] sm:$0xff]
        %v785 = vld [vmem:[%s269 + $0xe30] sm:$0xff]
        %v786 = vld [vmem:[%s269 + $0xe38] sm:$0xff]
        %v787 = vld [vmem:[%s269 + $0xe40] sm:$0xff]
        %v788 = vld [vmem:[%s269 + $0xe48] sm:$0xff]
        %v789 = vld [vmem:[%s269 + $0xe50] sm:$0xff]
        %v790 = vld [vmem:[%s269 + $0xe58] sm:$0xff]
        %v791 = vld [vmem:[%s269 + $0xe60] sm:$0xff]
        %v792 = vld [vmem:[%s269 + $0xe68] sm:$0xff]
        %v793 = vld [vmem:[%s269 + $0xe70] sm:$0xff]
        %v794 = vld [vmem:[%s269 + $0xe78] sm:$0xff]
        %v795 = vld [vmem:[%s269 + $0xe80] sm:$0xff]
        %v796 = vld [vmem:[%s269 + $0xe88] sm:$0xff]
        %v797 = vld [vmem:[%s269 + $0xe90] sm:$0xff]
        %v798 = vld [vmem:[%s269 + $0xe98] sm:$0xff]
        %v799 = vld [vmem:[%s269 + $0xea0] sm:$0xff]
        %v800 = vld [vmem:[%s269 + $0xea8] sm:$0xff]
        %v801 = vld [vmem:[%s269 + $0xeb0] sm:$0xff]
        %v802 = vld [vmem:[%s269 + $0xeb8] sm:$0xff]
        %v803 = vld [vmem:[%s269 + $0xec0] sm:$0xff]
        %v804 = vld [vmem:[%s269 + $0xec8] sm:$0xff]
        %v805 = vld [vmem:[%s269 + $0xed0] sm:$0xff]
        %v806 = vld [vmem:[%s269 + $0xed8] sm:$0xff]
        %v807 = vld [vmem:[%s269 + $0xee0] sm:$0xff]
        %v808 = vld [vmem:[%s269 + $0xee8] sm:$0xff]
        %v809 = vld [vmem:[%s269 + $0xef0] sm:$0xff]
        %v810 = vld [vmem:[%s269 + $0xef8] sm:$0xff]
        %v811 = vld [vmem:[%s269 + $0xf00] sm:$0xff]
        %v812 = vld [vmem:[%s269 + $0xf08] sm:$0xff]
        %v813 = vld [vmem:[%s269 + $0xf10] sm:$0xff]
        %v814 = vld [vmem:[%s269 + $0xf18] sm:$0xff]
        %v815 = vld [vmem:[%s269 + $0xf20] sm:$0xff]
        %v816 = vld [vmem:[%s269 + $0xf28] sm:$0xff]
        %v817 = vld [vmem:[%s269 + $0xf30] sm:$0xff]
        %v818 = vld [vmem:[%s269 + $0xf38] sm:$0xff]
        %v819 = vld [vmem:[%s269 + $0xf40] sm:$0xff]
        %v820 = vld [vmem:[%s269 + $0xf48] sm:$0xff]
        %v821 = vld [vmem:[%s269 + $0xf50] sm:$0xff]
        %v822 = vld [vmem:[%s269 + $0xf58] sm:$0xff]
        %v823 = vld [vmem:[%s269 + $0xf60] sm:$0xff]
        %v824 = vld [vmem:[%s269 + $0xf68] sm:$0xff]
        %v825 = vld [vmem:[%s269 + $0xf70] sm:$0xff]
        %v826 = vld [vmem:[%s269 + $0xf78] sm:$0xff]
        %v827 = vld [vmem:[%s269 + $0xf80] sm:$0xff]
        %v828 = vld [vmem:[%s269 + $0xf88] sm:$0xff]
        %v829 = vld [vmem:[%s269 + $0xf90] sm:$0xff]
        %v830 = vld [vmem:[%s269 + $0xf98] sm:$0xff]
        %v831 = vld [vmem:[%s269 + $0xfa0] sm:$0xff]
        %v832 = vld [vmem:[%s269 + $0xfa8] sm:$0xff]
        %v833 = vld [vmem:[%s269 + $0xfb0] sm:$0xff]
        %v834 = vld [vmem:[%s269 + $0xfb8] sm:$0xff]
        %v835 = vld [vmem:[%s269 + $0xfc0] sm:$0xff]
        %v836 = vld [vmem:[%s269 + $0xfc8] sm:$0xff]
        %v837 = vld [vmem:[%s269 + $0xfd0] sm:$0xff]
        %v838 = vld [vmem:[%s269 + $0xfd8] sm:$0xff]
        %v839 = vld [vmem:[%s269 + $0xfe0] sm:$0xff]
        %v840 = vld [vmem:[%s269 + $0xfe8] sm:$0xff]
        %v841 = vld [vmem:[%s269 + $0xff0] sm:$0xff]
        %v842 = vld [vmem:[%s269 + $0xff8] sm:$0xff]
        %v843 = vld [vmem:[%s279] ss:$4 sm:$0xff]
        %s844 = scalar_lea.vmem %s279, 32 [#allocation5]
        %v845 = vld [vmem:[%s844] ss:$4 sm:$0xff]
        %v848 = vperm.slane %v843, 0
        %v849 = vperm.slane %v843, 1
        %v850 = vperm.slane %v843, 2
        %v851 = vperm.slane %v843, 3
        %v852 = vperm.slane %v843, 4
        %v853 = vperm.slane %v843, 5
        %v854 = vperm.slane %v843, 6
        %v855 = vperm.slane %v843, 7
        %v856 = vperm.slane %v845, 0
        %v857 = vperm.slane %v845, 1
        %v858 = vperm.slane %v845, 2
        %v859 = vperm.slane %v845, 3
        %v860 = vperm.slane %v845, 4
        %v861 = vperm.slane %v845, 5
        %v862 = vperm.slane %v845, 6
        %v863 = vperm.slane %v845, 7
        %v882 = vunpack.c.l.b16 %v329
        %v883 = vunpack.c.h.b16 %v329
        %v884 = vunpack.c.l.b16 %v330
        %v885 = vunpack.c.h.b16 %v330
        %v886 = vpack.c.b16 %v882, %v882
        %v887 = vpack.c.b16 %v883, %v883
        %v888 = vpack.c.b16 %v884, %v884
        %v889 = vpack.c.b16 %v885, %v885
        %v1406 = vunpack.c.l.b16 %v331
        %v1407 = vunpack.c.h.b16 %v331
        %v1408 = vunpack.c.l.b16 %v332
        %v1409 = vunpack.c.h.b16 %v332
        %v1410 = vunpack.c.l.b16 %v333
        %v1411 = vunpack.c.h.b16 %v333
        %v1412 = vunpack.c.l.b16 %v334
        %v1413 = vunpack.c.h.b16 %v334
        %v1414 = vunpack.c.l.b16 %v335
        %v1415 = vunpack.c.h.b16 %v335
        %v1416 = vunpack.c.l.b16 %v336
        %v1417 = vunpack.c.h.b16 %v336
        %v1418 = vunpack.c.l.b16 %v337
        %v1419 = vunpack.c.h.b16 %v337
        %v1420 = vunpack.c.l.b16 %v338
        %v1421 = vunpack.c.h.b16 %v338
        %v1422 = vunpack.c.l.b16 %v339
        %v1423 = vunpack.c.h.b16 %v339
        %v1424 = vunpack.c.l.b16 %v340
        %v1425 = vunpack.c.h.b16 %v340
        %v1426 = vunpack.c.l.b16 %v341
        %v1427 = vunpack.c.h.b16 %v341
        %v1428 = vunpack.c.l.b16 %v342
        %v1429 = vunpack.c.h.b16 %v342
        %v1430 = vunpack.c.l.b16 %v343
        %v1431 = vunpack.c.h.b16 %v343
        %v1432 = vunpack.c.l.b16 %v344
        %v1433 = vunpack.c.h.b16 %v344
        %v1434 = vunpack.c.l.b16 %v345
        %v1435 = vunpack.c.h.b16 %v345
        %v1436 = vunpack.c.l.b16 %v346
        %v1437 = vunpack.c.h.b16 %v346
        %v1438 = vunpack.c.l.b16 %v347
        %v1439 = vunpack.c.h.b16 %v347
        %v1440 = vunpack.c.l.b16 %v348
        %v1441 = vunpack.c.h.b16 %v348
        %v1442 = vunpack.c.l.b16 %v349
        %v1443 = vunpack.c.h.b16 %v349
        %v1444 = vunpack.c.l.b16 %v350
        %v1445 = vunpack.c.h.b16 %v350
        %v1446 = vunpack.c.l.b16 %v351
        %v1447 = vunpack.c.h.b16 %v351
        %v1448 = vunpack.c.l.b16 %v352
        %v1449 = vunpack.c.h.b16 %v352
        %v1450 = vunpack.c.l.b16 %v353
        %v1451 = vunpack.c.h.b16 %v353
        %v1452 = vunpack.c.l.b16 %v354
        %v1453 = vunpack.c.h.b16 %v354
        %v1454 = vunpack.c.l.b16 %v355
        %v1455 = vunpack.c.h.b16 %v355
        %v1456 = vunpack.c.l.b16 %v356
        %v1457 = vunpack.c.h.b16 %v356
        %v1458 = vunpack.c.l.b16 %v357
        %v1459 = vunpack.c.h.b16 %v357
        %v1460 = vunpack.c.l.b16 %v358
        %v1461 = vunpack.c.h.b16 %v358
        %v1462 = vunpack.c.l.b16 %v359
        %v1463 = vunpack.c.h.b16 %v359
        %v1464 = vunpack.c.l.b16 %v360
        %v1465 = vunpack.c.h.b16 %v360
        %v1466 = vunpack.c.l.b16 %v361
        %v1467 = vunpack.c.h.b16 %v361
        %v1468 = vunpack.c.l.b16 %v362
        %v1469 = vunpack.c.h.b16 %v362
        %v1470 = vunpack.c.l.b16 %v363
        %v1471 = vunpack.c.h.b16 %v363
        %v1472 = vunpack.c.l.b16 %v364
        %v1473 = vunpack.c.h.b16 %v364
        %v1474 = vunpack.c.l.b16 %v365
        %v1475 = vunpack.c.h.b16 %v365
        %v1476 = vunpack.c.l.b16 %v366
        %v1477 = vunpack.c.h.b16 %v366
        %v1478 = vunpack.c.l.b16 %v367
        %v1479 = vunpack.c.h.b16 %v367
        %v1480 = vunpack.c.l.b16 %v368
        %v1481 = vunpack.c.h.b16 %v368
        %v1482 = vunpack.c.l.b16 %v369
        %v1483 = vunpack.c.h.b16 %v369
        %v1484 = vunpack.c.l.b16 %v370
        %v1485 = vunpack.c.h.b16 %v370
        %v1486 = vunpack.c.l.b16 %v371
        %v1487 = vunpack.c.h.b16 %v371
        %v1488 = vunpack.c.l.b16 %v372
        %v1489 = vunpack.c.h.b16 %v372
        %v1490 = vunpack.c.l.b16 %v373
        %v1491 = vunpack.c.h.b16 %v373
        %v1492 = vunpack.c.l.b16 %v374
        %v1493 = vunpack.c.h.b16 %v374
        %v1494 = vunpack.c.l.b16 %v375
        %v1495 = vunpack.c.h.b16 %v375
        %v1496 = vunpack.c.l.b16 %v376
        %v1497 = vunpack.c.h.b16 %v376
        %v1498 = vunpack.c.l.b16 %v377
        %v1499 = vunpack.c.h.b16 %v377
        %v1500 = vunpack.c.l.b16 %v378
        %v1501 = vunpack.c.h.b16 %v378
        %v1502 = vunpack.c.l.b16 %v379
        %v1503 = vunpack.c.h.b16 %v379
        %v1504 = vunpack.c.l.b16 %v380
        %v1505 = vunpack.c.h.b16 %v380
        %v1506 = vunpack.c.l.b16 %v381
        %v1507 = vunpack.c.h.b16 %v381
        %v1508 = vunpack.c.l.b16 %v382
        %v1509 = vunpack.c.h.b16 %v382
        %v1510 = vunpack.c.l.b16 %v383
        %v1511 = vunpack.c.h.b16 %v383
        %v1512 = vunpack.c.l.b16 %v384
        %v1513 = vunpack.c.h.b16 %v384
        %v1514 = vunpack.c.l.b16 %v385
        %v1515 = vunpack.c.h.b16 %v385
        %v1516 = vunpack.c.l.b16 %v386
        %v1517 = vunpack.c.h.b16 %v386
        %v1518 = vunpack.c.l.b16 %v387
        %v1519 = vunpack.c.h.b16 %v387
        %v1520 = vunpack.c.l.b16 %v388
        %v1521 = vunpack.c.h.b16 %v388
        %v1522 = vunpack.c.l.b16 %v389
        %v1523 = vunpack.c.h.b16 %v389
        %v1524 = vunpack.c.l.b16 %v390
        %v1525 = vunpack.c.h.b16 %v390
        %v1526 = vunpack.c.l.b16 %v391
        %v1527 = vunpack.c.h.b16 %v391
        %v1528 = vunpack.c.l.b16 %v392
        %v1529 = vunpack.c.h.b16 %v392
        %v1530 = vunpack.c.l.b16 %v393
        %v1531 = vunpack.c.h.b16 %v393
        %v1532 = vunpack.c.l.b16 %v394
        %v1533 = vunpack.c.h.b16 %v394
        %v1534 = vunpack.c.l.b16 %v395
        %v1535 = vunpack.c.h.b16 %v395
        %v1536 = vunpack.c.l.b16 %v396
        %v1537 = vunpack.c.h.b16 %v396
        %v1538 = vunpack.c.l.b16 %v397
        %v1539 = vunpack.c.h.b16 %v397
        %v1540 = vunpack.c.l.b16 %v398
        %v1541 = vunpack.c.h.b16 %v398
        %v1542 = vunpack.c.l.b16 %v399
        %v1543 = vunpack.c.h.b16 %v399
        %v1544 = vunpack.c.l.b16 %v400
        %v1545 = vunpack.c.h.b16 %v400
        %v1546 = vunpack.c.l.b16 %v401
        %v1547 = vunpack.c.h.b16 %v401
        %v1548 = vunpack.c.l.b16 %v402
        %v1549 = vunpack.c.h.b16 %v402
        %v1550 = vunpack.c.l.b16 %v403
        %v1551 = vunpack.c.h.b16 %v403
        %v1552 = vunpack.c.l.b16 %v404
        %v1553 = vunpack.c.h.b16 %v404
        %v1554 = vunpack.c.l.b16 %v405
        %v1555 = vunpack.c.h.b16 %v405
        %v1556 = vunpack.c.l.b16 %v406
        %v1557 = vunpack.c.h.b16 %v406
        %v1558 = vunpack.c.l.b16 %v407
        %v1559 = vunpack.c.h.b16 %v407
        %v1560 = vunpack.c.l.b16 %v408
        %v1561 = vunpack.c.h.b16 %v408
        %v1562 = vunpack.c.l.b16 %v409
        %v1563 = vunpack.c.h.b16 %v409
        %v1564 = vunpack.c.l.b16 %v410
        %v1565 = vunpack.c.h.b16 %v410
        %v1566 = vunpack.c.l.b16 %v411
        %v1567 = vunpack.c.h.b16 %v411
        %v1568 = vunpack.c.l.b16 %v412
        %v1569 = vunpack.c.h.b16 %v412
        %v1570 = vunpack.c.l.b16 %v413
        %v1571 = vunpack.c.h.b16 %v413
        %v1572 = vunpack.c.l.b16 %v414
        %v1573 = vunpack.c.h.b16 %v414
        %v1574 = vunpack.c.l.b16 %v415
        %v1575 = vunpack.c.h.b16 %v415
        %v1576 = vunpack.c.l.b16 %v416
        %v1577 = vunpack.c.h.b16 %v416
        %v1578 = vunpack.c.l.b16 %v417
        %v1579 = vunpack.c.h.b16 %v417
        %v1580 = vunpack.c.l.b16 %v418
        %v1581 = vunpack.c.h.b16 %v418
        %v1582 = vunpack.c.l.b16 %v419
        %v1583 = vunpack.c.h.b16 %v419
        %v1584 = vunpack.c.l.b16 %v420
        %v1585 = vunpack.c.h.b16 %v420
        %v1586 = vunpack.c.l.b16 %v421
        %v1587 = vunpack.c.h.b16 %v421
        %v1588 = vunpack.c.l.b16 %v422
        %v1589 = vunpack.c.h.b16 %v422
        %v1590 = vunpack.c.l.b16 %v423
        %v1591 = vunpack.c.h.b16 %v423
        %v1592 = vunpack.c.l.b16 %v424
        %v1593 = vunpack.c.h.b16 %v424
        %v1594 = vunpack.c.l.b16 %v425
        %v1595 = vunpack.c.h.b16 %v425
        %v1596 = vunpack.c.l.b16 %v426
        %v1597 = vunpack.c.h.b16 %v426
        %v1598 = vunpack.c.l.b16 %v427
        %v1599 = vunpack.c.h.b16 %v427
        %v1600 = vunpack.c.l.b16 %v428
        %v1601 = vunpack.c.h.b16 %v428
        %v1602 = vunpack.c.l.b16 %v429
        %v1603 = vunpack.c.h.b16 %v429
        %v1604 = vunpack.c.l.b16 %v430
        %v1605 = vunpack.c.h.b16 %v430
        %v1606 = vunpack.c.l.b16 %v431
        %v1607 = vunpack.c.h.b16 %v431
        %v1608 = vunpack.c.l.b16 %v432
        %v1609 = vunpack.c.h.b16 %v432
        %v1610 = vunpack.c.l.b16 %v433
        %v1611 = vunpack.c.h.b16 %v433
        %v1612 = vunpack.c.l.b16 %v434
        %v1613 = vunpack.c.h.b16 %v434
        %v1614 = vunpack.c.l.b16 %v435
        %v1615 = vunpack.c.h.b16 %v435
        %v1616 = vunpack.c.l.b16 %v436
        %v1617 = vunpack.c.h.b16 %v436
        %v1618 = vunpack.c.l.b16 %v437
        %v1619 = vunpack.c.h.b16 %v437
        %v1620 = vunpack.c.l.b16 %v438
        %v1621 = vunpack.c.h.b16 %v438
        %v1622 = vunpack.c.l.b16 %v439
        %v1623 = vunpack.c.h.b16 %v439
        %v1624 = vunpack.c.l.b16 %v440
        %v1625 = vunpack.c.h.b16 %v440
        %v1626 = vunpack.c.l.b16 %v441
        %v1627 = vunpack.c.h.b16 %v441
        %v1628 = vunpack.c.l.b16 %v442
        %v1629 = vunpack.c.h.b16 %v442
        %v1630 = vunpack.c.l.b16 %v443
        %v1631 = vunpack.c.h.b16 %v443
        %v1632 = vunpack.c.l.b16 %v444
        %v1633 = vunpack.c.h.b16 %v444
        %v1634 = vunpack.c.l.b16 %v445
        %v1635 = vunpack.c.h.b16 %v445
        %v1636 = vunpack.c.l.b16 %v446
        %v1637 = vunpack.c.h.b16 %v446
        %v1638 = vunpack.c.l.b16 %v447
        %v1639 = vunpack.c.h.b16 %v447
        %v1640 = vunpack.c.l.b16 %v448
        %v1641 = vunpack.c.h.b16 %v448
        %v1642 = vunpack.c.l.b16 %v449
        %v1643 = vunpack.c.h.b16 %v449
        %v1644 = vunpack.c.l.b16 %v450
        %v1645 = vunpack.c.h.b16 %v450
        %v1646 = vunpack.c.l.b16 %v451
        %v1647 = vunpack.c.h.b16 %v451
        %v1648 = vunpack.c.l.b16 %v452
        %v1649 = vunpack.c.h.b16 %v452
        %v1650 = vunpack.c.l.b16 %v453
        %v1651 = vunpack.c.h.b16 %v453
        %v1652 = vunpack.c.l.b16 %v454
        %v1653 = vunpack.c.h.b16 %v454
        %v1654 = vunpack.c.l.b16 %v455
        %v1655 = vunpack.c.h.b16 %v455
        %v1656 = vunpack.c.l.b16 %v456
        %v1657 = vunpack.c.h.b16 %v456
        %v1658 = vunpack.c.l.b16 %v457
        %v1659 = vunpack.c.h.b16 %v457
        %v1660 = vunpack.c.l.b16 %v458
        %v1661 = vunpack.c.h.b16 %v458
        %v1662 = vunpack.c.l.b16 %v459
        %v1663 = vunpack.c.h.b16 %v459
        %v1664 = vunpack.c.l.b16 %v460
        %v1665 = vunpack.c.h.b16 %v460
        %v1666 = vunpack.c.l.b16 %v461
        %v1667 = vunpack.c.h.b16 %v461
        %v1668 = vunpack.c.l.b16 %v462
        %v1669 = vunpack.c.h.b16 %v462
        %v1670 = vunpack.c.l.b16 %v463
        %v1671 = vunpack.c.h.b16 %v463
        %v1672 = vunpack.c.l.b16 %v464
        %v1673 = vunpack.c.h.b16 %v464
        %v1674 = vunpack.c.l.b16 %v465
        %v1675 = vunpack.c.h.b16 %v465
        %v1676 = vunpack.c.l.b16 %v466
        %v1677 = vunpack.c.h.b16 %v466
        %v1678 = vunpack.c.l.b16 %v467
        %v1679 = vunpack.c.h.b16 %v467
        %v1680 = vunpack.c.l.b16 %v468
        %v1681 = vunpack.c.h.b16 %v468
        %v1682 = vunpack.c.l.b16 %v469
        %v1683 = vunpack.c.h.b16 %v469
        %v1684 = vunpack.c.l.b16 %v470
        %v1685 = vunpack.c.h.b16 %v470
        %v1686 = vunpack.c.l.b16 %v471
        %v1687 = vunpack.c.h.b16 %v471
        %v1688 = vunpack.c.l.b16 %v472
        %v1689 = vunpack.c.h.b16 %v472
        %v1690 = vunpack.c.l.b16 %v473
        %v1691 = vunpack.c.h.b16 %v473
        %v1692 = vunpack.c.l.b16 %v474
        %v1693 = vunpack.c.h.b16 %v474
        %v1694 = vunpack.c.l.b16 %v475
        %v1695 = vunpack.c.h.b16 %v475
        %v1696 = vunpack.c.l.b16 %v476
        %v1697 = vunpack.c.h.b16 %v476
        %v1698 = vunpack.c.l.b16 %v477
        %v1699 = vunpack.c.h.b16 %v477
        %v1700 = vunpack.c.l.b16 %v478
        %v1701 = vunpack.c.h.b16 %v478
        %v1702 = vunpack.c.l.b16 %v479
        %v1703 = vunpack.c.h.b16 %v479
        %v1704 = vunpack.c.l.b16 %v480
        %v1705 = vunpack.c.h.b16 %v480
        %v1706 = vunpack.c.l.b16 %v481
        %v1707 = vunpack.c.h.b16 %v481
        %v1708 = vunpack.c.l.b16 %v482
        %v1709 = vunpack.c.h.b16 %v482
        %v1710 = vunpack.c.l.b16 %v483
        %v1711 = vunpack.c.h.b16 %v483
        %v1712 = vunpack.c.l.b16 %v484
        %v1713 = vunpack.c.h.b16 %v484
        %v1714 = vunpack.c.l.b16 %v485
        %v1715 = vunpack.c.h.b16 %v485
        %v1716 = vunpack.c.l.b16 %v486
        %v1717 = vunpack.c.h.b16 %v486
        %v1718 = vunpack.c.l.b16 %v487
        %v1719 = vunpack.c.h.b16 %v487
        %v1720 = vunpack.c.l.b16 %v488
        %v1721 = vunpack.c.h.b16 %v488
        %v1722 = vunpack.c.l.b16 %v489
        %v1723 = vunpack.c.h.b16 %v489
        %v1724 = vunpack.c.l.b16 %v490
        %v1725 = vunpack.c.h.b16 %v490
        %v1726 = vunpack.c.l.b16 %v491
        %v1727 = vunpack.c.h.b16 %v491
        %v1728 = vunpack.c.l.b16 %v492
        %v1729 = vunpack.c.h.b16 %v492
        %v1730 = vunpack.c.l.b16 %v493
        %v1731 = vunpack.c.h.b16 %v493
        %v1732 = vunpack.c.l.b16 %v494
        %v1733 = vunpack.c.h.b16 %v494
        %v1734 = vunpack.c.l.b16 %v495
        %v1735 = vunpack.c.h.b16 %v495
        %v1736 = vunpack.c.l.b16 %v496
        %v1737 = vunpack.c.h.b16 %v496
        %v1738 = vunpack.c.l.b16 %v497
        %v1739 = vunpack.c.h.b16 %v497
        %v1740 = vunpack.c.l.b16 %v498
        %v1741 = vunpack.c.h.b16 %v498
        %v1742 = vunpack.c.l.b16 %v499
        %v1743 = vunpack.c.h.b16 %v499
        %v1744 = vunpack.c.l.b16 %v500
        %v1745 = vunpack.c.h.b16 %v500
        %v1746 = vunpack.c.l.b16 %v501
        %v1747 = vunpack.c.h.b16 %v501
        %v1748 = vunpack.c.l.b16 %v502
        %v1749 = vunpack.c.h.b16 %v502
        %v1750 = vunpack.c.l.b16 %v503
        %v1751 = vunpack.c.h.b16 %v503
        %v1752 = vunpack.c.l.b16 %v504
        %v1753 = vunpack.c.h.b16 %v504
        %v1754 = vunpack.c.l.b16 %v505
        %v1755 = vunpack.c.h.b16 %v505
        %v1756 = vunpack.c.l.b16 %v506
        %v1757 = vunpack.c.h.b16 %v506
        %v1758 = vunpack.c.l.b16 %v507
        %v1759 = vunpack.c.h.b16 %v507
        %v1760 = vunpack.c.l.b16 %v508
        %v1761 = vunpack.c.h.b16 %v508
        %v1762 = vunpack.c.l.b16 %v509
        %v1763 = vunpack.c.h.b16 %v509
        %v1764 = vunpack.c.l.b16 %v510
        %v1765 = vunpack.c.h.b16 %v510
        %v1766 = vunpack.c.l.b16 %v511
        %v1767 = vunpack.c.h.b16 %v511
        %v1768 = vunpack.c.l.b16 %v512
        %v1769 = vunpack.c.h.b16 %v512
        %v1770 = vunpack.c.l.b16 %v513
        %v1771 = vunpack.c.h.b16 %v513
        %v1772 = vunpack.c.l.b16 %v514
        %v1773 = vunpack.c.h.b16 %v514
        %v1774 = vunpack.c.l.b16 %v515
        %v1775 = vunpack.c.h.b16 %v515
        %v1776 = vunpack.c.l.b16 %v516
        %v1777 = vunpack.c.h.b16 %v516
        %v1778 = vunpack.c.l.b16 %v517
        %v1779 = vunpack.c.h.b16 %v517
        %v1780 = vunpack.c.l.b16 %v518
        %v1781 = vunpack.c.h.b16 %v518
        %v1782 = vunpack.c.l.b16 %v519
        %v1783 = vunpack.c.h.b16 %v519
        %v1784 = vunpack.c.l.b16 %v520
        %v1785 = vunpack.c.h.b16 %v520
        %v1786 = vunpack.c.l.b16 %v521
        %v1787 = vunpack.c.h.b16 %v521
        %v1788 = vunpack.c.l.b16 %v522
        %v1789 = vunpack.c.h.b16 %v522
        %v1790 = vunpack.c.l.b16 %v523
        %v1791 = vunpack.c.h.b16 %v523
        %v1792 = vunpack.c.l.b16 %v524
        %v1793 = vunpack.c.h.b16 %v524
        %v1794 = vunpack.c.l.b16 %v525
        %v1795 = vunpack.c.h.b16 %v525
        %v1796 = vunpack.c.l.b16 %v526
        %v1797 = vunpack.c.h.b16 %v526
        %v1798 = vunpack.c.l.b16 %v527
        %v1799 = vunpack.c.h.b16 %v527
        %v1800 = vunpack.c.l.b16 %v528
        %v1801 = vunpack.c.h.b16 %v528
        %v1802 = vunpack.c.l.b16 %v529
        %v1803 = vunpack.c.h.b16 %v529
        %v1804 = vunpack.c.l.b16 %v530
        %v1805 = vunpack.c.h.b16 %v530
        %v1806 = vunpack.c.l.b16 %v531
        %v1807 = vunpack.c.h.b16 %v531
        %v1808 = vunpack.c.l.b16 %v532
        %v1809 = vunpack.c.h.b16 %v532
        %v1810 = vunpack.c.l.b16 %v533
        %v1811 = vunpack.c.h.b16 %v533
        %v1812 = vunpack.c.l.b16 %v534
        %v1813 = vunpack.c.h.b16 %v534
        %v1814 = vunpack.c.l.b16 %v535
        %v1815 = vunpack.c.h.b16 %v535
        %v1816 = vunpack.c.l.b16 %v536
        %v1817 = vunpack.c.h.b16 %v536
        %v1818 = vunpack.c.l.b16 %v537
        %v1819 = vunpack.c.h.b16 %v537
        %v1820 = vunpack.c.l.b16 %v538
        %v1821 = vunpack.c.h.b16 %v538
        %v1822 = vunpack.c.l.b16 %v539
        %v1823 = vunpack.c.h.b16 %v539
        %v1824 = vunpack.c.l.b16 %v540
        %v1825 = vunpack.c.h.b16 %v540
        %v1826 = vunpack.c.l.b16 %v541
        %v1827 = vunpack.c.h.b16 %v541
        %v1828 = vunpack.c.l.b16 %v542
        %v1829 = vunpack.c.h.b16 %v542
        %v1830 = vunpack.c.l.b16 %v543
        %v1831 = vunpack.c.h.b16 %v543
        %v1832 = vunpack.c.l.b16 %v544
        %v1833 = vunpack.c.h.b16 %v544
        %v1834 = vunpack.c.l.b16 %v545
        %v1835 = vunpack.c.h.b16 %v545
        %v1836 = vunpack.c.l.b16 %v546
        %v1837 = vunpack.c.h.b16 %v546
        %v1838 = vunpack.c.l.b16 %v547
        %v1839 = vunpack.c.h.b16 %v547
        %v1840 = vunpack.c.l.b16 %v548
        %v1841 = vunpack.c.h.b16 %v548
        %v1842 = vunpack.c.l.b16 %v549
        %v1843 = vunpack.c.h.b16 %v549
        %v1844 = vunpack.c.l.b16 %v550
        %v1845 = vunpack.c.h.b16 %v550
        %v1846 = vunpack.c.l.b16 %v551
        %v1847 = vunpack.c.h.b16 %v551
        %v1848 = vunpack.c.l.b16 %v552
        %v1849 = vunpack.c.h.b16 %v552
        %v1850 = vunpack.c.l.b16 %v553
        %v1851 = vunpack.c.h.b16 %v553
        %v1852 = vunpack.c.l.b16 %v554
        %v1853 = vunpack.c.h.b16 %v554
        %v1854 = vunpack.c.l.b16 %v555
        %v1855 = vunpack.c.h.b16 %v555
        %v1856 = vunpack.c.l.b16 %v556
        %v1857 = vunpack.c.h.b16 %v556
        %v1858 = vunpack.c.l.b16 %v557
        %v1859 = vunpack.c.h.b16 %v557
        %v1860 = vunpack.c.l.b16 %v558
        %v1861 = vunpack.c.h.b16 %v558
        %v1862 = vunpack.c.l.b16 %v559
        %v1863 = vunpack.c.h.b16 %v559
        %v1864 = vunpack.c.l.b16 %v560
        %v1865 = vunpack.c.h.b16 %v560
        %v1866 = vunpack.c.l.b16 %v561
        %v1867 = vunpack.c.h.b16 %v561
        %v1868 = vunpack.c.l.b16 %v562
        %v1869 = vunpack.c.h.b16 %v562
        %v1870 = vunpack.c.l.b16 %v563
        %v1871 = vunpack.c.h.b16 %v563
        %v1872 = vunpack.c.l.b16 %v564
        %v1873 = vunpack.c.h.b16 %v564
        %v1874 = vunpack.c.l.b16 %v565
        %v1875 = vunpack.c.h.b16 %v565
        %v1876 = vunpack.c.l.b16 %v566
        %v1877 = vunpack.c.h.b16 %v566
        %v1878 = vunpack.c.l.b16 %v567
        %v1879 = vunpack.c.h.b16 %v567
        %v1880 = vunpack.c.l.b16 %v568
        %v1881 = vunpack.c.h.b16 %v568
        %v1882 = vunpack.c.l.b16 %v569
        %v1883 = vunpack.c.h.b16 %v569
        %v1884 = vunpack.c.l.b16 %v570
        %v1885 = vunpack.c.h.b16 %v570
        %v1886 = vunpack.c.l.b16 %v571
        %v1887 = vunpack.c.h.b16 %v571
        %v1888 = vunpack.c.l.b16 %v572
        %v1889 = vunpack.c.h.b16 %v572
        %v1890 = vunpack.c.l.b16 %v573
        %v1891 = vunpack.c.h.b16 %v573
        %v1892 = vunpack.c.l.b16 %v574
        %v1893 = vunpack.c.h.b16 %v574
        %v1894 = vunpack.c.l.b16 %v575
        %v1895 = vunpack.c.h.b16 %v575
        %v1896 = vunpack.c.l.b16 %v576
        %v1897 = vunpack.c.h.b16 %v576
        %v1898 = vunpack.c.l.b16 %v577
        %v1899 = vunpack.c.h.b16 %v577
        %v1900 = vunpack.c.l.b16 %v578
        %v1901 = vunpack.c.h.b16 %v578
        %v1902 = vunpack.c.l.b16 %v579
        %v1903 = vunpack.c.h.b16 %v579
        %v1904 = vunpack.c.l.b16 %v580
        %v1905 = vunpack.c.h.b16 %v580
        %v1906 = vunpack.c.l.b16 %v581
        %v1907 = vunpack.c.h.b16 %v581
        %v1908 = vunpack.c.l.b16 %v582
        %v1909 = vunpack.c.h.b16 %v582
        %v1910 = vunpack.c.l.b16 %v583
        %v1911 = vunpack.c.h.b16 %v583
        %v1912 = vunpack.c.l.b16 %v584
        %v1913 = vunpack.c.h.b16 %v584
        %v1914 = vunpack.c.l.b16 %v585
        %v1915 = vunpack.c.h.b16 %v585
        %v1916 = vunpack.c.l.b16 %v586
        %v1917 = vunpack.c.h.b16 %v586
        %v1918 = vunpack.c.l.b16 %v587
        %v1919 = vunpack.c.h.b16 %v587
        %v1920 = vunpack.c.l.b16 %v588
        %v1921 = vunpack.c.h.b16 %v588
        %v1922 = vunpack.c.l.b16 %v589
        %v1923 = vunpack.c.h.b16 %v589
        %v1924 = vunpack.c.l.b16 %v590
        %v1925 = vunpack.c.h.b16 %v590
        %v1926 = vunpack.c.l.b16 %v591
        %v1927 = vunpack.c.h.b16 %v591
        %v1928 = vunpack.c.l.b16 %v592
        %v1929 = vunpack.c.h.b16 %v592
        %v1930 = vunpack.c.l.b16 %v593
        %v1931 = vunpack.c.h.b16 %v593
        %v1932 = vunpack.c.l.b16 %v594
        %v1933 = vunpack.c.h.b16 %v594
        %v1934 = vunpack.c.l.b16 %v595
        %v1935 = vunpack.c.h.b16 %v595
        %v1936 = vunpack.c.l.b16 %v596
        %v1937 = vunpack.c.h.b16 %v596
        %v1938 = vunpack.c.l.b16 %v597
        %v1939 = vunpack.c.h.b16 %v597
        %v1940 = vunpack.c.l.b16 %v598
        %v1941 = vunpack.c.h.b16 %v598
        %v1942 = vunpack.c.l.b16 %v599
        %v1943 = vunpack.c.h.b16 %v599
        %v1944 = vunpack.c.l.b16 %v600
        %v1945 = vunpack.c.h.b16 %v600
        %v1946 = vunpack.c.l.b16 %v601
        %v1947 = vunpack.c.h.b16 %v601
        %v1948 = vunpack.c.l.b16 %v602
        %v1949 = vunpack.c.h.b16 %v602
        %v1950 = vunpack.c.l.b16 %v603
        %v1951 = vunpack.c.h.b16 %v603
        %v1952 = vunpack.c.l.b16 %v604
        %v1953 = vunpack.c.h.b16 %v604
        %v1954 = vunpack.c.l.b16 %v605
        %v1955 = vunpack.c.h.b16 %v605
        %v1956 = vunpack.c.l.b16 %v606
        %v1957 = vunpack.c.h.b16 %v606
        %v1958 = vunpack.c.l.b16 %v607
        %v1959 = vunpack.c.h.b16 %v607
        %v1960 = vunpack.c.l.b16 %v608
        %v1961 = vunpack.c.h.b16 %v608
        %v1962 = vunpack.c.l.b16 %v609
        %v1963 = vunpack.c.h.b16 %v609
        %v1964 = vunpack.c.l.b16 %v610
        %v1965 = vunpack.c.h.b16 %v610
        %v1966 = vunpack.c.l.b16 %v611
        %v1967 = vunpack.c.h.b16 %v611
        %v1968 = vunpack.c.l.b16 %v612
        %v1969 = vunpack.c.h.b16 %v612
        %v1970 = vunpack.c.l.b16 %v613
        %v1971 = vunpack.c.h.b16 %v613
        %v1972 = vunpack.c.l.b16 %v614
        %v1973 = vunpack.c.h.b16 %v614
        %v1974 = vunpack.c.l.b16 %v615
        %v1975 = vunpack.c.h.b16 %v615
        %v1976 = vunpack.c.l.b16 %v616
        %v1977 = vunpack.c.h.b16 %v616
        %v1978 = vunpack.c.l.b16 %v617
        %v1979 = vunpack.c.h.b16 %v617
        %v1980 = vunpack.c.l.b16 %v618
        %v1981 = vunpack.c.h.b16 %v618
        %v1982 = vunpack.c.l.b16 %v619
        %v1983 = vunpack.c.h.b16 %v619
        %v1984 = vunpack.c.l.b16 %v620
        %v1985 = vunpack.c.h.b16 %v620
        %v1986 = vunpack.c.l.b16 %v621
        %v1987 = vunpack.c.h.b16 %v621
        %v1988 = vunpack.c.l.b16 %v622
        %v1989 = vunpack.c.h.b16 %v622
        %v1990 = vunpack.c.l.b16 %v623
        %v1991 = vunpack.c.h.b16 %v623
        %v1992 = vunpack.c.l.b16 %v624
        %v1993 = vunpack.c.h.b16 %v624
        %v1994 = vunpack.c.l.b16 %v625
        %v1995 = vunpack.c.h.b16 %v625
        %v1996 = vunpack.c.l.b16 %v626
        %v1997 = vunpack.c.h.b16 %v626
        %v1998 = vunpack.c.l.b16 %v627
        %v1999 = vunpack.c.h.b16 %v627
        %v2000 = vunpack.c.l.b16 %v628
        %v2001 = vunpack.c.h.b16 %v628
        %v2002 = vunpack.c.l.b16 %v629
        %v2003 = vunpack.c.h.b16 %v629
        %v2004 = vunpack.c.l.b16 %v630
        %v2005 = vunpack.c.h.b16 %v630
        %v2006 = vunpack.c.l.b16 %v631
        %v2007 = vunpack.c.h.b16 %v631
        %v2008 = vunpack.c.l.b16 %v632
        %v2009 = vunpack.c.h.b16 %v632
        %v2010 = vunpack.c.l.b16 %v633
        %v2011 = vunpack.c.h.b16 %v633
        %v2012 = vunpack.c.l.b16 %v634
        %v2013 = vunpack.c.h.b16 %v634
        %v2014 = vunpack.c.l.b16 %v635
        %v2015 = vunpack.c.h.b16 %v635
        %v2016 = vunpack.c.l.b16 %v636
        %v2017 = vunpack.c.h.b16 %v636
        %v2018 = vunpack.c.l.b16 %v637
        %v2019 = vunpack.c.h.b16 %v637
        %v2020 = vunpack.c.l.b16 %v638
        %v2021 = vunpack.c.h.b16 %v638
        %v2022 = vunpack.c.l.b16 %v639
        %v2023 = vunpack.c.h.b16 %v639
        %v2024 = vunpack.c.l.b16 %v640
        %v2025 = vunpack.c.h.b16 %v640
        %v2026 = vunpack.c.l.b16 %v641
        %v2027 = vunpack.c.h.b16 %v641
        %v2028 = vunpack.c.l.b16 %v642
        %v2029 = vunpack.c.h.b16 %v642
        %v2030 = vunpack.c.l.b16 %v643
        %v2031 = vunpack.c.h.b16 %v643
        %v2032 = vunpack.c.l.b16 %v644
        %v2033 = vunpack.c.h.b16 %v644
        %v2034 = vunpack.c.l.b16 %v645
        %v2035 = vunpack.c.h.b16 %v645
        %v2036 = vunpack.c.l.b16 %v646
        %v2037 = vunpack.c.h.b16 %v646
        %v2038 = vunpack.c.l.b16 %v647
        %v2039 = vunpack.c.h.b16 %v647
        %v2040 = vunpack.c.l.b16 %v648
        %v2041 = vunpack.c.h.b16 %v648
        %v2042 = vunpack.c.l.b16 %v649
        %v2043 = vunpack.c.h.b16 %v649
        %v2044 = vunpack.c.l.b16 %v650
        %v2045 = vunpack.c.h.b16 %v650
        %v2046 = vunpack.c.l.b16 %v651
        %v2047 = vunpack.c.h.b16 %v651
        %v2048 = vunpack.c.l.b16 %v652
        %v2049 = vunpack.c.h.b16 %v652
        %v2050 = vunpack.c.l.b16 %v653
        %v2051 = vunpack.c.h.b16 %v653
        %v2052 = vunpack.c.l.b16 %v654
        %v2053 = vunpack.c.h.b16 %v654
        %v2054 = vunpack.c.l.b16 %v655
        %v2055 = vunpack.c.h.b16 %v655
        %v2056 = vunpack.c.l.b16 %v656
        %v2057 = vunpack.c.h.b16 %v656
        %v2058 = vunpack.c.l.b16 %v657
        %v2059 = vunpack.c.h.b16 %v657
        %v2060 = vunpack.c.l.b16 %v658
        %v2061 = vunpack.c.h.b16 %v658
        %v2062 = vunpack.c.l.b16 %v659
        %v2063 = vunpack.c.h.b16 %v659
        %v2064 = vunpack.c.l.b16 %v660
        %v2065 = vunpack.c.h.b16 %v660
        %v2066 = vunpack.c.l.b16 %v661
        %v2067 = vunpack.c.h.b16 %v661
        %v2068 = vunpack.c.l.b16 %v662
        %v2069 = vunpack.c.h.b16 %v662
        %v2070 = vunpack.c.l.b16 %v663
        %v2071 = vunpack.c.h.b16 %v663
        %v2072 = vunpack.c.l.b16 %v664
        %v2073 = vunpack.c.h.b16 %v664
        %v2074 = vunpack.c.l.b16 %v665
        %v2075 = vunpack.c.h.b16 %v665
        %v2076 = vunpack.c.l.b16 %v666
        %v2077 = vunpack.c.h.b16 %v666
        %v2078 = vunpack.c.l.b16 %v667
        %v2079 = vunpack.c.h.b16 %v667
        %v2080 = vunpack.c.l.b16 %v668
        %v2081 = vunpack.c.h.b16 %v668
        %v2082 = vunpack.c.l.b16 %v669
        %v2083 = vunpack.c.h.b16 %v669
        %v2084 = vunpack.c.l.b16 %v670
        %v2085 = vunpack.c.h.b16 %v670
        %v2086 = vunpack.c.l.b16 %v671
        %v2087 = vunpack.c.h.b16 %v671
        %v2088 = vunpack.c.l.b16 %v672
        %v2089 = vunpack.c.h.b16 %v672
        %v2090 = vunpack.c.l.b16 %v673
        %v2091 = vunpack.c.h.b16 %v673
        %v2092 = vunpack.c.l.b16 %v674
        %v2093 = vunpack.c.h.b16 %v674
        %v2094 = vunpack.c.l.b16 %v675
        %v2095 = vunpack.c.h.b16 %v675
        %v2096 = vunpack.c.l.b16 %v676
        %v2097 = vunpack.c.h.b16 %v676
        %v2098 = vunpack.c.l.b16 %v677
        %v2099 = vunpack.c.h.b16 %v677
        %v2100 = vunpack.c.l.b16 %v678
        %v2101 = vunpack.c.h.b16 %v678
        %v2102 = vunpack.c.l.b16 %v679
        %v2103 = vunpack.c.h.b16 %v679
        %v2104 = vunpack.c.l.b16 %v680
        %v2105 = vunpack.c.h.b16 %v680
        %v2106 = vunpack.c.l.b16 %v681
        %v2107 = vunpack.c.h.b16 %v681
        %v2108 = vunpack.c.l.b16 %v682
        %v2109 = vunpack.c.h.b16 %v682
        %v2110 = vunpack.c.l.b16 %v683
        %v2111 = vunpack.c.h.b16 %v683
        %v2112 = vunpack.c.l.b16 %v684
        %v2113 = vunpack.c.h.b16 %v684
        %v2114 = vunpack.c.l.b16 %v685
        %v2115 = vunpack.c.h.b16 %v685
        %v2116 = vunpack.c.l.b16 %v686
        %v2117 = vunpack.c.h.b16 %v686
        %v2118 = vunpack.c.l.b16 %v687
        %v2119 = vunpack.c.h.b16 %v687
        %v2120 = vunpack.c.l.b16 %v688
        %v2121 = vunpack.c.h.b16 %v688
        %v2122 = vunpack.c.l.b16 %v689
        %v2123 = vunpack.c.h.b16 %v689
        %v2124 = vunpack.c.l.b16 %v690
        %v2125 = vunpack.c.h.b16 %v690
        %v2126 = vunpack.c.l.b16 %v691
        %v2127 = vunpack.c.h.b16 %v691
        %v2128 = vunpack.c.l.b16 %v692
        %v2129 = vunpack.c.h.b16 %v692
        %v2130 = vunpack.c.l.b16 %v693
        %v2131 = vunpack.c.h.b16 %v693
        %v2132 = vunpack.c.l.b16 %v694
        %v2133 = vunpack.c.h.b16 %v694
        %v2134 = vunpack.c.l.b16 %v695
        %v2135 = vunpack.c.h.b16 %v695
        %v2136 = vunpack.c.l.b16 %v696
        %v2137 = vunpack.c.h.b16 %v696
        %v2138 = vunpack.c.l.b16 %v697
        %v2139 = vunpack.c.h.b16 %v697
        %v2140 = vunpack.c.l.b16 %v698
        %v2141 = vunpack.c.h.b16 %v698
        %v2142 = vunpack.c.l.b16 %v699
        %v2143 = vunpack.c.h.b16 %v699
        %v2144 = vunpack.c.l.b16 %v700
        %v2145 = vunpack.c.h.b16 %v700
        %v2146 = vunpack.c.l.b16 %v701
        %v2147 = vunpack.c.h.b16 %v701
        %v2148 = vunpack.c.l.b16 %v702
        %v2149 = vunpack.c.h.b16 %v702
        %v2150 = vunpack.c.l.b16 %v703
        %v2151 = vunpack.c.h.b16 %v703
        %v2152 = vunpack.c.l.b16 %v704
        %v2153 = vunpack.c.h.b16 %v704
        %v2154 = vunpack.c.l.b16 %v705
        %v2155 = vunpack.c.h.b16 %v705
        %v2156 = vunpack.c.l.b16 %v706
        %v2157 = vunpack.c.h.b16 %v706
        %v2158 = vunpack.c.l.b16 %v707
        %v2159 = vunpack.c.h.b16 %v707
        %v2160 = vunpack.c.l.b16 %v708
        %v2161 = vunpack.c.h.b16 %v708
        %v2162 = vunpack.c.l.b16 %v709
        %v2163 = vunpack.c.h.b16 %v709
        %v2164 = vunpack.c.l.b16 %v710
        %v2165 = vunpack.c.h.b16 %v710
        %v2166 = vunpack.c.l.b16 %v711
        %v2167 = vunpack.c.h.b16 %v711
        %v2168 = vunpack.c.l.b16 %v712
        %v2169 = vunpack.c.h.b16 %v712
        %v2170 = vunpack.c.l.b16 %v713
        %v2171 = vunpack.c.h.b16 %v713
        %v2172 = vunpack.c.l.b16 %v714
        %v2173 = vunpack.c.h.b16 %v714
        %v2174 = vunpack.c.l.b16 %v715
        %v2175 = vunpack.c.h.b16 %v715
        %v2176 = vunpack.c.l.b16 %v716
        %v2177 = vunpack.c.h.b16 %v716
        %v2178 = vunpack.c.l.b16 %v717
        %v2179 = vunpack.c.h.b16 %v717
        %v2180 = vunpack.c.l.b16 %v718
        %v2181 = vunpack.c.h.b16 %v718
        %v2182 = vunpack.c.l.b16 %v719
        %v2183 = vunpack.c.h.b16 %v719
        %v2184 = vunpack.c.l.b16 %v720
        %v2185 = vunpack.c.h.b16 %v720
        %v2186 = vunpack.c.l.b16 %v721
        %v2187 = vunpack.c.h.b16 %v721
        %v2188 = vunpack.c.l.b16 %v722
        %v2189 = vunpack.c.h.b16 %v722
        %v2190 = vunpack.c.l.b16 %v723
        %v2191 = vunpack.c.h.b16 %v723
        %v2192 = vunpack.c.l.b16 %v724
        %v2193 = vunpack.c.h.b16 %v724
        %v2194 = vunpack.c.l.b16 %v725
        %v2195 = vunpack.c.h.b16 %v725
        %v2196 = vunpack.c.l.b16 %v726
        %v2197 = vunpack.c.h.b16 %v726
        %v2198 = vunpack.c.l.b16 %v727
        %v2199 = vunpack.c.h.b16 %v727
        %v2200 = vunpack.c.l.b16 %v728
        %v2201 = vunpack.c.h.b16 %v728
        %v2202 = vunpack.c.l.b16 %v729
        %v2203 = vunpack.c.h.b16 %v729
        %v2204 = vunpack.c.l.b16 %v730
        %v2205 = vunpack.c.h.b16 %v730
        %v2206 = vunpack.c.l.b16 %v731
        %v2207 = vunpack.c.h.b16 %v731
        %v2208 = vunpack.c.l.b16 %v732
        %v2209 = vunpack.c.h.b16 %v732
        %v2210 = vunpack.c.l.b16 %v733
        %v2211 = vunpack.c.h.b16 %v733
        %v2212 = vunpack.c.l.b16 %v734
        %v2213 = vunpack.c.h.b16 %v734
        %v2214 = vunpack.c.l.b16 %v735
        %v2215 = vunpack.c.h.b16 %v735
        %v2216 = vunpack.c.l.b16 %v736
        %v2217 = vunpack.c.h.b16 %v736
        %v2218 = vunpack.c.l.b16 %v737
        %v2219 = vunpack.c.h.b16 %v737
        %v2220 = vunpack.c.l.b16 %v738
        %v2221 = vunpack.c.h.b16 %v738
        %v2222 = vunpack.c.l.b16 %v739
        %v2223 = vunpack.c.h.b16 %v739
        %v2224 = vunpack.c.l.b16 %v740
        %v2225 = vunpack.c.h.b16 %v740
        %v2226 = vunpack.c.l.b16 %v741
        %v2227 = vunpack.c.h.b16 %v741
        %v2228 = vunpack.c.l.b16 %v742
        %v2229 = vunpack.c.h.b16 %v742
        %v2230 = vunpack.c.l.b16 %v743
        %v2231 = vunpack.c.h.b16 %v743
        %v2232 = vunpack.c.l.b16 %v744
        %v2233 = vunpack.c.h.b16 %v744
        %v2234 = vunpack.c.l.b16 %v745
        %v2235 = vunpack.c.h.b16 %v745
        %v2236 = vunpack.c.l.b16 %v746
        %v2237 = vunpack.c.h.b16 %v746
        %v2238 = vunpack.c.l.b16 %v747
        %v2239 = vunpack.c.h.b16 %v747
        %v2240 = vunpack.c.l.b16 %v748
        %v2241 = vunpack.c.h.b16 %v748
        %v2242 = vunpack.c.l.b16 %v749
        %v2243 = vunpack.c.h.b16 %v749
        %v2244 = vunpack.c.l.b16 %v750
        %v2245 = vunpack.c.h.b16 %v750
        %v2246 = vunpack.c.l.b16 %v751
        %v2247 = vunpack.c.h.b16 %v751
        %v2248 = vunpack.c.l.b16 %v752
        %v2249 = vunpack.c.h.b16 %v752
        %v2250 = vunpack.c.l.b16 %v753
        %v2251 = vunpack.c.h.b16 %v753
        %v2252 = vunpack.c.l.b16 %v754
        %v2253 = vunpack.c.h.b16 %v754
        %v2254 = vunpack.c.l.b16 %v755
        %v2255 = vunpack.c.h.b16 %v755
        %v2256 = vunpack.c.l.b16 %v756
        %v2257 = vunpack.c.h.b16 %v756
        %v2258 = vunpack.c.l.b16 %v757
        %v2259 = vunpack.c.h.b16 %v757
        %v2260 = vunpack.c.l.b16 %v758
        %v2261 = vunpack.c.h.b16 %v758
        %v2262 = vunpack.c.l.b16 %v759
        %v2263 = vunpack.c.h.b16 %v759
        %v2264 = vunpack.c.l.b16 %v760
        %v2265 = vunpack.c.h.b16 %v760
        %v2266 = vunpack.c.l.b16 %v761
        %v2267 = vunpack.c.h.b16 %v761
        %v2268 = vunpack.c.l.b16 %v762
        %v2269 = vunpack.c.h.b16 %v762
        %v2270 = vunpack.c.l.b16 %v763
        %v2271 = vunpack.c.h.b16 %v763
        %v2272 = vunpack.c.l.b16 %v764
        %v2273 = vunpack.c.h.b16 %v764
        %v2274 = vunpack.c.l.b16 %v765
        %v2275 = vunpack.c.h.b16 %v765
        %v2276 = vunpack.c.l.b16 %v766
        %v2277 = vunpack.c.h.b16 %v766
        %v2278 = vunpack.c.l.b16 %v767
        %v2279 = vunpack.c.h.b16 %v767
        %v2280 = vunpack.c.l.b16 %v768
        %v2281 = vunpack.c.h.b16 %v768
        %v2282 = vunpack.c.l.b16 %v769
        %v2283 = vunpack.c.h.b16 %v769
        %v2284 = vunpack.c.l.b16 %v770
        %v2285 = vunpack.c.h.b16 %v770
        %v2286 = vunpack.c.l.b16 %v771
        %v2287 = vunpack.c.h.b16 %v771
        %v2288 = vunpack.c.l.b16 %v772
        %v2289 = vunpack.c.h.b16 %v772
        %v2290 = vunpack.c.l.b16 %v773
        %v2291 = vunpack.c.h.b16 %v773
        %v2292 = vunpack.c.l.b16 %v774
        %v2293 = vunpack.c.h.b16 %v774
        %v2294 = vunpack.c.l.b16 %v775
        %v2295 = vunpack.c.h.b16 %v775
        %v2296 = vunpack.c.l.b16 %v776
        %v2297 = vunpack.c.h.b16 %v776
        %v2298 = vunpack.c.l.b16 %v777
        %v2299 = vunpack.c.h.b16 %v777
        %v2300 = vunpack.c.l.b16 %v778
        %v2301 = vunpack.c.h.b16 %v778
        %v2302 = vunpack.c.l.b16 %v779
        %v2303 = vunpack.c.h.b16 %v779
        %v2304 = vunpack.c.l.b16 %v780
        %v2305 = vunpack.c.h.b16 %v780
        %v2306 = vunpack.c.l.b16 %v781
        %v2307 = vunpack.c.h.b16 %v781
        %v2308 = vunpack.c.l.b16 %v782
        %v2309 = vunpack.c.h.b16 %v782
        %v2310 = vunpack.c.l.b16 %v783
        %v2311 = vunpack.c.h.b16 %v783
        %v2312 = vunpack.c.l.b16 %v784
        %v2313 = vunpack.c.h.b16 %v784
        %v2314 = vunpack.c.l.b16 %v785
        %v2315 = vunpack.c.h.b16 %v785
        %v2316 = vunpack.c.l.b16 %v786
        %v2317 = vunpack.c.h.b16 %v786
        %v2318 = vunpack.c.l.b16 %v787
        %v2319 = vunpack.c.h.b16 %v787
        %v2320 = vunpack.c.l.b16 %v788
        %v2321 = vunpack.c.h.b16 %v788
        %v2322 = vunpack.c.l.b16 %v789
        %v2323 = vunpack.c.h.b16 %v789
        %v2324 = vunpack.c.l.b16 %v790
        %v2325 = vunpack.c.h.b16 %v790
        %v2326 = vunpack.c.l.b16 %v791
        %v2327 = vunpack.c.h.b16 %v791
        %v2328 = vunpack.c.l.b16 %v792
        %v2329 = vunpack.c.h.b16 %v792
        %v2330 = vunpack.c.l.b16 %v793
        %v2331 = vunpack.c.h.b16 %v793
        %v2332 = vunpack.c.l.b16 %v794
        %v2333 = vunpack.c.h.b16 %v794
        %v2334 = vunpack.c.l.b16 %v795
        %v2335 = vunpack.c.h.b16 %v795
        %v2336 = vunpack.c.l.b16 %v796
        %v2337 = vunpack.c.h.b16 %v796
        %v2338 = vunpack.c.l.b16 %v797
        %v2339 = vunpack.c.h.b16 %v797
        %v2340 = vunpack.c.l.b16 %v798
        %v2341 = vunpack.c.h.b16 %v798
        %v2342 = vunpack.c.l.b16 %v799
        %v2343 = vunpack.c.h.b16 %v799
        %v2344 = vunpack.c.l.b16 %v800
        %v2345 = vunpack.c.h.b16 %v800
        %v2346 = vunpack.c.l.b16 %v801
        %v2347 = vunpack.c.h.b16 %v801
        %v2348 = vunpack.c.l.b16 %v802
        %v2349 = vunpack.c.h.b16 %v802
        %v2350 = vunpack.c.l.b16 %v803
        %v2351 = vunpack.c.h.b16 %v803
        %v2352 = vunpack.c.l.b16 %v804
        %v2353 = vunpack.c.h.b16 %v804
        %v2354 = vunpack.c.l.b16 %v805
        %v2355 = vunpack.c.h.b16 %v805
        %v2356 = vunpack.c.l.b16 %v806
        %v2357 = vunpack.c.h.b16 %v806
        %v2358 = vunpack.c.l.b16 %v807
        %v2359 = vunpack.c.h.b16 %v807
        %v2360 = vunpack.c.l.b16 %v808
        %v2361 = vunpack.c.h.b16 %v808
        %v2362 = vunpack.c.l.b16 %v809
        %v2363 = vunpack.c.h.b16 %v809
        %v2364 = vunpack.c.l.b16 %v810
        %v2365 = vunpack.c.h.b16 %v810
        %v2366 = vunpack.c.l.b16 %v811
        %v2367 = vunpack.c.h.b16 %v811
        %v2368 = vunpack.c.l.b16 %v812
        %v2369 = vunpack.c.h.b16 %v812
        %v2370 = vunpack.c.l.b16 %v813
        %v2371 = vunpack.c.h.b16 %v813
        %v2372 = vunpack.c.l.b16 %v814
        %v2373 = vunpack.c.h.b16 %v814
        %v2374 = vunpack.c.l.b16 %v815
        %v2375 = vunpack.c.h.b16 %v815
        %v2376 = vunpack.c.l.b16 %v816
        %v2377 = vunpack.c.h.b16 %v816
        %v2378 = vunpack.c.l.b16 %v817
        %v2379 = vunpack.c.h.b16 %v817
        %v2380 = vunpack.c.l.b16 %v818
        %v2381 = vunpack.c.h.b16 %v818
        %v2382 = vunpack.c.l.b16 %v819
        %v2383 = vunpack.c.h.b16 %v819
        %v2384 = vunpack.c.l.b16 %v820
        %v2385 = vunpack.c.h.b16 %v820
        %v2386 = vunpack.c.l.b16 %v821
        %v2387 = vunpack.c.h.b16 %v821
        %v2388 = vunpack.c.l.b16 %v822
        %v2389 = vunpack.c.h.b16 %v822
        %v2390 = vunpack.c.l.b16 %v823
        %v2391 = vunpack.c.h.b16 %v823
        %v2392 = vunpack.c.l.b16 %v824
        %v2393 = vunpack.c.h.b16 %v824
        %v2394 = vunpack.c.l.b16 %v825
        %v2395 = vunpack.c.h.b16 %v825
        %v2396 = vunpack.c.l.b16 %v826
        %v2397 = vunpack.c.h.b16 %v826
        %v2398 = vunpack.c.l.b16 %v827
        %v2399 = vunpack.c.h.b16 %v827
        %v2400 = vunpack.c.l.b16 %v828
        %v2401 = vunpack.c.h.b16 %v828
        %v2402 = vunpack.c.l.b16 %v829
        %v2403 = vunpack.c.h.b16 %v829
        %v2404 = vunpack.c.l.b16 %v830
        %v2405 = vunpack.c.h.b16 %v830
        %v2406 = vunpack.c.l.b16 %v831
        %v2407 = vunpack.c.h.b16 %v831
        %v2408 = vunpack.c.l.b16 %v832
        %v2409 = vunpack.c.h.b16 %v832
        %v2410 = vunpack.c.l.b16 %v833
        %v2411 = vunpack.c.h.b16 %v833
        %v2412 = vunpack.c.l.b16 %v834
        %v2413 = vunpack.c.h.b16 %v834
        %v2414 = vunpack.c.l.b16 %v835
        %v2415 = vunpack.c.h.b16 %v835
        %v2416 = vunpack.c.l.b16 %v836
        %v2417 = vunpack.c.h.b16 %v836
        %v2418 = vunpack.c.l.b16 %v837
        %v2419 = vunpack.c.h.b16 %v837
        %v2420 = vunpack.c.l.b16 %v838
        %v2421 = vunpack.c.h.b16 %v838
        %v2422 = vunpack.c.l.b16 %v839
        %v2423 = vunpack.c.h.b16 %v839
        %v2424 = vunpack.c.l.b16 %v840
        %v2425 = vunpack.c.h.b16 %v840
        %v2426 = vunpack.c.l.b16 %v841
        %v2427 = vunpack.c.h.b16 %v841
        %v2428 = vunpack.c.l.b16 %v842
        %v2429 = vunpack.c.h.b16 %v842
        %v2430 = vpack.c.b16 %v1422, %v1406
        %v2431 = vpack.c.b16 %v1423, %v1407
        %v2432 = vpack.c.b16 %v1424, %v1408
        %v2433 = vpack.c.b16 %v1425, %v1409
        %v2434 = vpack.c.b16 %v1426, %v1410
        %v2435 = vpack.c.b16 %v1427, %v1411
        %v2436 = vpack.c.b16 %v1428, %v1412
        %v2437 = vpack.c.b16 %v1429, %v1413
        %v2438 = vpack.c.b16 %v1430, %v1414
        %v2439 = vpack.c.b16 %v1431, %v1415
        %v2440 = vpack.c.b16 %v1432, %v1416
        %v2441 = vpack.c.b16 %v1433, %v1417
        %v2442 = vpack.c.b16 %v1434, %v1418
        %v2443 = vpack.c.b16 %v1435, %v1419
        %v2444 = vpack.c.b16 %v1436, %v1420
        %v2445 = vpack.c.b16 %v1437, %v1421
        %v2446 = vpack.c.b16 %v1454, %v1438
        %v2447 = vpack.c.b16 %v1455, %v1439
        %v2448 = vpack.c.b16 %v1456, %v1440
        %v2449 = vpack.c.b16 %v1457, %v1441
        %v2450 = vpack.c.b16 %v1458, %v1442
        %v2451 = vpack.c.b16 %v1459, %v1443
        %v2452 = vpack.c.b16 %v1460, %v1444
        %v2453 = vpack.c.b16 %v1461, %v1445
        %v2454 = vpack.c.b16 %v1462, %v1446
        %v2455 = vpack.c.b16 %v1463, %v1447
        %v2456 = vpack.c.b16 %v1464, %v1448
        %v2457 = vpack.c.b16 %v1465, %v1449
        %v2458 = vpack.c.b16 %v1466, %v1450
        %v2459 = vpack.c.b16 %v1467, %v1451
        %v2460 = vpack.c.b16 %v1468, %v1452
        %v2461 = vpack.c.b16 %v1469, %v1453
        %v2462 = vpack.c.b16 %v1486, %v1470
        %v2463 = vpack.c.b16 %v1487, %v1471
        %v2464 = vpack.c.b16 %v1488, %v1472
        %v2465 = vpack.c.b16 %v1489, %v1473
        %v2466 = vpack.c.b16 %v1490, %v1474
        %v2467 = vpack.c.b16 %v1491, %v1475
        %v2468 = vpack.c.b16 %v1492, %v1476
        %v2469 = vpack.c.b16 %v1493, %v1477
        %v2470 = vpack.c.b16 %v1494, %v1478
        %v2471 = vpack.c.b16 %v1495, %v1479
        %v2472 = vpack.c.b16 %v1496, %v1480
        %v2473 = vpack.c.b16 %v1497, %v1481
        %v2474 = vpack.c.b16 %v1498, %v1482
        %v2475 = vpack.c.b16 %v1499, %v1483
        %v2476 = vpack.c.b16 %v1500, %v1484
        %v2477 = vpack.c.b16 %v1501, %v1485
        %v2478 = vpack.c.b16 %v1518, %v1502
        %v2479 = vpack.c.b16 %v1519, %v1503
        %v2480 = vpack.c.b16 %v1520, %v1504
        %v2481 = vpack.c.b16 %v1521, %v1505
        %v2482 = vpack.c.b16 %v1522, %v1506
        %v2483 = vpack.c.b16 %v1523, %v1507
        %v2484 = vpack.c.b16 %v1524, %v1508
        %v2485 = vpack.c.b16 %v1525, %v1509
        %v2486 = vpack.c.b16 %v1526, %v1510
        %v2487 = vpack.c.b16 %v1527, %v1511
        %v2488 = vpack.c.b16 %v1528, %v1512
        %v2489 = vpack.c.b16 %v1529, %v1513
        %v2490 = vpack.c.b16 %v1530, %v1514
        %v2491 = vpack.c.b16 %v1531, %v1515
        %v2492 = vpack.c.b16 %v1532, %v1516
        %v2493 = vpack.c.b16 %v1533, %v1517
        %v2494 = vpack.c.b16 %v1550, %v1534
        %v2495 = vpack.c.b16 %v1551, %v1535
        %v2496 = vpack.c.b16 %v1552, %v1536
        %v2497 = vpack.c.b16 %v1553, %v1537
        %v2498 = vpack.c.b16 %v1554, %v1538
        %v2499 = vpack.c.b16 %v1555, %v1539
        %v2500 = vpack.c.b16 %v1556, %v1540
        %v2501 = vpack.c.b16 %v1557, %v1541
        %v2502 = vpack.c.b16 %v1558, %v1542
        %v2503 = vpack.c.b16 %v1559, %v1543
        %v2504 = vpack.c.b16 %v1560, %v1544
        %v2505 = vpack.c.b16 %v1561, %v1545
        %v2506 = vpack.c.b16 %v1562, %v1546
        %v2507 = vpack.c.b16 %v1563, %v1547
        %v2508 = vpack.c.b16 %v1564, %v1548
        %v2509 = vpack.c.b16 %v1565, %v1549
        %v2510 = vpack.c.b16 %v1582, %v1566
        %v2511 = vpack.c.b16 %v1583, %v1567
        %v2512 = vpack.c.b16 %v1584, %v1568
        %v2513 = vpack.c.b16 %v1585, %v1569
        %v2514 = vpack.c.b16 %v1586, %v1570
        %v2515 = vpack.c.b16 %v1587, %v1571
        %v2516 = vpack.c.b16 %v1588, %v1572
        %v2517 = vpack.c.b16 %v1589, %v1573
        %v2518 = vpack.c.b16 %v1590, %v1574
        %v2519 = vpack.c.b16 %v1591, %v1575
        %v2520 = vpack.c.b16 %v1592, %v1576
        %v2521 = vpack.c.b16 %v1593, %v1577
        %v2522 = vpack.c.b16 %v1594, %v1578
        %v2523 = vpack.c.b16 %v1595, %v1579
        %v2524 = vpack.c.b16 %v1596, %v1580
        %v2525 = vpack.c.b16 %v1597, %v1581
        %v2526 = vpack.c.b16 %v1614, %v1598
        %v2527 = vpack.c.b16 %v1615, %v1599
        %v2528 = vpack.c.b16 %v1616, %v1600
        %v2529 = vpack.c.b16 %v1617, %v1601
        %v2530 = vpack.c.b16 %v1618, %v1602
        %v2531 = vpack.c.b16 %v1619, %v1603
        %v2532 = vpack.c.b16 %v1620, %v1604
        %v2533 = vpack.c.b16 %v1621, %v1605
        %v2534 = vpack.c.b16 %v1622, %v1606
        %v2535 = vpack.c.b16 %v1623, %v1607
        %v2536 = vpack.c.b16 %v1624, %v1608
        %v2537 = vpack.c.b16 %v1625, %v1609
        %v2538 = vpack.c.b16 %v1626, %v1610
        %v2539 = vpack.c.b16 %v1627, %v1611
        %v2540 = vpack.c.b16 %v1628, %v1612
        %v2541 = vpack.c.b16 %v1629, %v1613
        %v2542 = vpack.c.b16 %v1646, %v1630
        %v2543 = vpack.c.b16 %v1647, %v1631
        %v2544 = vpack.c.b16 %v1648, %v1632
        %v2545 = vpack.c.b16 %v1649, %v1633
        %v2546 = vpack.c.b16 %v1650, %v1634
        %v2547 = vpack.c.b16 %v1651, %v1635
        %v2548 = vpack.c.b16 %v1652, %v1636
        %v2549 = vpack.c.b16 %v1653, %v1637
        %v2550 = vpack.c.b16 %v1654, %v1638
        %v2551 = vpack.c.b16 %v1655, %v1639
        %v2552 = vpack.c.b16 %v1656, %v1640
        %v2553 = vpack.c.b16 %v1657, %v1641
        %v2554 = vpack.c.b16 %v1658, %v1642
        %v2555 = vpack.c.b16 %v1659, %v1643
        %v2556 = vpack.c.b16 %v1660, %v1644
        %v2557 = vpack.c.b16 %v1661, %v1645
        %v2558 = vpack.c.b16 %v1678, %v1662
        %v2559 = vpack.c.b16 %v1679, %v1663
        %v2560 = vpack.c.b16 %v1680, %v1664
        %v2561 = vpack.c.b16 %v1681, %v1665
        %v2562 = vpack.c.b16 %v1682, %v1666
        %v2563 = vpack.c.b16 %v1683, %v1667
        %v2564 = vpack.c.b16 %v1684, %v1668
        %v2565 = vpack.c.b16 %v1685, %v1669
        %v2566 = vpack.c.b16 %v1686, %v1670
        %v2567 = vpack.c.b16 %v1687, %v1671
        %v2568 = vpack.c.b16 %v1688, %v1672
        %v2569 = vpack.c.b16 %v1689, %v1673
        %v2570 = vpack.c.b16 %v1690, %v1674
        %v2571 = vpack.c.b16 %v1691, %v1675
        %v2572 = vpack.c.b16 %v1692, %v1676
        %v2573 = vpack.c.b16 %v1693, %v1677
        %v2574 = vpack.c.b16 %v1710, %v1694
        %v2575 = vpack.c.b16 %v1711, %v1695
        %v2576 = vpack.c.b16 %v1712, %v1696
        %v2577 = vpack.c.b16 %v1713, %v1697
        %v2578 = vpack.c.b16 %v1714, %v1698
        %v2579 = vpack.c.b16 %v1715, %v1699
        %v2580 = vpack.c.b16 %v1716, %v1700
        %v2581 = vpack.c.b16 %v1717, %v1701
        %v2582 = vpack.c.b16 %v1718, %v1702
        %v2583 = vpack.c.b16 %v1719, %v1703
        %v2584 = vpack.c.b16 %v1720, %v1704
        %v2585 = vpack.c.b16 %v1721, %v1705
        %v2586 = vpack.c.b16 %v1722, %v1706
        %v2587 = vpack.c.b16 %v1723, %v1707
        %v2588 = vpack.c.b16 %v1724, %v1708
        %v2589 = vpack.c.b16 %v1725, %v1709
        %v2590 = vpack.c.b16 %v1742, %v1726
        %v2591 = vpack.c.b16 %v1743, %v1727
        %v2592 = vpack.c.b16 %v1744, %v1728
        %v2593 = vpack.c.b16 %v1745, %v1729
        %v2594 = vpack.c.b16 %v1746, %v1730
        %v2595 = vpack.c.b16 %v1747, %v1731
        %v2596 = vpack.c.b16 %v1748, %v1732
        %v2597 = vpack.c.b16 %v1749, %v1733
        %v2598 = vpack.c.b16 %v1750, %v1734
        %v2599 = vpack.c.b16 %v1751, %v1735
        %v2600 = vpack.c.b16 %v1752, %v1736
        %v2601 = vpack.c.b16 %v1753, %v1737
        %v2602 = vpack.c.b16 %v1754, %v1738
        %v2603 = vpack.c.b16 %v1755, %v1739
        %v2604 = vpack.c.b16 %v1756, %v1740
        %v2605 = vpack.c.b16 %v1757, %v1741
        %v2606 = vpack.c.b16 %v1774, %v1758
        %v2607 = vpack.c.b16 %v1775, %v1759
        %v2608 = vpack.c.b16 %v1776, %v1760
        %v2609 = vpack.c.b16 %v1777, %v1761
        %v2610 = vpack.c.b16 %v1778, %v1762
        %v2611 = vpack.c.b16 %v1779, %v1763
        %v2612 = vpack.c.b16 %v1780, %v1764
        %v2613 = vpack.c.b16 %v1781, %v1765
        %v2614 = vpack.c.b16 %v1782, %v1766
        %v2615 = vpack.c.b16 %v1783, %v1767
        %v2616 = vpack.c.b16 %v1784, %v1768
        %v2617 = vpack.c.b16 %v1785, %v1769
        %v2618 = vpack.c.b16 %v1786, %v1770
        %v2619 = vpack.c.b16 %v1787, %v1771
        %v2620 = vpack.c.b16 %v1788, %v1772
        %v2621 = vpack.c.b16 %v1789, %v1773
        %v2622 = vpack.c.b16 %v1806, %v1790
        %v2623 = vpack.c.b16 %v1807, %v1791
        %v2624 = vpack.c.b16 %v1808, %v1792
        %v2625 = vpack.c.b16 %v1809, %v1793
        %v2626 = vpack.c.b16 %v1810, %v1794
        %v2627 = vpack.c.b16 %v1811, %v1795
        %v2628 = vpack.c.b16 %v1812, %v1796
        %v2629 = vpack.c.b16 %v1813, %v1797
        %v2630 = vpack.c.b16 %v1814, %v1798
        %v2631 = vpack.c.b16 %v1815, %v1799
        %v2632 = vpack.c.b16 %v1816, %v1800
        %v2633 = vpack.c.b16 %v1817, %v1801
        %v2634 = vpack.c.b16 %v1818, %v1802
        %v2635 = vpack.c.b16 %v1819, %v1803
        %v2636 = vpack.c.b16 %v1820, %v1804
        %v2637 = vpack.c.b16 %v1821, %v1805
        %v2638 = vpack.c.b16 %v1838, %v1822
        %v2639 = vpack.c.b16 %v1839, %v1823
        %v2640 = vpack.c.b16 %v1840, %v1824
        %v2641 = vpack.c.b16 %v1841, %v1825
        %v2642 = vpack.c.b16 %v1842, %v1826
        %v2643 = vpack.c.b16 %v1843, %v1827
        %v2644 = vpack.c.b16 %v1844, %v1828
        %v2645 = vpack.c.b16 %v1845, %v1829
        %v2646 = vpack.c.b16 %v1846, %v1830
        %v2647 = vpack.c.b16 %v1847, %v1831
        %v2648 = vpack.c.b16 %v1848, %v1832
        %v2649 = vpack.c.b16 %v1849, %v1833
        %v2650 = vpack.c.b16 %v1850, %v1834
        %v2651 = vpack.c.b16 %v1851, %v1835
        %v2652 = vpack.c.b16 %v1852, %v1836
        %v2653 = vpack.c.b16 %v1853, %v1837
        %v2654 = vpack.c.b16 %v1870, %v1854
        %v2655 = vpack.c.b16 %v1871, %v1855
        %v2656 = vpack.c.b16 %v1872, %v1856
        %v2657 = vpack.c.b16 %v1873, %v1857
        %v2658 = vpack.c.b16 %v1874, %v1858
        %v2659 = vpack.c.b16 %v1875, %v1859
        %v2660 = vpack.c.b16 %v1876, %v1860
        %v2661 = vpack.c.b16 %v1877, %v1861
        %v2662 = vpack.c.b16 %v1878, %v1862
        %v2663 = vpack.c.b16 %v1879, %v1863
        %v2664 = vpack.c.b16 %v1880, %v1864
        %v2665 = vpack.c.b16 %v1881, %v1865
        %v2666 = vpack.c.b16 %v1882, %v1866
        %v2667 = vpack.c.b16 %v1883, %v1867
        %v2668 = vpack.c.b16 %v1884, %v1868
        %v2669 = vpack.c.b16 %v1885, %v1869
        %v2670 = vpack.c.b16 %v1902, %v1886
        %v2671 = vpack.c.b16 %v1903, %v1887
        %v2672 = vpack.c.b16 %v1904, %v1888
        %v2673 = vpack.c.b16 %v1905, %v1889
        %v2674 = vpack.c.b16 %v1906, %v1890
        %v2675 = vpack.c.b16 %v1907, %v1891
        %v2676 = vpack.c.b16 %v1908, %v1892
        %v2677 = vpack.c.b16 %v1909, %v1893
        %v2678 = vpack.c.b16 %v1910, %v1894
        %v2679 = vpack.c.b16 %v1911, %v1895
        %v2680 = vpack.c.b16 %v1912, %v1896
        %v2681 = vpack.c.b16 %v1913, %v1897
        %v2682 = vpack.c.b16 %v1914, %v1898
        %v2683 = vpack.c.b16 %v1915, %v1899
        %v2684 = vpack.c.b16 %v1916, %v1900
        %v2685 = vpack.c.b16 %v1917, %v1901
        %v2686 = vpack.c.b16 %v1934, %v1918
        %v2687 = vpack.c.b16 %v1935, %v1919
        %v2688 = vpack.c.b16 %v1936, %v1920
        %v2689 = vpack.c.b16 %v1937, %v1921
        %v2690 = vpack.c.b16 %v1938, %v1922
        %v2691 = vpack.c.b16 %v1939, %v1923
        %v2692 = vpack.c.b16 %v1940, %v1924
        %v2693 = vpack.c.b16 %v1941, %v1925
        %v2694 = vpack.c.b16 %v1942, %v1926
        %v2695 = vpack.c.b16 %v1943, %v1927
        %v2696 = vpack.c.b16 %v1944, %v1928
        %v2697 = vpack.c.b16 %v1945, %v1929
        %v2698 = vpack.c.b16 %v1946, %v1930
        %v2699 = vpack.c.b16 %v1947, %v1931
        %v2700 = vpack.c.b16 %v1948, %v1932
        %v2701 = vpack.c.b16 %v1949, %v1933
        %v2702 = vpack.c.b16 %v1966, %v1950
        %v2703 = vpack.c.b16 %v1967, %v1951
        %v2704 = vpack.c.b16 %v1968, %v1952
        %v2705 = vpack.c.b16 %v1969, %v1953
        %v2706 = vpack.c.b16 %v1970, %v1954
        %v2707 = vpack.c.b16 %v1971, %v1955
        %v2708 = vpack.c.b16 %v1972, %v1956
        %v2709 = vpack.c.b16 %v1973, %v1957
        %v2710 = vpack.c.b16 %v1974, %v1958
        %v2711 = vpack.c.b16 %v1975, %v1959
        %v2712 = vpack.c.b16 %v1976, %v1960
        %v2713 = vpack.c.b16 %v1977, %v1961
        %v2714 = vpack.c.b16 %v1978, %v1962
        %v2715 = vpack.c.b16 %v1979, %v1963
        %v2716 = vpack.c.b16 %v1980, %v1964
        %v2717 = vpack.c.b16 %v1981, %v1965
        %v2718 = vpack.c.b16 %v1998, %v1982
        %v2719 = vpack.c.b16 %v1999, %v1983
        %v2720 = vpack.c.b16 %v2000, %v1984
        %v2721 = vpack.c.b16 %v2001, %v1985
        %v2722 = vpack.c.b16 %v2002, %v1986
        %v2723 = vpack.c.b16 %v2003, %v1987
        %v2724 = vpack.c.b16 %v2004, %v1988
        %v2725 = vpack.c.b16 %v2005, %v1989
        %v2726 = vpack.c.b16 %v2006, %v1990
        %v2727 = vpack.c.b16 %v2007, %v1991
        %v2728 = vpack.c.b16 %v2008, %v1992
        %v2729 = vpack.c.b16 %v2009, %v1993
        %v2730 = vpack.c.b16 %v2010, %v1994
        %v2731 = vpack.c.b16 %v2011, %v1995
        %v2732 = vpack.c.b16 %v2012, %v1996
        %v2733 = vpack.c.b16 %v2013, %v1997
        %v2734 = vpack.c.b16 %v2030, %v2014
        %v2735 = vpack.c.b16 %v2031, %v2015
        %v2736 = vpack.c.b16 %v2032, %v2016
        %v2737 = vpack.c.b16 %v2033, %v2017
        %v2738 = vpack.c.b16 %v2034, %v2018
        %v2739 = vpack.c.b16 %v2035, %v2019
        %v2740 = vpack.c.b16 %v2036, %v2020
        %v2741 = vpack.c.b16 %v2037, %v2021
        %v2742 = vpack.c.b16 %v2038, %v2022
        %v2743 = vpack.c.b16 %v2039, %v2023
        %v2744 = vpack.c.b16 %v2040, %v2024
        %v2745 = vpack.c.b16 %v2041, %v2025
        %v2746 = vpack.c.b16 %v2042, %v2026
        %v2747 = vpack.c.b16 %v2043, %v2027
        %v2748 = vpack.c.b16 %v2044, %v2028
        %v2749 = vpack.c.b16 %v2045, %v2029
        %v2750 = vpack.c.b16 %v2062, %v2046
        %v2751 = vpack.c.b16 %v2063, %v2047
        %v2752 = vpack.c.b16 %v2064, %v2048
        %v2753 = vpack.c.b16 %v2065, %v2049
        %v2754 = vpack.c.b16 %v2066, %v2050
        %v2755 = vpack.c.b16 %v2067, %v2051
        %v2756 = vpack.c.b16 %v2068, %v2052
        %v2757 = vpack.c.b16 %v2069, %v2053
        %v2758 = vpack.c.b16 %v2070, %v2054
        %v2759 = vpack.c.b16 %v2071, %v2055
        %v2760 = vpack.c.b16 %v2072, %v2056
        %v2761 = vpack.c.b16 %v2073, %v2057
        %v2762 = vpack.c.b16 %v2074, %v2058
        %v2763 = vpack.c.b16 %v2075, %v2059
        %v2764 = vpack.c.b16 %v2076, %v2060
        %v2765 = vpack.c.b16 %v2077, %v2061
        %v2766 = vpack.c.b16 %v2094, %v2078
        %v2767 = vpack.c.b16 %v2095, %v2079
        %v2768 = vpack.c.b16 %v2096, %v2080
        %v2769 = vpack.c.b16 %v2097, %v2081
        %v2770 = vpack.c.b16 %v2098, %v2082
        %v2771 = vpack.c.b16 %v2099, %v2083
        %v2772 = vpack.c.b16 %v2100, %v2084
        %v2773 = vpack.c.b16 %v2101, %v2085
        %v2774 = vpack.c.b16 %v2102, %v2086
        %v2775 = vpack.c.b16 %v2103, %v2087
        %v2776 = vpack.c.b16 %v2104, %v2088
        %v2777 = vpack.c.b16 %v2105, %v2089
        %v2778 = vpack.c.b16 %v2106, %v2090
        %v2779 = vpack.c.b16 %v2107, %v2091
        %v2780 = vpack.c.b16 %v2108, %v2092
        %v2781 = vpack.c.b16 %v2109, %v2093
        %v2782 = vpack.c.b16 %v2126, %v2110
        %v2783 = vpack.c.b16 %v2127, %v2111
        %v2784 = vpack.c.b16 %v2128, %v2112
        %v2785 = vpack.c.b16 %v2129, %v2113
        %v2786 = vpack.c.b16 %v2130, %v2114
        %v2787 = vpack.c.b16 %v2131, %v2115
        %v2788 = vpack.c.b16 %v2132, %v2116
        %v2789 = vpack.c.b16 %v2133, %v2117
        %v2790 = vpack.c.b16 %v2134, %v2118
        %v2791 = vpack.c.b16 %v2135, %v2119
        %v2792 = vpack.c.b16 %v2136, %v2120
        %v2793 = vpack.c.b16 %v2137, %v2121
        %v2794 = vpack.c.b16 %v2138, %v2122
        %v2795 = vpack.c.b16 %v2139, %v2123
        %v2796 = vpack.c.b16 %v2140, %v2124
        %v2797 = vpack.c.b16 %v2141, %v2125
        %v2798 = vpack.c.b16 %v2158, %v2142
        %v2799 = vpack.c.b16 %v2159, %v2143
        %v2800 = vpack.c.b16 %v2160, %v2144
        %v2801 = vpack.c.b16 %v2161, %v2145
        %v2802 = vpack.c.b16 %v2162, %v2146
        %v2803 = vpack.c.b16 %v2163, %v2147
        %v2804 = vpack.c.b16 %v2164, %v2148
        %v2805 = vpack.c.b16 %v2165, %v2149
        %v2806 = vpack.c.b16 %v2166, %v2150
        %v2807 = vpack.c.b16 %v2167, %v2151
        %v2808 = vpack.c.b16 %v2168, %v2152
        %v2809 = vpack.c.b16 %v2169, %v2153
        %v2810 = vpack.c.b16 %v2170, %v2154
        %v2811 = vpack.c.b16 %v2171, %v2155
        %v2812 = vpack.c.b16 %v2172, %v2156
        %v2813 = vpack.c.b16 %v2173, %v2157
        %v2814 = vpack.c.b16 %v2190, %v2174
        %v2815 = vpack.c.b16 %v2191, %v2175
        %v2816 = vpack.c.b16 %v2192, %v2176
        %v2817 = vpack.c.b16 %v2193, %v2177
        %v2818 = vpack.c.b16 %v2194, %v2178
        %v2819 = vpack.c.b16 %v2195, %v2179
        %v2820 = vpack.c.b16 %v2196, %v2180
        %v2821 = vpack.c.b16 %v2197, %v2181
        %v2822 = vpack.c.b16 %v2198, %v2182
        %v2823 = vpack.c.b16 %v2199, %v2183
        %v2824 = vpack.c.b16 %v2200, %v2184
        %v2825 = vpack.c.b16 %v2201, %v2185
        %v2826 = vpack.c.b16 %v2202, %v2186
        %v2827 = vpack.c.b16 %v2203, %v2187
        %v2828 = vpack.c.b16 %v2204, %v2188
        %v2829 = vpack.c.b16 %v2205, %v2189
        %v2830 = vpack.c.b16 %v2222, %v2206
        %v2831 = vpack.c.b16 %v2223, %v2207
        %v2832 = vpack.c.b16 %v2224, %v2208
        %v2833 = vpack.c.b16 %v2225, %v2209
        %v2834 = vpack.c.b16 %v2226, %v2210
        %v2835 = vpack.c.b16 %v2227, %v2211
        %v2836 = vpack.c.b16 %v2228, %v2212
        %v2837 = vpack.c.b16 %v2229, %v2213
        %v2838 = vpack.c.b16 %v2230, %v2214
        %v2839 = vpack.c.b16 %v2231, %v2215
        %v2840 = vpack.c.b16 %v2232, %v2216
        %v2841 = vpack.c.b16 %v2233, %v2217
        %v2842 = vpack.c.b16 %v2234, %v2218
        %v2843 = vpack.c.b16 %v2235, %v2219
        %v2844 = vpack.c.b16 %v2236, %v2220
        %v2845 = vpack.c.b16 %v2237, %v2221
        %v2846 = vpack.c.b16 %v2254, %v2238
        %v2847 = vpack.c.b16 %v2255, %v2239
        %v2848 = vpack.c.b16 %v2256, %v2240
        %v2849 = vpack.c.b16 %v2257, %v2241
        %v2850 = vpack.c.b16 %v2258, %v2242
        %v2851 = vpack.c.b16 %v2259, %v2243
        %v2852 = vpack.c.b16 %v2260, %v2244
        %v2853 = vpack.c.b16 %v2261, %v2245
        %v2854 = vpack.c.b16 %v2262, %v2246
        %v2855 = vpack.c.b16 %v2263, %v2247
        %v2856 = vpack.c.b16 %v2264, %v2248
        %v2857 = vpack.c.b16 %v2265, %v2249
        %v2858 = vpack.c.b16 %v2266, %v2250
        %v2859 = vpack.c.b16 %v2267, %v2251
        %v2860 = vpack.c.b16 %v2268, %v2252
        %v2861 = vpack.c.b16 %v2269, %v2253
        %v2862 = vpack.c.b16 %v2286, %v2270
        %v2863 = vpack.c.b16 %v2287, %v2271
        %v2864 = vpack.c.b16 %v2288, %v2272
        %v2865 = vpack.c.b16 %v2289, %v2273
        %v2866 = vpack.c.b16 %v2290, %v2274
        %v2867 = vpack.c.b16 %v2291, %v2275
        %v2868 = vpack.c.b16 %v2292, %v2276
        %v2869 = vpack.c.b16 %v2293, %v2277
        %v2870 = vpack.c.b16 %v2294, %v2278
        %v2871 = vpack.c.b16 %v2295, %v2279
        %v2872 = vpack.c.b16 %v2296, %v2280
        %v2873 = vpack.c.b16 %v2297, %v2281
        %v2874 = vpack.c.b16 %v2298, %v2282
        %v2875 = vpack.c.b16 %v2299, %v2283
        %v2876 = vpack.c.b16 %v2300, %v2284
        %v2877 = vpack.c.b16 %v2301, %v2285
        %v2878 = vpack.c.b16 %v2318, %v2302
        %v2879 = vpack.c.b16 %v2319, %v2303
        %v2880 = vpack.c.b16 %v2320, %v2304
        %v2881 = vpack.c.b16 %v2321, %v2305
        %v2882 = vpack.c.b16 %v2322, %v2306
        %v2883 = vpack.c.b16 %v2323, %v2307
        %v2884 = vpack.c.b16 %v2324, %v2308
        %v2885 = vpack.c.b16 %v2325, %v2309
        %v2886 = vpack.c.b16 %v2326, %v2310
        %v2887 = vpack.c.b16 %v2327, %v2311
        %v2888 = vpack.c.b16 %v2328, %v2312
        %v2889 = vpack.c.b16 %v2329, %v2313
        %v2890 = vpack.c.b16 %v2330, %v2314
        %v2891 = vpack.c.b16 %v2331, %v2315
        %v2892 = vpack.c.b16 %v2332, %v2316
        %v2893 = vpack.c.b16 %v2333, %v2317
        %v2894 = vpack.c.b16 %v2350, %v2334
        %v2895 = vpack.c.b16 %v2351, %v2335
        %v2896 = vpack.c.b16 %v2352, %v2336
        %v2897 = vpack.c.b16 %v2353, %v2337
        %v2898 = vpack.c.b16 %v2354, %v2338
        %v2899 = vpack.c.b16 %v2355, %v2339
        %v2900 = vpack.c.b16 %v2356, %v2340
        %v2901 = vpack.c.b16 %v2357, %v2341
        %v2902 = vpack.c.b16 %v2358, %v2342
        %v2903 = vpack.c.b16 %v2359, %v2343
        %v2904 = vpack.c.b16 %v2360, %v2344
        %v2905 = vpack.c.b16 %v2361, %v2345
        %v2906 = vpack.c.b16 %v2362, %v2346
        %v2907 = vpack.c.b16 %v2363, %v2347
        %v2908 = vpack.c.b16 %v2364, %v2348
        %v2909 = vpack.c.b16 %v2365, %v2349
        %v2910 = vpack.c.b16 %v2382, %v2366
        %v2911 = vpack.c.b16 %v2383, %v2367
        %v2912 = vpack.c.b16 %v2384, %v2368
        %v2913 = vpack.c.b16 %v2385, %v2369
        %v2914 = vpack.c.b16 %v2386, %v2370
        %v2915 = vpack.c.b16 %v2387, %v2371
        %v2916 = vpack.c.b16 %v2388, %v2372
        %v2917 = vpack.c.b16 %v2389, %v2373
        %v2918 = vpack.c.b16 %v2390, %v2374
        %v2919 = vpack.c.b16 %v2391, %v2375
        %v2920 = vpack.c.b16 %v2392, %v2376
        %v2921 = vpack.c.b16 %v2393, %v2377
        %v2922 = vpack.c.b16 %v2394, %v2378
        %v2923 = vpack.c.b16 %v2395, %v2379
        %v2924 = vpack.c.b16 %v2396, %v2380
        %v2925 = vpack.c.b16 %v2397, %v2381
        %v2926 = vpack.c.b16 %v2414, %v2398
        %v2927 = vpack.c.b16 %v2415, %v2399
        %v2928 = vpack.c.b16 %v2416, %v2400
        %v2929 = vpack.c.b16 %v2417, %v2401
        %v2930 = vpack.c.b16 %v2418, %v2402
        %v2931 = vpack.c.b16 %v2419, %v2403
        %v2932 = vpack.c.b16 %v2420, %v2404
        %v2933 = vpack.c.b16 %v2421, %v2405
        %v2934 = vpack.c.b16 %v2422, %v2406
        %v2935 = vpack.c.b16 %v2423, %v2407
        %v2936 = vpack.c.b16 %v2424, %v2408
        %v2937 = vpack.c.b16 %v2425, %v2409
        %v2938 = vpack.c.b16 %v2426, %v2410
        %v2939 = vpack.c.b16 %v2427, %v2411
        %v2940 = vpack.c.b16 %v2428, %v2412
        %v2941 = vpack.c.b16 %v2429, %v2413
        %3454 = vmatpush.bf16.msra.mxu0 %v2542
        %3455 = vmatpush.bf16.msra.mxu0 %v2526
        %3456 = vmatpush.bf16.msra.mxu0 %v2510
        %3457 = vmatpush.bf16.msra.mxu0 %v2494
        %3458 = vmatpush.bf16.msra.mxu0 %v2478
        %3459 = vmatpush.bf16.msra.mxu0 %v2462
        %3460 = vmatpush.bf16.msra.mxu0 %v2446
        %3461 = vmatpush.bf16.msra.mxu0 %v2430
        %3462 = vmatmul.bf16.gmra.mxu0 %v886
        %v3463 = vpop.f32.mrf.mxu0
        %v3464 = vadd.f32 %v848, %v3463
        %v3465 = vpop.f32.mrf.mxu0
        %3466 = vdwg.mxu0
        %3467 = vmatpush.bf16.msra.mxu0 %v2670
        %3468 = vmatpush.bf16.msra.mxu0 %v2654
        %3469 = vmatpush.bf16.msra.mxu0 %v2638
        %3470 = vmatpush.bf16.msra.mxu0 %v2622
        %3471 = vmatpush.bf16.msra.mxu0 %v2606
        %3472 = vmatpush.bf16.msra.mxu0 %v2590
        %3473 = vmatpush.bf16.msra.mxu0 %v2574
        %3474 = vmatpush.bf16.msra.mxu0 %v2558
        %3475 = vmatmul.bf16.gmra.mxu0 %v887
        %v3476 = vpop.f32.mrf.mxu0
        %v3477 = vadd.f32 %v3464, %v3476
        %v3478 = vpop.f32.mrf.mxu0
        %3479 = vdwg.mxu0
        %3480 = vmatpush.bf16.msra.mxu0 %v2798
        %3481 = vmatpush.bf16.msra.mxu0 %v2782
        %3482 = vmatpush.bf16.msra.mxu0 %v2766
        %3483 = vmatpush.bf16.msra.mxu0 %v2750
        %3484 = vmatpush.bf16.msra.mxu0 %v2734
        %3485 = vmatpush.bf16.msra.mxu0 %v2718
        %3486 = vmatpush.bf16.msra.mxu0 %v2702
        %3487 = vmatpush.bf16.msra.mxu0 %v2686
        %3488 = vmatmul.bf16.gmra.mxu0 %v888
        %v3489 = vpop.f32.mrf.mxu0
        %v3490 = vadd.f32 %v3477, %v3489
        %v3491 = vpop.f32.mrf.mxu0
        %3492 = vdwg.mxu0
        %3493 = vmatpush.bf16.msra.mxu0 %v2926
        %3494 = vmatpush.bf16.msra.mxu0 %v2910
        %3495 = vmatpush.bf16.msra.mxu0 %v2894
        %3496 = vmatpush.bf16.msra.mxu0 %v2878
        %3497 = vmatpush.bf16.msra.mxu0 %v2862
        %3498 = vmatpush.bf16.msra.mxu0 %v2846
        %3499 = vmatpush.bf16.msra.mxu0 %v2830
        %3500 = vmatpush.bf16.msra.mxu0 %v2814
        %3501 = vmatmul.bf16.gmra.mxu0 %v889
        %v3502 = vpop.f32.mrf.mxu0
        %v3503 = vadd.f32 %v3490, %v3502
        %v3504 = vpop.f32.mrf.mxu0
        %3505 = vdwg.mxu0
        %3506 = vmatpush.bf16.msra.mxu0 %v2543
        %3507 = vmatpush.bf16.msra.mxu0 %v2527
        %3508 = vmatpush.bf16.msra.mxu0 %v2511
        %3509 = vmatpush.bf16.msra.mxu0 %v2495
        %3510 = vmatpush.bf16.msra.mxu0 %v2479
        %3511 = vmatpush.bf16.msra.mxu0 %v2463
        %3512 = vmatpush.bf16.msra.mxu0 %v2447
        %3513 = vmatpush.bf16.msra.mxu0 %v2431
        %3514 = vmatmul.bf16.gmra.mxu0 %v886
        %v3515 = vpop.f32.mrf.mxu0
        %v3516 = vadd.f32 %v849, %v3515
        %v3517 = vpop.f32.mrf.mxu0
        %3518 = vdwg.mxu0
        %3519 = vmatpush.bf16.msra.mxu0 %v2671
        %3520 = vmatpush.bf16.msra.mxu0 %v2655
        %3521 = vmatpush.bf16.msra.mxu0 %v2639
        %3522 = vmatpush.bf16.msra.mxu0 %v2623
        %3523 = vmatpush.bf16.msra.mxu0 %v2607
        %3524 = vmatpush.bf16.msra.mxu0 %v2591
        %3525 = vmatpush.bf16.msra.mxu0 %v2575
        %3526 = vmatpush.bf16.msra.mxu0 %v2559
        %3527 = vmatmul.bf16.gmra.mxu0 %v887
        %v3528 = vpop.f32.mrf.mxu0
        %v3529 = vadd.f32 %v3516, %v3528
        %v3530 = vpop.f32.mrf.mxu0
        %3531 = vdwg.mxu0
        %3532 = vmatpush.bf16.msra.mxu0 %v2799
        %3533 = vmatpush.bf16.msra.mxu0 %v2783
        %3534 = vmatpush.bf16.msra.mxu0 %v2767
        %3535 = vmatpush.bf16.msra.mxu0 %v2751
        %3536 = vmatpush.bf16.msra.mxu0 %v2735
        %3537 = vmatpush.bf16.msra.mxu0 %v2719
        %3538 = vmatpush.bf16.msra.mxu0 %v2703
        %3539 = vmatpush.bf16.msra.mxu0 %v2687
        %3540 = vmatmul.bf16.gmra.mxu0 %v888
        %v3541 = vpop.f32.mrf.mxu0
        %v3542 = vadd.f32 %v3529, %v3541
        %v3543 = vpop.f32.mrf.mxu0
        %3544 = vdwg.mxu0
        %3545 = vmatpush.bf16.msra.mxu0 %v2927
        %3546 = vmatpush.bf16.msra.mxu0 %v2911
        %3547 = vmatpush.bf16.msra.mxu0 %v2895
        %3548 = vmatpush.bf16.msra.mxu0 %v2879
        %3549 = vmatpush.bf16.msra.mxu0 %v2863
        %3550 = vmatpush.bf16.msra.mxu0 %v2847
        %3551 = vmatpush.bf16.msra.mxu0 %v2831
        %3552 = vmatpush.bf16.msra.mxu0 %v2815
        %3553 = vmatmul.bf16.gmra.mxu0 %v889
        %v3554 = vpop.f32.mrf.mxu0
        %v3555 = vadd.f32 %v3542, %v3554
        %v3556 = vpop.f32.mrf.mxu0
        %3557 = vdwg.mxu0
        %3558 = vmatpush.bf16.msra.mxu0 %v2544
        %3559 = vmatpush.bf16.msra.mxu0 %v2528
        %3560 = vmatpush.bf16.msra.mxu0 %v2512
        %3561 = vmatpush.bf16.msra.mxu0 %v2496
        %3562 = vmatpush.bf16.msra.mxu0 %v2480
        %3563 = vmatpush.bf16.msra.mxu0 %v2464
        %3564 = vmatpush.bf16.msra.mxu0 %v2448
        %3565 = vmatpush.bf16.msra.mxu0 %v2432
        %3566 = vmatmul.bf16.gmra.mxu0 %v886
        %v3567 = vpop.f32.mrf.mxu0
        %v3568 = vadd.f32 %v850, %v3567
        %v3569 = vpop.f32.mrf.mxu0
        %3570 = vdwg.mxu0
        %3571 = vmatpush.bf16.msra.mxu0 %v2672
        %3572 = vmatpush.bf16.msra.mxu0 %v2656
        %3573 = vmatpush.bf16.msra.mxu0 %v2640
        %3574 = vmatpush.bf16.msra.mxu0 %v2624
        %3575 = vmatpush.bf16.msra.mxu0 %v2608
        %3576 = vmatpush.bf16.msra.mxu0 %v2592
        %3577 = vmatpush.bf16.msra.mxu0 %v2576
        %3578 = vmatpush.bf16.msra.mxu0 %v2560
        %3579 = vmatmul.bf16.gmra.mxu0 %v887
        %v3580 = vpop.f32.mrf.mxu0
        %v3581 = vadd.f32 %v3568, %v3580
        %v3582 = vpop.f32.mrf.mxu0
        %3583 = vdwg.mxu0
        %3584 = vmatpush.bf16.msra.mxu0 %v2800
        %3585 = vmatpush.bf16.msra.mxu0 %v2784
        %3586 = vmatpush.bf16.msra.mxu0 %v2768
        %3587 = vmatpush.bf16.msra.mxu0 %v2752
        %3588 = vmatpush.bf16.msra.mxu0 %v2736
        %3589 = vmatpush.bf16.msra.mxu0 %v2720
        %3590 = vmatpush.bf16.msra.mxu0 %v2704
        %3591 = vmatpush.bf16.msra.mxu0 %v2688
        %3592 = vmatmul.bf16.gmra.mxu0 %v888
        %v3593 = vpop.f32.mrf.mxu0
        %v3594 = vadd.f32 %v3581, %v3593
        %v3595 = vpop.f32.mrf.mxu0
        %3596 = vdwg.mxu0
        %3597 = vmatpush.bf16.msra.mxu0 %v2928
        %3598 = vmatpush.bf16.msra.mxu0 %v2912
        %3599 = vmatpush.bf16.msra.mxu0 %v2896
        %3600 = vmatpush.bf16.msra.mxu0 %v2880
        %3601 = vmatpush.bf16.msra.mxu0 %v2864
        %3602 = vmatpush.bf16.msra.mxu0 %v2848
        %3603 = vmatpush.bf16.msra.mxu0 %v2832
        %3604 = vmatpush.bf16.msra.mxu0 %v2816
        %3605 = vmatmul.bf16.gmra.mxu0 %v889
        %v3606 = vpop.f32.mrf.mxu0
        %v3607 = vadd.f32 %v3594, %v3606
        %v3608 = vpop.f32.mrf.mxu0
        %3609 = vdwg.mxu0
        %3610 = vmatpush.bf16.msra.mxu0 %v2545
        %3611 = vmatpush.bf16.msra.mxu0 %v2529
        %3612 = vmatpush.bf16.msra.mxu0 %v2513
        %3613 = vmatpush.bf16.msra.mxu0 %v2497
        %3614 = vmatpush.bf16.msra.mxu0 %v2481
        %3615 = vmatpush.bf16.msra.mxu0 %v2465
        %3616 = vmatpush.bf16.msra.mxu0 %v2449
        %3617 = vmatpush.bf16.msra.mxu0 %v2433
        %3618 = vmatmul.bf16.gmra.mxu0 %v886
        %v3619 = vpop.f32.mrf.mxu0
        %v3620 = vadd.f32 %v851, %v3619
        %v3621 = vpop.f32.mrf.mxu0
        %3622 = vdwg.mxu0
        %3623 = vmatpush.bf16.msra.mxu0 %v2673
        %3624 = vmatpush.bf16.msra.mxu0 %v2657
        %3625 = vmatpush.bf16.msra.mxu0 %v2641
        %3626 = vmatpush.bf16.msra.mxu0 %v2625
        %3627 = vmatpush.bf16.msra.mxu0 %v2609
        %3628 = vmatpush.bf16.msra.mxu0 %v2593
        %3629 = vmatpush.bf16.msra.mxu0 %v2577
        %3630 = vmatpush.bf16.msra.mxu0 %v2561
        %3631 = vmatmul.bf16.gmra.mxu0 %v887
        %v3632 = vpop.f32.mrf.mxu0
        %v3633 = vadd.f32 %v3620, %v3632
        %v3634 = vpop.f32.mrf.mxu0
        %3635 = vdwg.mxu0
        %3636 = vmatpush.bf16.msra.mxu0 %v2801
        %3637 = vmatpush.bf16.msra.mxu0 %v2785
        %3638 = vmatpush.bf16.msra.mxu0 %v2769
        %3639 = vmatpush.bf16.msra.mxu0 %v2753
        %3640 = vmatpush.bf16.msra.mxu0 %v2737
        %3641 = vmatpush.bf16.msra.mxu0 %v2721
        %3642 = vmatpush.bf16.msra.mxu0 %v2705
        %3643 = vmatpush.bf16.msra.mxu0 %v2689
        %3644 = vmatmul.bf16.gmra.mxu0 %v888
        %v3645 = vpop.f32.mrf.mxu0
        %v3646 = vadd.f32 %v3633, %v3645
        %v3647 = vpop.f32.mrf.mxu0
        %3648 = vdwg.mxu0
        %3649 = vmatpush.bf16.msra.mxu0 %v2929
        %3650 = vmatpush.bf16.msra.mxu0 %v2913
        %3651 = vmatpush.bf16.msra.mxu0 %v2897
        %3652 = vmatpush.bf16.msra.mxu0 %v2881
        %3653 = vmatpush.bf16.msra.mxu0 %v2865
        %3654 = vmatpush.bf16.msra.mxu0 %v2849
        %3655 = vmatpush.bf16.msra.mxu0 %v2833
        %3656 = vmatpush.bf16.msra.mxu0 %v2817
        %3657 = vmatmul.bf16.gmra.mxu0 %v889
        %v3658 = vpop.f32.mrf.mxu0
        %v3659 = vadd.f32 %v3646, %v3658
        %v3660 = vpop.f32.mrf.mxu0
        %3661 = vdwg.mxu0
        %3662 = vmatpush.bf16.msra.mxu0 %v2546
        %3663 = vmatpush.bf16.msra.mxu0 %v2530
        %3664 = vmatpush.bf16.msra.mxu0 %v2514
        %3665 = vmatpush.bf16.msra.mxu0 %v2498
        %3666 = vmatpush.bf16.msra.mxu0 %v2482
        %3667 = vmatpush.bf16.msra.mxu0 %v2466
        %3668 = vmatpush.bf16.msra.mxu0 %v2450
        %3669 = vmatpush.bf16.msra.mxu0 %v2434
        %3670 = vmatmul.bf16.gmra.mxu0 %v886
        %v3671 = vpop.f32.mrf.mxu0
        %v3672 = vadd.f32 %v852, %v3671
        %v3673 = vpop.f32.mrf.mxu0
        %3674 = vdwg.mxu0
        %3675 = vmatpush.bf16.msra.mxu0 %v2674
        %3676 = vmatpush.bf16.msra.mxu0 %v2658
        %3677 = vmatpush.bf16.msra.mxu0 %v2642
        %3678 = vmatpush.bf16.msra.mxu0 %v2626
        %3679 = vmatpush.bf16.msra.mxu0 %v2610
        %3680 = vmatpush.bf16.msra.mxu0 %v2594
        %3681 = vmatpush.bf16.msra.mxu0 %v2578
        %3682 = vmatpush.bf16.msra.mxu0 %v2562
        %3683 = vmatmul.bf16.gmra.mxu0 %v887
        %v3684 = vpop.f32.mrf.mxu0
        %v3685 = vadd.f32 %v3672, %v3684
        %v3686 = vpop.f32.mrf.mxu0
        %3687 = vdwg.mxu0
        %3688 = vmatpush.bf16.msra.mxu0 %v2802
        %3689 = vmatpush.bf16.msra.mxu0 %v2786
        %3690 = vmatpush.bf16.msra.mxu0 %v2770
        %3691 = vmatpush.bf16.msra.mxu0 %v2754
        %3692 = vmatpush.bf16.msra.mxu0 %v2738
        %3693 = vmatpush.bf16.msra.mxu0 %v2722
        %3694 = vmatpush.bf16.msra.mxu0 %v2706
        %3695 = vmatpush.bf16.msra.mxu0 %v2690
        %3696 = vmatmul.bf16.gmra.mxu0 %v888
        %v3697 = vpop.f32.mrf.mxu0
        %v3698 = vadd.f32 %v3685, %v3697
        %v3699 = vpop.f32.mrf.mxu0
        %3700 = vdwg.mxu0
        %3701 = vmatpush.bf16.msra.mxu0 %v2930
        %3702 = vmatpush.bf16.msra.mxu0 %v2914
        %3703 = vmatpush.bf16.msra.mxu0 %v2898
        %3704 = vmatpush.bf16.msra.mxu0 %v2882
        %3705 = vmatpush.bf16.msra.mxu0 %v2866
        %3706 = vmatpush.bf16.msra.mxu0 %v2850
        %3707 = vmatpush.bf16.msra.mxu0 %v2834
        %3708 = vmatpush.bf16.msra.mxu0 %v2818
        %3709 = vmatmul.bf16.gmra.mxu0 %v889
        %v3710 = vpop.f32.mrf.mxu0
        %v3711 = vadd.f32 %v3698, %v3710
        %v3712 = vpop.f32.mrf.mxu0
        %3713 = vdwg.mxu0
        %3714 = vmatpush.bf16.msra.mxu0 %v2547
        %3715 = vmatpush.bf16.msra.mxu0 %v2531
        %3716 = vmatpush.bf16.msra.mxu0 %v2515
        %3717 = vmatpush.bf16.msra.mxu0 %v2499
        %3718 = vmatpush.bf16.msra.mxu0 %v2483
        %3719 = vmatpush.bf16.msra.mxu0 %v2467
        %3720 = vmatpush.bf16.msra.mxu0 %v2451
        %3721 = vmatpush.bf16.msra.mxu0 %v2435
        %3722 = vmatmul.bf16.gmra.mxu0 %v886
        %v3723 = vpop.f32.mrf.mxu0
        %v3724 = vadd.f32 %v853, %v3723
        %v3725 = vpop.f32.mrf.mxu0
        %3726 = vdwg.mxu0
        %3727 = vmatpush.bf16.msra.mxu0 %v2675
        %3728 = vmatpush.bf16.msra.mxu0 %v2659
        %3729 = vmatpush.bf16.msra.mxu0 %v2643
        %3730 = vmatpush.bf16.msra.mxu0 %v2627
        %3731 = vmatpush.bf16.msra.mxu0 %v2611
        %3732 = vmatpush.bf16.msra.mxu0 %v2595
        %3733 = vmatpush.bf16.msra.mxu0 %v2579
        %3734 = vmatpush.bf16.msra.mxu0 %v2563
        %3735 = vmatmul.bf16.gmra.mxu0 %v887
        %v3736 = vpop.f32.mrf.mxu0
        %v3737 = vadd.f32 %v3724, %v3736
        %v3738 = vpop.f32.mrf.mxu0
        %3739 = vdwg.mxu0
        %3740 = vmatpush.bf16.msra.mxu0 %v2803
        %3741 = vmatpush.bf16.msra.mxu0 %v2787
        %3742 = vmatpush.bf16.msra.mxu0 %v2771
        %3743 = vmatpush.bf16.msra.mxu0 %v2755
        %3744 = vmatpush.bf16.msra.mxu0 %v2739
        %3745 = vmatpush.bf16.msra.mxu0 %v2723
        %3746 = vmatpush.bf16.msra.mxu0 %v2707
        %3747 = vmatpush.bf16.msra.mxu0 %v2691
        %3748 = vmatmul.bf16.gmra.mxu0 %v888
        %v3749 = vpop.f32.mrf.mxu0
        %v3750 = vadd.f32 %v3737, %v3749
        %v3751 = vpop.f32.mrf.mxu0
        %3752 = vdwg.mxu0
        %3753 = vmatpush.bf16.msra.mxu0 %v2931
        %3754 = vmatpush.bf16.msra.mxu0 %v2915
        %3755 = vmatpush.bf16.msra.mxu0 %v2899
        %3756 = vmatpush.bf16.msra.mxu0 %v2883
        %3757 = vmatpush.bf16.msra.mxu0 %v2867
        %3758 = vmatpush.bf16.msra.mxu0 %v2851
        %3759 = vmatpush.bf16.msra.mxu0 %v2835
        %3760 = vmatpush.bf16.msra.mxu0 %v2819
        %3761 = vmatmul.bf16.gmra.mxu0 %v889
        %v3762 = vpop.f32.mrf.mxu0
        %v3763 = vadd.f32 %v3750, %v3762
        %v3764 = vpop.f32.mrf.mxu0
        %3765 = vdwg.mxu0
        %3766 = vmatpush.bf16.msra.mxu0 %v2548
        %3767 = vmatpush.bf16.msra.mxu0 %v2532
        %3768 = vmatpush.bf16.msra.mxu0 %v2516
        %3769 = vmatpush.bf16.msra.mxu0 %v2500
        %3770 = vmatpush.bf16.msra.mxu0 %v2484
        %3771 = vmatpush.bf16.msra.mxu0 %v2468
        %3772 = vmatpush.bf16.msra.mxu0 %v2452
        %3773 = vmatpush.bf16.msra.mxu0 %v2436
        %3774 = vmatmul.bf16.gmra.mxu0 %v886
        %v3775 = vpop.f32.mrf.mxu0
        %v3776 = vadd.f32 %v854, %v3775
        %v3777 = vpop.f32.mrf.mxu0
        %3778 = vdwg.mxu0
        %3779 = vmatpush.bf16.msra.mxu0 %v2676
        %3780 = vmatpush.bf16.msra.mxu0 %v2660
        %3781 = vmatpush.bf16.msra.mxu0 %v2644
        %3782 = vmatpush.bf16.msra.mxu0 %v2628
        %3783 = vmatpush.bf16.msra.mxu0 %v2612
        %3784 = vmatpush.bf16.msra.mxu0 %v2596
        %3785 = vmatpush.bf16.msra.mxu0 %v2580
        %3786 = vmatpush.bf16.msra.mxu0 %v2564
        %3787 = vmatmul.bf16.gmra.mxu0 %v887
        %v3788 = vpop.f32.mrf.mxu0
        %v3789 = vadd.f32 %v3776, %v3788
        %v3790 = vpop.f32.mrf.mxu0
        %3791 = vdwg.mxu0
        %3792 = vmatpush.bf16.msra.mxu0 %v2804
        %3793 = vmatpush.bf16.msra.mxu0 %v2788
        %3794 = vmatpush.bf16.msra.mxu0 %v2772
        %3795 = vmatpush.bf16.msra.mxu0 %v2756
        %3796 = vmatpush.bf16.msra.mxu0 %v2740
        %3797 = vmatpush.bf16.msra.mxu0 %v2724
        %3798 = vmatpush.bf16.msra.mxu0 %v2708
        %3799 = vmatpush.bf16.msra.mxu0 %v2692
        %3800 = vmatmul.bf16.gmra.mxu0 %v888
        %v3801 = vpop.f32.mrf.mxu0
        %v3802 = vadd.f32 %v3789, %v3801
        %v3803 = vpop.f32.mrf.mxu0
        %3804 = vdwg.mxu0
        %3805 = vmatpush.bf16.msra.mxu0 %v2932
        %3806 = vmatpush.bf16.msra.mxu0 %v2916
        %3807 = vmatpush.bf16.msra.mxu0 %v2900
        %3808 = vmatpush.bf16.msra.mxu0 %v2884
        %3809 = vmatpush.bf16.msra.mxu0 %v2868
        %3810 = vmatpush.bf16.msra.mxu0 %v2852
        %3811 = vmatpush.bf16.msra.mxu0 %v2836
        %3812 = vmatpush.bf16.msra.mxu0 %v2820
        %3813 = vmatmul.bf16.gmra.mxu0 %v889
        %v3814 = vpop.f32.mrf.mxu0
        %v3815 = vadd.f32 %v3802, %v3814
        %v3816 = vpop.f32.mrf.mxu0
        %3817 = vdwg.mxu0
        %3818 = vmatpush.bf16.msra.mxu0 %v2549
        %3819 = vmatpush.bf16.msra.mxu0 %v2533
        %3820 = vmatpush.bf16.msra.mxu0 %v2517
        %3821 = vmatpush.bf16.msra.mxu0 %v2501
        %3822 = vmatpush.bf16.msra.mxu0 %v2485
        %3823 = vmatpush.bf16.msra.mxu0 %v2469
        %3824 = vmatpush.bf16.msra.mxu0 %v2453
        %3825 = vmatpush.bf16.msra.mxu0 %v2437
        %3826 = vmatmul.bf16.gmra.mxu0 %v886
        %v3827 = vpop.f32.mrf.mxu0
        %v3828 = vadd.f32 %v855, %v3827
        %v3829 = vpop.f32.mrf.mxu0
        %3830 = vdwg.mxu0
        %3831 = vmatpush.bf16.msra.mxu0 %v2677
        %3832 = vmatpush.bf16.msra.mxu0 %v2661
        %3833 = vmatpush.bf16.msra.mxu0 %v2645
        %3834 = vmatpush.bf16.msra.mxu0 %v2629
        %3835 = vmatpush.bf16.msra.mxu0 %v2613
        %3836 = vmatpush.bf16.msra.mxu0 %v2597
        %3837 = vmatpush.bf16.msra.mxu0 %v2581
        %3838 = vmatpush.bf16.msra.mxu0 %v2565
        %3839 = vmatmul.bf16.gmra.mxu0 %v887
        %v3840 = vpop.f32.mrf.mxu0
        %v3841 = vadd.f32 %v3828, %v3840
        %v3842 = vpop.f32.mrf.mxu0
        %3843 = vdwg.mxu0
        %3844 = vmatpush.bf16.msra.mxu0 %v2805
        %3845 = vmatpush.bf16.msra.mxu0 %v2789
        %3846 = vmatpush.bf16.msra.mxu0 %v2773
        %3847 = vmatpush.bf16.msra.mxu0 %v2757
        %3848 = vmatpush.bf16.msra.mxu0 %v2741
        %3849 = vmatpush.bf16.msra.mxu0 %v2725
        %3850 = vmatpush.bf16.msra.mxu0 %v2709
        %3851 = vmatpush.bf16.msra.mxu0 %v2693
        %3852 = vmatmul.bf16.gmra.mxu0 %v888
        %v3853 = vpop.f32.mrf.mxu0
        %v3854 = vadd.f32 %v3841, %v3853
        %v3855 = vpop.f32.mrf.mxu0
        %3856 = vdwg.mxu0
        %3857 = vmatpush.bf16.msra.mxu0 %v2933
        %3858 = vmatpush.bf16.msra.mxu0 %v2917
        %3859 = vmatpush.bf16.msra.mxu0 %v2901
        %3860 = vmatpush.bf16.msra.mxu0 %v2885
        %3861 = vmatpush.bf16.msra.mxu0 %v2869
        %3862 = vmatpush.bf16.msra.mxu0 %v2853
        %3863 = vmatpush.bf16.msra.mxu0 %v2837
        %3864 = vmatpush.bf16.msra.mxu0 %v2821
        %3865 = vmatmul.bf16.gmra.mxu0 %v889
        %v3866 = vpop.f32.mrf.mxu0
        %v3867 = vadd.f32 %v3854, %v3866
        %v3868 = vpop.f32.mrf.mxu0
        %3869 = vdwg.mxu0
        %3870 = vmatpush.bf16.msra.mxu0 %v2550
        %3871 = vmatpush.bf16.msra.mxu0 %v2534
        %3872 = vmatpush.bf16.msra.mxu0 %v2518
        %3873 = vmatpush.bf16.msra.mxu0 %v2502
        %3874 = vmatpush.bf16.msra.mxu0 %v2486
        %3875 = vmatpush.bf16.msra.mxu0 %v2470
        %3876 = vmatpush.bf16.msra.mxu0 %v2454
        %3877 = vmatpush.bf16.msra.mxu0 %v2438
        %3878 = vmatmul.bf16.gmra.mxu0 %v886
        %v3879 = vpop.f32.mrf.mxu0
        %v3880 = vadd.f32 %v856, %v3879
        %v3881 = vpop.f32.mrf.mxu0
        %3882 = vdwg.mxu0
        %3883 = vmatpush.bf16.msra.mxu0 %v2678
        %3884 = vmatpush.bf16.msra.mxu0 %v2662
        %3885 = vmatpush.bf16.msra.mxu0 %v2646
        %3886 = vmatpush.bf16.msra.mxu0 %v2630
        %3887 = vmatpush.bf16.msra.mxu0 %v2614
        %3888 = vmatpush.bf16.msra.mxu0 %v2598
        %3889 = vmatpush.bf16.msra.mxu0 %v2582
        %3890 = vmatpush.bf16.msra.mxu0 %v2566
        %3891 = vmatmul.bf16.gmra.mxu0 %v887
        %v3892 = vpop.f32.mrf.mxu0
        %v3893 = vadd.f32 %v3880, %v3892
        %v3894 = vpop.f32.mrf.mxu0
        %3895 = vdwg.mxu0
        %3896 = vmatpush.bf16.msra.mxu0 %v2806
        %3897 = vmatpush.bf16.msra.mxu0 %v2790
        %3898 = vmatpush.bf16.msra.mxu0 %v2774
        %3899 = vmatpush.bf16.msra.mxu0 %v2758
        %3900 = vmatpush.bf16.msra.mxu0 %v2742
        %3901 = vmatpush.bf16.msra.mxu0 %v2726
        %3902 = vmatpush.bf16.msra.mxu0 %v2710
        %3903 = vmatpush.bf16.msra.mxu0 %v2694
        %3904 = vmatmul.bf16.gmra.mxu0 %v888
        %v3905 = vpop.f32.mrf.mxu0
        %v3906 = vadd.f32 %v3893, %v3905
        %v3907 = vpop.f32.mrf.mxu0
        %3908 = vdwg.mxu0
        %3909 = vmatpush.bf16.msra.mxu0 %v2934
        %3910 = vmatpush.bf16.msra.mxu0 %v2918
        %3911 = vmatpush.bf16.msra.mxu0 %v2902
        %3912 = vmatpush.bf16.msra.mxu0 %v2886
        %3913 = vmatpush.bf16.msra.mxu0 %v2870
        %3914 = vmatpush.bf16.msra.mxu0 %v2854
        %3915 = vmatpush.bf16.msra.mxu0 %v2838
        %3916 = vmatpush.bf16.msra.mxu0 %v2822
        %3917 = vmatmul.bf16.gmra.mxu0 %v889
        %v3918 = vpop.f32.mrf.mxu0
        %v3919 = vadd.f32 %v3906, %v3918
        %v3920 = vpop.f32.mrf.mxu0
        %3921 = vdwg.mxu0
        %3922 = vmatpush.bf16.msra.mxu0 %v2551
        %3923 = vmatpush.bf16.msra.mxu0 %v2535
        %3924 = vmatpush.bf16.msra.mxu0 %v2519
        %3925 = vmatpush.bf16.msra.mxu0 %v2503
        %3926 = vmatpush.bf16.msra.mxu0 %v2487
        %3927 = vmatpush.bf16.msra.mxu0 %v2471
        %3928 = vmatpush.bf16.msra.mxu0 %v2455
        %3929 = vmatpush.bf16.msra.mxu0 %v2439
        %3930 = vmatmul.bf16.gmra.mxu0 %v886
        %v3931 = vpop.f32.mrf.mxu0
        %v3932 = vadd.f32 %v857, %v3931
        %v3933 = vpop.f32.mrf.mxu0
        %3934 = vdwg.mxu0
        %3935 = vmatpush.bf16.msra.mxu0 %v2679
        %3936 = vmatpush.bf16.msra.mxu0 %v2663
        %3937 = vmatpush.bf16.msra.mxu0 %v2647
        %3938 = vmatpush.bf16.msra.mxu0 %v2631
        %3939 = vmatpush.bf16.msra.mxu0 %v2615
        %3940 = vmatpush.bf16.msra.mxu0 %v2599
        %3941 = vmatpush.bf16.msra.mxu0 %v2583
        %3942 = vmatpush.bf16.msra.mxu0 %v2567
        %3943 = vmatmul.bf16.gmra.mxu0 %v887
        %v3944 = vpop.f32.mrf.mxu0
        %v3945 = vadd.f32 %v3932, %v3944
        %v3946 = vpop.f32.mrf.mxu0
        %3947 = vdwg.mxu0
        %3948 = vmatpush.bf16.msra.mxu0 %v2807
        %3949 = vmatpush.bf16.msra.mxu0 %v2791
        %3950 = vmatpush.bf16.msra.mxu0 %v2775
        %3951 = vmatpush.bf16.msra.mxu0 %v2759
        %3952 = vmatpush.bf16.msra.mxu0 %v2743
        %3953 = vmatpush.bf16.msra.mxu0 %v2727
        %3954 = vmatpush.bf16.msra.mxu0 %v2711
        %3955 = vmatpush.bf16.msra.mxu0 %v2695
        %3956 = vmatmul.bf16.gmra.mxu0 %v888
        %v3957 = vpop.f32.mrf.mxu0
        %v3958 = vadd.f32 %v3945, %v3957
        %v3959 = vpop.f32.mrf.mxu0
        %3960 = vdwg.mxu0
        %3961 = vmatpush.bf16.msra.mxu0 %v2935
        %3962 = vmatpush.bf16.msra.mxu0 %v2919
        %3963 = vmatpush.bf16.msra.mxu0 %v2903
        %3964 = vmatpush.bf16.msra.mxu0 %v2887
        %3965 = vmatpush.bf16.msra.mxu0 %v2871
        %3966 = vmatpush.bf16.msra.mxu0 %v2855
        %3967 = vmatpush.bf16.msra.mxu0 %v2839
        %3968 = vmatpush.bf16.msra.mxu0 %v2823
        %3969 = vmatmul.bf16.gmra.mxu0 %v889
        %v3970 = vpop.f32.mrf.mxu0
        %v3971 = vadd.f32 %v3958, %v3970
        %v3972 = vpop.f32.mrf.mxu0
        %3973 = vdwg.mxu0
        %3974 = vmatpush.bf16.msra.mxu0 %v2552
        %3975 = vmatpush.bf16.msra.mxu0 %v2536
        %3976 = vmatpush.bf16.msra.mxu0 %v2520
        %3977 = vmatpush.bf16.msra.mxu0 %v2504
        %3978 = vmatpush.bf16.msra.mxu0 %v2488
        %3979 = vmatpush.bf16.msra.mxu0 %v2472
        %3980 = vmatpush.bf16.msra.mxu0 %v2456
        %3981 = vmatpush.bf16.msra.mxu0 %v2440
        %3982 = vmatmul.bf16.gmra.mxu0 %v886
        %v3983 = vpop.f32.mrf.mxu0
        %v3984 = vadd.f32 %v858, %v3983
        %v3985 = vpop.f32.mrf.mxu0
        %3986 = vdwg.mxu0
        %3987 = vmatpush.bf16.msra.mxu0 %v2680
        %3988 = vmatpush.bf16.msra.mxu0 %v2664
        %3989 = vmatpush.bf16.msra.mxu0 %v2648
        %3990 = vmatpush.bf16.msra.mxu0 %v2632
        %3991 = vmatpush.bf16.msra.mxu0 %v2616
        %3992 = vmatpush.bf16.msra.mxu0 %v2600
        %3993 = vmatpush.bf16.msra.mxu0 %v2584
        %3994 = vmatpush.bf16.msra.mxu0 %v2568
        %3995 = vmatmul.bf16.gmra.mxu0 %v887
        %v3996 = vpop.f32.mrf.mxu0
        %v3997 = vadd.f32 %v3984, %v3996
        %v3998 = vpop.f32.mrf.mxu0
        %3999 = vdwg.mxu0
        %4000 = vmatpush.bf16.msra.mxu0 %v2808
        %4001 = vmatpush.bf16.msra.mxu0 %v2792
        %4002 = vmatpush.bf16.msra.mxu0 %v2776
        %4003 = vmatpush.bf16.msra.mxu0 %v2760
        %4004 = vmatpush.bf16.msra.mxu0 %v2744
        %4005 = vmatpush.bf16.msra.mxu0 %v2728
        %4006 = vmatpush.bf16.msra.mxu0 %v2712
        %4007 = vmatpush.bf16.msra.mxu0 %v2696
        %4008 = vmatmul.bf16.gmra.mxu0 %v888
        %v4009 = vpop.f32.mrf.mxu0
        %v4010 = vadd.f32 %v3997, %v4009
        %v4011 = vpop.f32.mrf.mxu0
        %4012 = vdwg.mxu0
        %4013 = vmatpush.bf16.msra.mxu0 %v2936
        %4014 = vmatpush.bf16.msra.mxu0 %v2920
        %4015 = vmatpush.bf16.msra.mxu0 %v2904
        %4016 = vmatpush.bf16.msra.mxu0 %v2888
        %4017 = vmatpush.bf16.msra.mxu0 %v2872
        %4018 = vmatpush.bf16.msra.mxu0 %v2856
        %4019 = vmatpush.bf16.msra.mxu0 %v2840
        %4020 = vmatpush.bf16.msra.mxu0 %v2824
        %4021 = vmatmul.bf16.gmra.mxu0 %v889
        %v4022 = vpop.f32.mrf.mxu0
        %v4023 = vadd.f32 %v4010, %v4022
        %v4024 = vpop.f32.mrf.mxu0
        %4025 = vdwg.mxu0
        %4026 = vmatpush.bf16.msra.mxu0 %v2553
        %4027 = vmatpush.bf16.msra.mxu0 %v2537
        %4028 = vmatpush.bf16.msra.mxu0 %v2521
        %4029 = vmatpush.bf16.msra.mxu0 %v2505
        %4030 = vmatpush.bf16.msra.mxu0 %v2489
        %4031 = vmatpush.bf16.msra.mxu0 %v2473
        %4032 = vmatpush.bf16.msra.mxu0 %v2457
        %4033 = vmatpush.bf16.msra.mxu0 %v2441
        %4034 = vmatmul.bf16.gmra.mxu0 %v886
        %v4035 = vpop.f32.mrf.mxu0
        %v4036 = vadd.f32 %v859, %v4035
        %v4037 = vpop.f32.mrf.mxu0
        %4038 = vdwg.mxu0
        %4039 = vmatpush.bf16.msra.mxu0 %v2681
        %4040 = vmatpush.bf16.msra.mxu0 %v2665
        %4041 = vmatpush.bf16.msra.mxu0 %v2649
        %4042 = vmatpush.bf16.msra.mxu0 %v2633
        %4043 = vmatpush.bf16.msra.mxu0 %v2617
        %4044 = vmatpush.bf16.msra.mxu0 %v2601
        %4045 = vmatpush.bf16.msra.mxu0 %v2585
        %4046 = vmatpush.bf16.msra.mxu0 %v2569
        %4047 = vmatmul.bf16.gmra.mxu0 %v887
        %v4048 = vpop.f32.mrf.mxu0
        %v4049 = vadd.f32 %v4036, %v4048
        %v4050 = vpop.f32.mrf.mxu0
        %4051 = vdwg.mxu0
        %4052 = vmatpush.bf16.msra.mxu0 %v2809
        %4053 = vmatpush.bf16.msra.mxu0 %v2793
        %4054 = vmatpush.bf16.msra.mxu0 %v2777
        %4055 = vmatpush.bf16.msra.mxu0 %v2761
        %4056 = vmatpush.bf16.msra.mxu0 %v2745
        %4057 = vmatpush.bf16.msra.mxu0 %v2729
        %4058 = vmatpush.bf16.msra.mxu0 %v2713
        %4059 = vmatpush.bf16.msra.mxu0 %v2697
        %4060 = vmatmul.bf16.gmra.mxu0 %v888
        %v4061 = vpop.f32.mrf.mxu0
        %v4062 = vadd.f32 %v4049, %v4061
        %v4063 = vpop.f32.mrf.mxu0
        %4064 = vdwg.mxu0
        %4065 = vmatpush.bf16.msra.mxu0 %v2937
        %4066 = vmatpush.bf16.msra.mxu0 %v2921
        %4067 = vmatpush.bf16.msra.mxu0 %v2905
        %4068 = vmatpush.bf16.msra.mxu0 %v2889
        %4069 = vmatpush.bf16.msra.mxu0 %v2873
        %4070 = vmatpush.bf16.msra.mxu0 %v2857
        %4071 = vmatpush.bf16.msra.mxu0 %v2841
        %4072 = vmatpush.bf16.msra.mxu0 %v2825
        %4073 = vmatmul.bf16.gmra.mxu0 %v889
        %v4074 = vpop.f32.mrf.mxu0
        %v4075 = vadd.f32 %v4062, %v4074
        %v4076 = vpop.f32.mrf.mxu0
        %4077 = vdwg.mxu0
        %4078 = vmatpush.bf16.msra.mxu0 %v2554
        %4079 = vmatpush.bf16.msra.mxu0 %v2538
        %4080 = vmatpush.bf16.msra.mxu0 %v2522
        %4081 = vmatpush.bf16.msra.mxu0 %v2506
        %4082 = vmatpush.bf16.msra.mxu0 %v2490
        %4083 = vmatpush.bf16.msra.mxu0 %v2474
        %4084 = vmatpush.bf16.msra.mxu0 %v2458
        %4085 = vmatpush.bf16.msra.mxu0 %v2442
        %4086 = vmatmul.bf16.gmra.mxu0 %v886
        %v4087 = vpop.f32.mrf.mxu0
        %v4088 = vadd.f32 %v860, %v4087
        %v4089 = vpop.f32.mrf.mxu0
        %4090 = vdwg.mxu0
        %4091 = vmatpush.bf16.msra.mxu0 %v2682
        %4092 = vmatpush.bf16.msra.mxu0 %v2666
        %4093 = vmatpush.bf16.msra.mxu0 %v2650
        %4094 = vmatpush.bf16.msra.mxu0 %v2634
        %4095 = vmatpush.bf16.msra.mxu0 %v2618
        %4096 = vmatpush.bf16.msra.mxu0 %v2602
        %4097 = vmatpush.bf16.msra.mxu0 %v2586
        %4098 = vmatpush.bf16.msra.mxu0 %v2570
        %4099 = vmatmul.bf16.gmra.mxu0 %v887
        %v4100 = vpop.f32.mrf.mxu0
        %v4101 = vadd.f32 %v4088, %v4100
        %v4102 = vpop.f32.mrf.mxu0
        %4103 = vdwg.mxu0
        %4104 = vmatpush.bf16.msra.mxu0 %v2810
        %4105 = vmatpush.bf16.msra.mxu0 %v2794
        %4106 = vmatpush.bf16.msra.mxu0 %v2778
        %4107 = vmatpush.bf16.msra.mxu0 %v2762
        %4108 = vmatpush.bf16.msra.mxu0 %v2746
        %4109 = vmatpush.bf16.msra.mxu0 %v2730
        %4110 = vmatpush.bf16.msra.mxu0 %v2714
        %4111 = vmatpush.bf16.msra.mxu0 %v2698
        %4112 = vmatmul.bf16.gmra.mxu0 %v888
        %v4113 = vpop.f32.mrf.mxu0
        %v4114 = vadd.f32 %v4101, %v4113
        %v4115 = vpop.f32.mrf.mxu0
        %4116 = vdwg.mxu0
        %4117 = vmatpush.bf16.msra.mxu0 %v2938
        %4118 = vmatpush.bf16.msra.mxu0 %v2922
        %4119 = vmatpush.bf16.msra.mxu0 %v2906
        %4120 = vmatpush.bf16.msra.mxu0 %v2890
        %4121 = vmatpush.bf16.msra.mxu0 %v2874
        %4122 = vmatpush.bf16.msra.mxu0 %v2858
        %4123 = vmatpush.bf16.msra.mxu0 %v2842
        %4124 = vmatpush.bf16.msra.mxu0 %v2826
        %4125 = vmatmul.bf16.gmra.mxu0 %v889
        %v4126 = vpop.f32.mrf.mxu0
        %v4127 = vadd.f32 %v4114, %v4126
        %v4128 = vpop.f32.mrf.mxu0
        %4129 = vdwg.mxu0
        %4130 = vmatpush.bf16.msra.mxu0 %v2555
        %4131 = vmatpush.bf16.msra.mxu0 %v2539
        %4132 = vmatpush.bf16.msra.mxu0 %v2523
        %4133 = vmatpush.bf16.msra.mxu0 %v2507
        %4134 = vmatpush.bf16.msra.mxu0 %v2491
        %4135 = vmatpush.bf16.msra.mxu0 %v2475
        %4136 = vmatpush.bf16.msra.mxu0 %v2459
        %4137 = vmatpush.bf16.msra.mxu0 %v2443
        %4138 = vmatmul.bf16.gmra.mxu0 %v886
        %v4139 = vpop.f32.mrf.mxu0
        %v4140 = vadd.f32 %v861, %v4139
        %v4141 = vpop.f32.mrf.mxu0
        %4142 = vdwg.mxu0
        %4143 = vmatpush.bf16.msra.mxu0 %v2683
        %4144 = vmatpush.bf16.msra.mxu0 %v2667
        %4145 = vmatpush.bf16.msra.mxu0 %v2651
        %4146 = vmatpush.bf16.msra.mxu0 %v2635
        %4147 = vmatpush.bf16.msra.mxu0 %v2619
        %4148 = vmatpush.bf16.msra.mxu0 %v2603
        %4149 = vmatpush.bf16.msra.mxu0 %v2587
        %4150 = vmatpush.bf16.msra.mxu0 %v2571
        %4151 = vmatmul.bf16.gmra.mxu0 %v887
        %v4152 = vpop.f32.mrf.mxu0
        %v4153 = vadd.f32 %v4140, %v4152
        %v4154 = vpop.f32.mrf.mxu0
        %4155 = vdwg.mxu0
        %4156 = vmatpush.bf16.msra.mxu0 %v2811
        %4157 = vmatpush.bf16.msra.mxu0 %v2795
        %4158 = vmatpush.bf16.msra.mxu0 %v2779
        %4159 = vmatpush.bf16.msra.mxu0 %v2763
        %4160 = vmatpush.bf16.msra.mxu0 %v2747
        %4161 = vmatpush.bf16.msra.mxu0 %v2731
        %4162 = vmatpush.bf16.msra.mxu0 %v2715
        %4163 = vmatpush.bf16.msra.mxu0 %v2699
        %4164 = vmatmul.bf16.gmra.mxu0 %v888
        %v4165 = vpop.f32.mrf.mxu0
        %v4166 = vadd.f32 %v4153, %v4165
        %v4167 = vpop.f32.mrf.mxu0
        %4168 = vdwg.mxu0
        %4169 = vmatpush.bf16.msra.mxu0 %v2939
        %4170 = vmatpush.bf16.msra.mxu0 %v2923
        %4171 = vmatpush.bf16.msra.mxu0 %v2907
        %4172 = vmatpush.bf16.msra.mxu0 %v2891
        %4173 = vmatpush.bf16.msra.mxu0 %v2875
        %4174 = vmatpush.bf16.msra.mxu0 %v2859
        %4175 = vmatpush.bf16.msra.mxu0 %v2843
        %4176 = vmatpush.bf16.msra.mxu0 %v2827
        %4177 = vmatmul.bf16.gmra.mxu0 %v889
        %v4178 = vpop.f32.mrf.mxu0
        %v4179 = vadd.f32 %v4166, %v4178
        %v4180 = vpop.f32.mrf.mxu0
        %4181 = vdwg.mxu0
        %4182 = vmatpush.bf16.msra.mxu0 %v2556
        %4183 = vmatpush.bf16.msra.mxu0 %v2540
        %4184 = vmatpush.bf16.msra.mxu0 %v2524
        %4185 = vmatpush.bf16.msra.mxu0 %v2508
        %4186 = vmatpush.bf16.msra.mxu0 %v2492
        %4187 = vmatpush.bf16.msra.mxu0 %v2476
        %4188 = vmatpush.bf16.msra.mxu0 %v2460
        %4189 = vmatpush.bf16.msra.mxu0 %v2444
        %4190 = vmatmul.bf16.gmra.mxu0 %v886
        %v4191 = vpop.f32.mrf.mxu0
        %v4192 = vadd.f32 %v862, %v4191
        %v4193 = vpop.f32.mrf.mxu0
        %4194 = vdwg.mxu0
        %4195 = vmatpush.bf16.msra.mxu0 %v2684
        %4196 = vmatpush.bf16.msra.mxu0 %v2668
        %4197 = vmatpush.bf16.msra.mxu0 %v2652
        %4198 = vmatpush.bf16.msra.mxu0 %v2636
        %4199 = vmatpush.bf16.msra.mxu0 %v2620
        %4200 = vmatpush.bf16.msra.mxu0 %v2604
        %4201 = vmatpush.bf16.msra.mxu0 %v2588
        %4202 = vmatpush.bf16.msra.mxu0 %v2572
        %4203 = vmatmul.bf16.gmra.mxu0 %v887
        %v4204 = vpop.f32.mrf.mxu0
        %v4205 = vadd.f32 %v4192, %v4204
        %v4206 = vpop.f32.mrf.mxu0
        %4207 = vdwg.mxu0
        %4208 = vmatpush.bf16.msra.mxu0 %v2812
        %4209 = vmatpush.bf16.msra.mxu0 %v2796
        %4210 = vmatpush.bf16.msra.mxu0 %v2780
        %4211 = vmatpush.bf16.msra.mxu0 %v2764
        %4212 = vmatpush.bf16.msra.mxu0 %v2748
        %4213 = vmatpush.bf16.msra.mxu0 %v2732
        %4214 = vmatpush.bf16.msra.mxu0 %v2716
        %4215 = vmatpush.bf16.msra.mxu0 %v2700
        %4216 = vmatmul.bf16.gmra.mxu0 %v888
        %v4217 = vpop.f32.mrf.mxu0
        %v4218 = vadd.f32 %v4205, %v4217
        %v4219 = vpop.f32.mrf.mxu0
        %4220 = vdwg.mxu0
        %4221 = vmatpush.bf16.msra.mxu0 %v2940
        %4222 = vmatpush.bf16.msra.mxu0 %v2924
        %4223 = vmatpush.bf16.msra.mxu0 %v2908
        %4224 = vmatpush.bf16.msra.mxu0 %v2892
        %4225 = vmatpush.bf16.msra.mxu0 %v2876
        %4226 = vmatpush.bf16.msra.mxu0 %v2860
        %4227 = vmatpush.bf16.msra.mxu0 %v2844
        %4228 = vmatpush.bf16.msra.mxu0 %v2828
        %4229 = vmatmul.bf16.gmra.mxu0 %v889
        %v4230 = vpop.f32.mrf.mxu0
        %v4231 = vadd.f32 %v4218, %v4230
        %v4232 = vpop.f32.mrf.mxu0
        %4233 = vdwg.mxu0
        %4234 = vmatpush.bf16.msra.mxu0 %v2557
        %4235 = vmatpush.bf16.msra.mxu0 %v2541
        %4236 = vmatpush.bf16.msra.mxu0 %v2525
        %4237 = vmatpush.bf16.msra.mxu0 %v2509
        %4238 = vmatpush.bf16.msra.mxu0 %v2493
        %4239 = vmatpush.bf16.msra.mxu0 %v2477
        %4240 = vmatpush.bf16.msra.mxu0 %v2461
        %4241 = vmatpush.bf16.msra.mxu0 %v2445
        %4242 = vmatmul.bf16.gmra.mxu0 %v886
        %v4243 = vpop.f32.mrf.mxu0
        %v4244 = vadd.f32 %v863, %v4243
        %v4245 = vpop.f32.mrf.mxu0
        %4246 = vdwg.mxu0
        %4247 = vmatpush.bf16.msra.mxu0 %v2685
        %4248 = vmatpush.bf16.msra.mxu0 %v2669
        %4249 = vmatpush.bf16.msra.mxu0 %v2653
        %4250 = vmatpush.bf16.msra.mxu0 %v2637
        %4251 = vmatpush.bf16.msra.mxu0 %v2621
        %4252 = vmatpush.bf16.msra.mxu0 %v2605
        %4253 = vmatpush.bf16.msra.mxu0 %v2589
        %4254 = vmatpush.bf16.msra.mxu0 %v2573
        %4255 = vmatmul.bf16.gmra.mxu0 %v887
        %v4256 = vpop.f32.mrf.mxu0
        %v4257 = vadd.f32 %v4244, %v4256
        %v4258 = vpop.f32.mrf.mxu0
        %4259 = vdwg.mxu0
        %4260 = vmatpush.bf16.msra.mxu0 %v2813
        %4261 = vmatpush.bf16.msra.mxu0 %v2797
        %4262 = vmatpush.bf16.msra.mxu0 %v2781
        %4263 = vmatpush.bf16.msra.mxu0 %v2765
        %4264 = vmatpush.bf16.msra.mxu0 %v2749
        %4265 = vmatpush.bf16.msra.mxu0 %v2733
        %4266 = vmatpush.bf16.msra.mxu0 %v2717
        %4267 = vmatpush.bf16.msra.mxu0 %v2701
        %4268 = vmatmul.bf16.gmra.mxu0 %v888
        %v4269 = vpop.f32.mrf.mxu0
        %v4270 = vadd.f32 %v4257, %v4269
        %v4271 = vpop.f32.mrf.mxu0
        %4272 = vdwg.mxu0
        %4273 = vmatpush.bf16.msra.mxu0 %v2941
        %4274 = vmatpush.bf16.msra.mxu0 %v2925
        %4275 = vmatpush.bf16.msra.mxu0 %v2909
        %4276 = vmatpush.bf16.msra.mxu0 %v2893
        %4277 = vmatpush.bf16.msra.mxu0 %v2877
        %4278 = vmatpush.bf16.msra.mxu0 %v2861
        %4279 = vmatpush.bf16.msra.mxu0 %v2845
        %4280 = vmatpush.bf16.msra.mxu0 %v2829
        %4281 = vmatmul.bf16.gmra.mxu0 %v889
        %v4282 = vpop.f32.mrf.mxu0
        %v4283 = vadd.f32 %v4270, %v4282
        %v4284 = vpop.f32.mrf.mxu0
        %4285 = vdwg.mxu0
        %v4286 = vrot.slane %v3503, 4
        %v4287 = vadd.f32 %v3503, %v4286
        %v4288 = vrot.slane %v4287, 2
        %v4289 = vadd.f32 %v4287, %v4288
        %v4290 = vrot.slane %v4289, 1
        %v4291 = vadd.f32 %v4289, %v4290
        %v4292 = vrot.slane %v3555, 4
        %v4293 = vadd.f32 %v3555, %v4292
        %v4294 = vrot.slane %v4293, 2
        %v4295 = vadd.f32 %v4293, %v4294
        %v4296 = vrot.slane %v4295, 1
        %v4297 = vadd.f32 %v4295, %v4296
        %v4298 = vrot.slane %v3607, 4
        %v4299 = vadd.f32 %v3607, %v4298
        %v4300 = vrot.slane %v4299, 2
        %v4301 = vadd.f32 %v4299, %v4300
        %v4302 = vrot.slane %v4301, 1
        %v4303 = vadd.f32 %v4301, %v4302
        %v4304 = vrot.slane %v3659, 4
        %v4305 = vadd.f32 %v3659, %v4304
        %v4306 = vrot.slane %v4305, 2
        %v4307 = vadd.f32 %v4305, %v4306
        %v4308 = vrot.slane %v4307, 1
        %v4309 = vadd.f32 %v4307, %v4308
        %v4310 = vrot.slane %v3711, 4
        %v4311 = vadd.f32 %v3711, %v4310
        %v4312 = vrot.slane %v4311, 2
        %v4313 = vadd.f32 %v4311, %v4312
        %v4314 = vrot.slane %v4313, 1
        %v4315 = vadd.f32 %v4313, %v4314
        %v4316 = vrot.slane %v3763, 4
        %v4317 = vadd.f32 %v3763, %v4316
        %v4318 = vrot.slane %v4317, 2
        %v4319 = vadd.f32 %v4317, %v4318
        %v4320 = vrot.slane %v4319, 1
        %v4321 = vadd.f32 %v4319, %v4320
        %v4322 = vrot.slane %v3815, 4
        %v4323 = vadd.f32 %v3815, %v4322
        %v4324 = vrot.slane %v4323, 2
        %v4325 = vadd.f32 %v4323, %v4324
        %v4326 = vrot.slane %v4325, 1
        %v4327 = vadd.f32 %v4325, %v4326
        %v4328 = vrot.slane %v3867, 4
        %v4329 = vadd.f32 %v3867, %v4328
        %v4330 = vrot.slane %v4329, 2
        %v4331 = vadd.f32 %v4329, %v4330
        %v4332 = vrot.slane %v4331, 1
        %v4333 = vadd.f32 %v4331, %v4332
        %v4334 = vrot.slane %v3919, 4
        %v4335 = vadd.f32 %v3919, %v4334
        %v4336 = vrot.slane %v4335, 2
        %v4337 = vadd.f32 %v4335, %v4336
        %v4338 = vrot.slane %v4337, 1
        %v4339 = vadd.f32 %v4337, %v4338
        %v4340 = vrot.slane %v3971, 4
        %v4341 = vadd.f32 %v3971, %v4340
        %v4342 = vrot.slane %v4341, 2
        %v4343 = vadd.f32 %v4341, %v4342
        %v4344 = vrot.slane %v4343, 1
        %v4345 = vadd.f32 %v4343, %v4344
        %v4346 = vrot.slane %v4023, 4
        %v4347 = vadd.f32 %v4023, %v4346
        %v4348 = vrot.slane %v4347, 2
        %v4349 = vadd.f32 %v4347, %v4348
        %v4350 = vrot.slane %v4349, 1
        %v4351 = vadd.f32 %v4349, %v4350
        %v4352 = vrot.slane %v4075, 4
        %v4353 = vadd.f32 %v4075, %v4352
        %v4354 = vrot.slane %v4353, 2
        %v4355 = vadd.f32 %v4353, %v4354
        %v4356 = vrot.slane %v4355, 1
        %v4357 = vadd.f32 %v4355, %v4356
        %v4358 = vrot.slane %v4127, 4
        %v4359 = vadd.f32 %v4127, %v4358
        %v4360 = vrot.slane %v4359, 2
        %v4361 = vadd.f32 %v4359, %v4360
        %v4362 = vrot.slane %v4361, 1
        %v4363 = vadd.f32 %v4361, %v4362
        %v4364 = vrot.slane %v4179, 4
        %v4365 = vadd.f32 %v4179, %v4364
        %v4366 = vrot.slane %v4365, 2
        %v4367 = vadd.f32 %v4365, %v4366
        %v4368 = vrot.slane %v4367, 1
        %v4369 = vadd.f32 %v4367, %v4368
        %v4370 = vrot.slane %v4231, 4
        %v4371 = vadd.f32 %v4231, %v4370
        %v4372 = vrot.slane %v4371, 2
        %v4373 = vadd.f32 %v4371, %v4372
        %v4374 = vrot.slane %v4373, 1
        %v4375 = vadd.f32 %v4373, %v4374
        %v4376 = vrot.slane %v4283, 4
        %v4377 = vadd.f32 %v4283, %v4376
        %v4378 = vrot.slane %v4377, 2
        %v4379 = vadd.f32 %v4377, %v4378
        %v4380 = vrot.slane %v4379, 1
        %v4381 = vadd.f32 %v4379, %v4380
        %v4382 = vrcp.pop 8.0
        %v4383 = vmul.f32 8.0, %v4382
        %v4384 = vsub.f32 1.0, %v4383
        %v4385 = vmul.f32 %v4382, %v4384
        %v4386 = vadd.f32 %v4382, %v4385
        %vm4387 = vweird.f32 %v4382
        %v4388 = vsel %vm4387, %v4382, %v4386
        %v4389 = vmul.f32 %v4291, %v4388
        %v4390 = vmul.f32 %v4297, %v4388
        %v4391 = vmul.f32 %v4303, %v4388
        %v4392 = vmul.f32 %v4309, %v4388
        %v4393 = vmul.f32 %v4315, %v4388
        %v4394 = vmul.f32 %v4321, %v4388
        %v4395 = vmul.f32 %v4327, %v4388
        %v4396 = vmul.f32 %v4333, %v4388
        %v4397 = vmul.f32 %v4339, %v4388
        %v4398 = vmul.f32 %v4345, %v4388
        %v4399 = vmul.f32 %v4351, %v4388
        %v4400 = vmul.f32 %v4357, %v4388
        %v4401 = vmul.f32 %v4363, %v4388
        %v4402 = vmul.f32 %v4369, %v4388
        %v4403 = vmul.f32 %v4375, %v4388
        %v4404 = vmul.f32 %v4381, %v4388
        %v4405 = vmul.f32 %v3503, %v3503
        %v4406 = vmul.f32 %v3555, %v3555
        %v4407 = vmul.f32 %v3607, %v3607
        %v4408 = vmul.f32 %v3659, %v3659
        %v4409 = vmul.f32 %v3711, %v3711
        %v4410 = vmul.f32 %v3763, %v3763
        %v4411 = vmul.f32 %v3815, %v3815
        %v4412 = vmul.f32 %v3867, %v3867
        %v4413 = vmul.f32 %v3919, %v3919
        %v4414 = vmul.f32 %v3971, %v3971
        %v4415 = vmul.f32 %v4023, %v4023
        %v4416 = vmul.f32 %v4075, %v4075
        %v4417 = vmul.f32 %v4127, %v4127
        %v4418 = vmul.f32 %v4179, %v4179
        %v4419 = vmul.f32 %v4231, %v4231
        %v4420 = vmul.f32 %v4283, %v4283
        %v4421 = vrot.slane %v4405, 4
        %v4422 = vadd.f32 %v4405, %v4421
        %v4423 = vrot.slane %v4422, 2
        %v4424 = vadd.f32 %v4422, %v4423
        %v4425 = vrot.slane %v4424, 1
        %v4426 = vadd.f32 %v4424, %v4425
        %v4427 = vrot.slane %v4406, 4
        %v4428 = vadd.f32 %v4406, %v4427
        %v4429 = vrot.slane %v4428, 2
        %v4430 = vadd.f32 %v4428, %v4429
        %v4431 = vrot.slane %v4430, 1
        %v4432 = vadd.f32 %v4430, %v4431
        %v4433 = vrot.slane %v4407, 4
        %v4434 = vadd.f32 %v4407, %v4433
        %v4435 = vrot.slane %v4434, 2
        %v4436 = vadd.f32 %v4434, %v4435
        %v4437 = vrot.slane %v4436, 1
        %v4438 = vadd.f32 %v4436, %v4437
        %v4439 = vrot.slane %v4408, 4
        %v4440 = vadd.f32 %v4408, %v4439
        %v4441 = vrot.slane %v4440, 2
        %v4442 = vadd.f32 %v4440, %v4441
        %v4443 = vrot.slane %v4442, 1
        %v4444 = vadd.f32 %v4442, %v4443
        %v4445 = vrot.slane %v4409, 4
        %v4446 = vadd.f32 %v4409, %v4445
        %v4447 = vrot.slane %v4446, 2
        %v4448 = vadd.f32 %v4446, %v4447
        %v4449 = vrot.slane %v4448, 1
        %v4450 = vadd.f32 %v4448, %v4449
        %v4451 = vrot.slane %v4410, 4
        %v4452 = vadd.f32 %v4410, %v4451
        %v4453 = vrot.slane %v4452, 2
        %v4454 = vadd.f32 %v4452, %v4453
        %v4455 = vrot.slane %v4454, 1
        %v4456 = vadd.f32 %v4454, %v4455
        %v4457 = vrot.slane %v4411, 4
        %v4458 = vadd.f32 %v4411, %v4457
        %v4459 = vrot.slane %v4458, 2
        %v4460 = vadd.f32 %v4458, %v4459
        %v4461 = vrot.slane %v4460, 1
        %v4462 = vadd.f32 %v4460, %v4461
        %v4463 = vrot.slane %v4412, 4
        %v4464 = vadd.f32 %v4412, %v4463
        %v4465 = vrot.slane %v4464, 2
        %v4466 = vadd.f32 %v4464, %v4465
        %v4467 = vrot.slane %v4466, 1
        %v4468 = vadd.f32 %v4466, %v4467
        %v4469 = vrot.slane %v4413, 4
        %v4470 = vadd.f32 %v4413, %v4469
        %v4471 = vrot.slane %v4470, 2
        %v4472 = vadd.f32 %v4470, %v4471
        %v4473 = vrot.slane %v4472, 1
        %v4474 = vadd.f32 %v4472, %v4473
        %v4475 = vrot.slane %v4414, 4
        %v4476 = vadd.f32 %v4414, %v4475
        %v4477 = vrot.slane %v4476, 2
        %v4478 = vadd.f32 %v4476, %v4477
        %v4479 = vrot.slane %v4478, 1
        %v4480 = vadd.f32 %v4478, %v4479
        %v4481 = vrot.slane %v4415, 4
        %v4482 = vadd.f32 %v4415, %v4481
        %v4483 = vrot.slane %v4482, 2
        %v4484 = vadd.f32 %v4482, %v4483
        %v4485 = vrot.slane %v4484, 1
        %v4486 = vadd.f32 %v4484, %v4485
        %v4487 = vrot.slane %v4416, 4
        %v4488 = vadd.f32 %v4416, %v4487
        %v4489 = vrot.slane %v4488, 2
        %v4490 = vadd.f32 %v4488, %v4489
        %v4491 = vrot.slane %v4490, 1
        %v4492 = vadd.f32 %v4490, %v4491
        %v4493 = vrot.slane %v4417, 4
        %v4494 = vadd.f32 %v4417, %v4493
        %v4495 = vrot.slane %v4494, 2
        %v4496 = vadd.f32 %v4494, %v4495
        %v4497 = vrot.slane %v4496, 1
        %v4498 = vadd.f32 %v4496, %v4497
        %v4499 = vrot.slane %v4418, 4
        %v4500 = vadd.f32 %v4418, %v4499
        %v4501 = vrot.slane %v4500, 2
        %v4502 = vadd.f32 %v4500, %v4501
        %v4503 = vrot.slane %v4502, 1
        %v4504 = vadd.f32 %v4502, %v4503
        %v4505 = vrot.slane %v4419, 4
        %v4506 = vadd.f32 %v4419, %v4505
        %v4507 = vrot.slane %v4506, 2
        %v4508 = vadd.f32 %v4506, %v4507
        %v4509 = vrot.slane %v4508, 1
        %v4510 = vadd.f32 %v4508, %v4509
        %v4511 = vrot.slane %v4420, 4
        %v4512 = vadd.f32 %v4420, %v4511
        %v4513 = vrot.slane %v4512, 2
        %v4514 = vadd.f32 %v4512, %v4513
        %v4515 = vrot.slane %v4514, 1
        %v4516 = vadd.f32 %v4514, %v4515
        %v4517 = vmul.f32 %v4426, %v4388
        %v4518 = vmul.f32 %v4432, %v4388
        %v4519 = vmul.f32 %v4438, %v4388
        %v4520 = vmul.f32 %v4444, %v4388
        %v4521 = vmul.f32 %v4450, %v4388
        %v4522 = vmul.f32 %v4456, %v4388
        %v4523 = vmul.f32 %v4462, %v4388
        %v4524 = vmul.f32 %v4468, %v4388
        %v4525 = vmul.f32 %v4474, %v4388
        %v4526 = vmul.f32 %v4480, %v4388
        %v4527 = vmul.f32 %v4486, %v4388
        %v4528 = vmul.f32 %v4492, %v4388
        %v4529 = vmul.f32 %v4498, %v4388
        %v4530 = vmul.f32 %v4504, %v4388
        %v4531 = vmul.f32 %v4510, %v4388
        %v4532 = vmul.f32 %v4516, %v4388
        %v4533 = vmul.f32 %v4389, %v4389
        %v4534 = vmul.f32 %v4390, %v4390
        %v4535 = vmul.f32 %v4391, %v4391
        %v4536 = vmul.f32 %v4392, %v4392
        %v4537 = vmul.f32 %v4393, %v4393
        %v4538 = vmul.f32 %v4394, %v4394
        %v4539 = vmul.f32 %v4395, %v4395
        %v4540 = vmul.f32 %v4396, %v4396
        %v4541 = vmul.f32 %v4397, %v4397
        %v4542 = vmul.f32 %v4398, %v4398
        %v4543 = vmul.f32 %v4399, %v4399
        %v4544 = vmul.f32 %v4400, %v4400
        %v4545 = vmul.f32 %v4401, %v4401
        %v4546 = vmul.f32 %v4402, %v4402
        %v4547 = vmul.f32 %v4403, %v4403
        %v4548 = vmul.f32 %v4404, %v4404
        %v4549 = vsub.f32 %v4517, %v4533
        %v4550 = vsub.f32 %v4518, %v4534
        %v4551 = vsub.f32 %v4519, %v4535
        %v4552 = vsub.f32 %v4520, %v4536
        %v4553 = vsub.f32 %v4521, %v4537
        %v4554 = vsub.f32 %v4522, %v4538
        %v4555 = vsub.f32 %v4523, %v4539
        %v4556 = vsub.f32 %v4524, %v4540
        %v4557 = vsub.f32 %v4525, %v4541
        %v4558 = vsub.f32 %v4526, %v4542
        %v4559 = vsub.f32 %v4527, %v4543
        %v4560 = vsub.f32 %v4528, %v4544
        %v4561 = vsub.f32 %v4529, %v4545
        %v4562 = vsub.f32 %v4530, %v4546
        %v4563 = vsub.f32 %v4531, %v4547
        %v4564 = vsub.f32 %v4532, %v4548
        %s4565 = scalar_lea.vmem %s279, 1 [#allocation5]
        %v4566 = vld [vmem:[%s4565] ss:$4 sm:$0xff]
        %s4567 = scalar_lea.vmem %s279, 33 [#allocation5]
        %v4568 = vld [vmem:[%s4567] ss:$4 sm:$0xff]
        %v4569 = vadd.f32 %v4549, 1e-05
        %v4570 = vadd.f32 %v4550, 1e-05
        %v4571 = vadd.f32 %v4551, 1e-05
        %v4572 = vadd.f32 %v4552, 1e-05
        %v4573 = vadd.f32 %v4553, 1e-05
        %v4574 = vadd.f32 %v4554, 1e-05
        %v4575 = vadd.f32 %v4555, 1e-05
        %v4576 = vadd.f32 %v4556, 1e-05
        %v4577 = vadd.f32 %v4557, 1e-05
        %v4578 = vadd.f32 %v4558, 1e-05
        %v4579 = vadd.f32 %v4559, 1e-05
        %v4580 = vadd.f32 %v4560, 1e-05
        %v4581 = vadd.f32 %v4561, 1e-05
        %v4582 = vadd.f32 %v4562, 1e-05
        %v4583 = vadd.f32 %v4563, 1e-05
        %v4584 = vadd.f32 %v4564, 1e-05
        %v4585 = vrsqrt.pop %v4569
        %v4586 = vmul.f32 %v4585, %v4569
        %v4587 = vmul.f32 %v4586, %v4585
        %v4588 = vmul.f32 0.5, %v4587
        %v4589 = vsub.f32 1.5, %v4588
        %v4590 = vmul.f32 %v4585, %v4589
        %vm4591 = vweird.f32 %v4569
        %vm4592 = vweird.f32 %v4585
        %vm4593 = vmor %vm4591, %vm4592
        %v4594 = vsel %vm4593, %v4585, %v4590
        %v4595 = vrsqrt.pop %v4570
        %v4596 = vmul.f32 %v4595, %v4570
        %v4597 = vmul.f32 %v4596, %v4595
        %v4598 = vmul.f32 0.5, %v4597
        %v4599 = vsub.f32 1.5, %v4598
        %v4600 = vmul.f32 %v4595, %v4599
        %vm4601 = vweird.f32 %v4570
        %vm4602 = vweird.f32 %v4595
        %vm4603 = vmor %vm4601, %vm4602
        %v4604 = vsel %vm4603, %v4595, %v4600
        %v4605 = vrsqrt.pop %v4571
        %v4606 = vmul.f32 %v4605, %v4571
        %v4607 = vmul.f32 %v4606, %v4605
        %v4608 = vmul.f32 0.5, %v4607
        %v4609 = vsub.f32 1.5, %v4608
        %v4610 = vmul.f32 %v4605, %v4609
        %vm4611 = vweird.f32 %v4571
        %vm4612 = vweird.f32 %v4605
        %vm4613 = vmor %vm4611, %vm4612
        %v4614 = vsel %vm4613, %v4605, %v4610
        %v4615 = vrsqrt.pop %v4572
        %v4616 = vmul.f32 %v4615, %v4572
        %v4617 = vmul.f32 %v4616, %v4615
        %v4618 = vmul.f32 0.5, %v4617
        %v4619 = vsub.f32 1.5, %v4618
        %v4620 = vmul.f32 %v4615, %v4619
        %vm4621 = vweird.f32 %v4572
        %vm4622 = vweird.f32 %v4615
        %vm4623 = vmor %vm4621, %vm4622
        %v4624 = vsel %vm4623, %v4615, %v4620
        %v4625 = vrsqrt.pop %v4573
        %v4626 = vmul.f32 %v4625, %v4573
        %v4627 = vmul.f32 %v4626, %v4625
        %v4628 = vmul.f32 0.5, %v4627
        %v4629 = vsub.f32 1.5, %v4628
        %v4630 = vmul.f32 %v4625, %v4629
        %vm4631 = vweird.f32 %v4573
        %vm4632 = vweird.f32 %v4625
        %vm4633 = vmor %vm4631, %vm4632
        %v4634 = vsel %vm4633, %v4625, %v4630
        %v4635 = vrsqrt.pop %v4574
        %v4636 = vmul.f32 %v4635, %v4574
        %v4637 = vmul.f32 %v4636, %v4635
        %v4638 = vmul.f32 0.5, %v4637
        %v4639 = vsub.f32 1.5, %v4638
        %v4640 = vmul.f32 %v4635, %v4639
        %vm4641 = vweird.f32 %v4574
        %vm4642 = vweird.f32 %v4635
        %vm4643 = vmor %vm4641, %vm4642
        %v4644 = vsel %vm4643, %v4635, %v4640
        %v4645 = vrsqrt.pop %v4575
        %v4646 = vmul.f32 %v4645, %v4575
        %v4647 = vmul.f32 %v4646, %v4645
        %v4648 = vmul.f32 0.5, %v4647
        %v4649 = vsub.f32 1.5, %v4648
        %v4650 = vmul.f32 %v4645, %v4649
        %vm4651 = vweird.f32 %v4575
        %vm4652 = vweird.f32 %v4645
        %vm4653 = vmor %vm4651, %vm4652
        %v4654 = vsel %vm4653, %v4645, %v4650
        %v4655 = vrsqrt.pop %v4576
        %v4656 = vmul.f32 %v4655, %v4576
        %v4657 = vmul.f32 %v4656, %v4655
        %v4658 = vmul.f32 0.5, %v4657
        %v4659 = vsub.f32 1.5, %v4658
        %v4660 = vmul.f32 %v4655, %v4659
        %vm4661 = vweird.f32 %v4576
        %vm4662 = vweird.f32 %v4655
        %vm4663 = vmor %vm4661, %vm4662
        %v4664 = vsel %vm4663, %v4655, %v4660
        %v4665 = vrsqrt.pop %v4577
        %v4666 = vmul.f32 %v4665, %v4577
        %v4667 = vmul.f32 %v4666, %v4665
        %v4668 = vmul.f32 0.5, %v4667
        %v4669 = vsub.f32 1.5, %v4668
        %v4670 = vmul.f32 %v4665, %v4669
        %vm4671 = vweird.f32 %v4577
        %vm4672 = vweird.f32 %v4665
        %vm4673 = vmor %vm4671, %vm4672
        %v4674 = vsel %vm4673, %v4665, %v4670
        %v4675 = vrsqrt.pop %v4578
        %v4676 = vmul.f32 %v4675, %v4578
        %v4677 = vmul.f32 %v4676, %v4675
        %v4678 = vmul.f32 0.5, %v4677
        %v4679 = vsub.f32 1.5, %v4678
        %v4680 = vmul.f32 %v4675, %v4679
        %vm4681 = vweird.f32 %v4578
        %vm4682 = vweird.f32 %v4675
        %vm4683 = vmor %vm4681, %vm4682
        %v4684 = vsel %vm4683, %v4675, %v4680
        %v4685 = vrsqrt.pop %v4579
        %v4686 = vmul.f32 %v4685, %v4579
        %v4687 = vmul.f32 %v4686, %v4685
        %v4688 = vmul.f32 0.5, %v4687
        %v4689 = vsub.f32 1.5, %v4688
        %v4690 = vmul.f32 %v4685, %v4689
        %vm4691 = vweird.f32 %v4579
        %vm4692 = vweird.f32 %v4685
        %vm4693 = vmor %vm4691, %vm4692
        %v4694 = vsel %vm4693, %v4685, %v4690
        %v4695 = vrsqrt.pop %v4580
        %v4696 = vmul.f32 %v4695, %v4580
        %v4697 = vmul.f32 %v4696, %v4695
        %v4698 = vmul.f32 0.5, %v4697
        %v4699 = vsub.f32 1.5, %v4698
        %v4700 = vmul.f32 %v4695, %v4699
        %vm4701 = vweird.f32 %v4580
        %vm4702 = vweird.f32 %v4695
        %vm4703 = vmor %vm4701, %vm4702
        %v4704 = vsel %vm4703, %v4695, %v4700
        %v4705 = vrsqrt.pop %v4581
        %v4706 = vmul.f32 %v4705, %v4581
        %v4707 = vmul.f32 %v4706, %v4705
        %v4708 = vmul.f32 0.5, %v4707
        %v4709 = vsub.f32 1.5, %v4708
        %v4710 = vmul.f32 %v4705, %v4709
        %vm4711 = vweird.f32 %v4581
        %vm4712 = vweird.f32 %v4705
        %vm4713 = vmor %vm4711, %vm4712
        %v4714 = vsel %vm4713, %v4705, %v4710
        %v4715 = vrsqrt.pop %v4582
        %v4716 = vmul.f32 %v4715, %v4582
        %v4717 = vmul.f32 %v4716, %v4715
        %v4718 = vmul.f32 0.5, %v4717
        %v4719 = vsub.f32 1.5, %v4718
        %v4720 = vmul.f32 %v4715, %v4719
        %vm4721 = vweird.f32 %v4582
        %vm4722 = vweird.f32 %v4715
        %vm4723 = vmor %vm4721, %vm4722
        %v4724 = vsel %vm4723, %v4715, %v4720
        %v4725 = vrsqrt.pop %v4583
        %v4726 = vmul.f32 %v4725, %v4583
        %v4727 = vmul.f32 %v4726, %v4725
        %v4728 = vmul.f32 0.5, %v4727
        %v4729 = vsub.f32 1.5, %v4728
        %v4730 = vmul.f32 %v4725, %v4729
        %vm4731 = vweird.f32 %v4583
        %vm4732 = vweird.f32 %v4725
        %vm4733 = vmor %vm4731, %vm4732
        %v4734 = vsel %vm4733, %v4725, %v4730
        %v4735 = vrsqrt.pop %v4584
        %v4736 = vmul.f32 %v4735, %v4584
        %v4737 = vmul.f32 %v4736, %v4735
        %v4738 = vmul.f32 0.5, %v4737
        %v4739 = vsub.f32 1.5, %v4738
        %v4740 = vmul.f32 %v4735, %v4739
        %vm4741 = vweird.f32 %v4584
        %vm4742 = vweird.f32 %v4735
        %vm4743 = vmor %vm4741, %vm4742
        %v4744 = vsel %vm4743, %v4735, %v4740
        %v4761 = vrot.slane %v4604, 7
        %v4762 = vrot.slane %v4614, 6
        %v4763 = vrot.slane %v4624, 5
        %v4764 = vrot.slane %v4634, 4
        %v4765 = vrot.slane %v4644, 3
        %v4766 = vrot.slane %v4654, 2
        %v4767 = vrot.slane %v4664, 1
        %v4768 = vrot.slane %v4684, 7
        %v4769 = vrot.slane %v4694, 6
        %v4770 = vrot.slane %v4704, 5
        %v4771 = vrot.slane %v4714, 4
        %v4772 = vrot.slane %v4724, 3
        %v4773 = vrot.slane %v4734, 2
        %v4774 = vrot.slane %v4744, 1
        %vm4775 = vcmask 1040384
        %v4776 = vsel %vm4775, %v4594, %v4761
        %vm4777 = vcmask 1042434
        %v4778 = vsel %vm4777, %v4762, %v4763
        %vm4779 = vcmask 1041408
        %v4780 = vsel %vm4779, %v4776, %v4778
        %vm4781 = vcmask 1044484
        %v4782 = vsel %vm4781, %v4764, %v4765
        %vm4783 = vcmask 1046534
        %v4784 = vsel %vm4783, %v4766, %v4767
        %vm4785 = vcmask 1045508
        %v4786 = vsel %vm4785, %v4782, %v4784
        %vm4787 = vcmask 1043456
        %v4788 = vsel %vm4787, %v4780, %v4786
        %v4789 = vsel %vm4775, %v4674, %v4768
        %v4790 = vsel %vm4777, %v4769, %v4770
        %v4791 = vsel %vm4779, %v4789, %v4790
        %v4792 = vsel %vm4781, %v4771, %v4772
        %v4793 = vsel %vm4783, %v4773, %v4774
        %v4794 = vsel %vm4785, %v4792, %v4793
        %v4795 = vsel %vm4787, %v4791, %v4794
        %v4798 = vmul.f32 %v4566, %v4788
        %v4799 = vmul.f32 %v4568, %v4795
        %s4800 = scalar_lea.vmem %s279, 2 [#allocation5]
        %v4801 = vld [vmem:[%s4800] ss:$4 sm:$0xff]
        %s4802 = scalar_lea.vmem %s279, 34 [#allocation5]
        %v4803 = vld [vmem:[%s4802] ss:$4 sm:$0xff]
        %v4806 = vperm.slane %v4798, 0
        %v4807 = vperm.slane %v4798, 1
        %v4808 = vperm.slane %v4798, 2
        %v4809 = vperm.slane %v4798, 3
        %v4810 = vperm.slane %v4798, 4
        %v4811 = vperm.slane %v4798, 5
        %v4812 = vperm.slane %v4798, 6
        %v4813 = vperm.slane %v4798, 7
        %v4814 = vperm.slane %v4799, 0
        %v4815 = vperm.slane %v4799, 1
        %v4816 = vperm.slane %v4799, 2
        %v4817 = vperm.slane %v4799, 3
        %v4818 = vperm.slane %v4799, 4
        %v4819 = vperm.slane %v4799, 5
        %v4820 = vperm.slane %v4799, 6
        %v4821 = vperm.slane %v4799, 7
        %v4838 = vmul.f32 %v4389, %v4806
        %v4839 = vmul.f32 %v4390, %v4807
        %v4840 = vmul.f32 %v4391, %v4808
        %v4841 = vmul.f32 %v4392, %v4809
        %v4842 = vmul.f32 %v4393, %v4810
        %v4843 = vmul.f32 %v4394, %v4811
        %v4844 = vmul.f32 %v4395, %v4812
        %v4845 = vmul.f32 %v4396, %v4813
        %v4846 = vmul.f32 %v4397, %v4814
        %v4847 = vmul.f32 %v4398, %v4815
        %v4848 = vmul.f32 %v4399, %v4816
        %v4849 = vmul.f32 %v4400, %v4817
        %v4850 = vmul.f32 %v4401, %v4818
        %v4851 = vmul.f32 %v4402, %v4819
        %v4852 = vmul.f32 %v4403, %v4820
        %v4853 = vmul.f32 %v4404, %v4821
        %v4870 = vrot.slane %v4839, 7
        %v4871 = vrot.slane %v4840, 6
        %v4872 = vrot.slane %v4841, 5
        %v4873 = vrot.slane %v4842, 4
        %v4874 = vrot.slane %v4843, 3
        %v4875 = vrot.slane %v4844, 2
        %v4876 = vrot.slane %v4845, 1
        %v4877 = vrot.slane %v4847, 7
        %v4878 = vrot.slane %v4848, 6
        %v4879 = vrot.slane %v4849, 5
        %v4880 = vrot.slane %v4850, 4
        %v4881 = vrot.slane %v4851, 3
        %v4882 = vrot.slane %v4852, 2
        %v4883 = vrot.slane %v4853, 1
        %v4884 = vsel %vm4775, %v4838, %v4870
        %v4885 = vsel %vm4777, %v4871, %v4872
        %v4886 = vsel %vm4779, %v4884, %v4885
        %v4887 = vsel %vm4781, %v4873, %v4874
        %v4888 = vsel %vm4783, %v4875, %v4876
        %v4889 = vsel %vm4785, %v4887, %v4888
        %v4890 = vsel %vm4787, %v4886, %v4889
        %v4891 = vsel %vm4775, %v4846, %v4877
        %v4892 = vsel %vm4777, %v4878, %v4879
        %v4893 = vsel %vm4779, %v4891, %v4892
        %v4894 = vsel %vm4781, %v4880, %v4881
        %v4895 = vsel %vm4783, %v4882, %v4883
        %v4896 = vsel %vm4785, %v4894, %v4895
        %v4897 = vsel %vm4787, %v4893, %v4896
        %v4900 = vsub.f32 %v4801, %v4890
        %v4901 = vsub.f32 %v4803, %v4897
        %v4902 = vmul.f32 %v3503, %v4806
        %v4903 = vmul.f32 %v3555, %v4807
        %v4904 = vmul.f32 %v3607, %v4808
        %v4905 = vmul.f32 %v3659, %v4809
        %v4906 = vmul.f32 %v3711, %v4810
        %v4907 = vmul.f32 %v3763, %v4811
        %v4908 = vmul.f32 %v3815, %v4812
        %v4909 = vmul.f32 %v3867, %v4813
        %v4910 = vmul.f32 %v3919, %v4814
        %v4911 = vmul.f32 %v3971, %v4815
        %v4912 = vmul.f32 %v4023, %v4816
        %v4913 = vmul.f32 %v4075, %v4817
        %v4914 = vmul.f32 %v4127, %v4818
        %v4915 = vmul.f32 %v4179, %v4819
        %v4916 = vmul.f32 %v4231, %v4820
        %v4917 = vmul.f32 %v4283, %v4821
        %v4920 = vperm.slane %v4900, 0
        %v4921 = vperm.slane %v4900, 1
        %v4922 = vperm.slane %v4900, 2
        %v4923 = vperm.slane %v4900, 3
        %v4924 = vperm.slane %v4900, 4
        %v4925 = vperm.slane %v4900, 5
        %v4926 = vperm.slane %v4900, 6
        %v4927 = vperm.slane %v4900, 7
        %v4928 = vperm.slane %v4901, 0
        %v4929 = vperm.slane %v4901, 1
        %v4930 = vperm.slane %v4901, 2
        %v4931 = vperm.slane %v4901, 3
        %v4932 = vperm.slane %v4901, 4
        %v4933 = vperm.slane %v4901, 5
        %v4934 = vperm.slane %v4901, 6
        %v4935 = vperm.slane %v4901, 7
        %v4952 = vadd.f32 %v4902, %v4920
        %v4953 = vadd.f32 %v4903, %v4921
        %v4954 = vadd.f32 %v4904, %v4922
        %v4955 = vadd.f32 %v4905, %v4923
        %v4956 = vadd.f32 %v4906, %v4924
        %v4957 = vadd.f32 %v4907, %v4925
        %v4958 = vadd.f32 %v4908, %v4926
        %v4959 = vadd.f32 %v4909, %v4927
        %v4960 = vadd.f32 %v4910, %v4928
        %v4961 = vadd.f32 %v4911, %v4929
        %v4962 = vadd.f32 %v4912, %v4930
        %v4963 = vadd.f32 %v4913, %v4931
        %v4964 = vadd.f32 %v4914, %v4932
        %v4965 = vadd.f32 %v4915, %v4933
        %v4966 = vadd.f32 %v4916, %v4934
        %v4967 = vadd.f32 %v4917, %v4935
        %v4968 = vmax.f32 %v4952, 0.0
        %v4969 = vmax.f32 %v4953, 0.0
        %v4970 = vmax.f32 %v4954, 0.0
        %v4971 = vmax.f32 %v4955, 0.0
        %v4972 = vmax.f32 %v4956, 0.0
        %v4973 = vmax.f32 %v4957, 0.0
        %v4974 = vmax.f32 %v4958, 0.0
        %v4975 = vmax.f32 %v4959, 0.0
        %v4976 = vmax.f32 %v4960, 0.0
        %v4977 = vmax.f32 %v4961, 0.0
        %v4978 = vmax.f32 %v4962, 0.0
        %v4979 = vmax.f32 %v4963, 0.0
        %v4980 = vmax.f32 %v4964, 0.0
        %v4981 = vmax.f32 %v4965, 0.0
        %v4982 = vmax.f32 %v4966, 0.0
        %v4983 = vmax.f32 %v4967, 0.0
        %p4984 = scmp.eq.s32.totalorder %s24, 0
        // Predicated region
        $region57: #{manifold_embedding.1} parent=39 // pred_check
          %p4985 = pneg %p4984
        $region58: #{manifold_embedding.1} parent=39 // pred_check_branch
          %4987 = sbr.rel (%p4985) target = $region60
        $region59: #{manifold_embedding.1} parent=39 // pred_region
          %4988 = vst [vmem:[#allocation10] sm:$0xff] 0.0
        $region60: #{manifold_embedding.1} parent=39 // pred_fallthru
          _
        %v4989 = vld [vmem:[#allocation10] sm:$0xff]
        %v4990 = vpack.c.bf16 %v4968, %v4968
        %v4991 = vpack.c.bf16 %v4969, %v4969
        %v4992 = vpack.c.bf16 %v4970, %v4970
        %v4993 = vpack.c.bf16 %v4971, %v4971
        %v4994 = vpack.c.bf16 %v4972, %v4972
        %v4995 = vpack.c.bf16 %v4973, %v4973
        %v4996 = vpack.c.bf16 %v4974, %v4974
        %v4997 = vpack.c.bf16 %v4975, %v4975
        %v4998 = vpack.c.bf16 %v4976, %v4976
        %v4999 = vpack.c.bf16 %v4977, %v4977
        %v5000 = vpack.c.bf16 %v4978, %v4978
        %v5001 = vpack.c.bf16 %v4979, %v4979
        %v5002 = vpack.c.bf16 %v4980, %v4980
        %v5003 = vpack.c.bf16 %v4981, %v4981
        %v5004 = vpack.c.bf16 %v4982, %v4982
        %v5005 = vpack.c.bf16 %v4983, %v4983
        %v5006 = vld [vmem:[%s289] sm:$0xf]
        %v5007 = vld [vmem:[%s289 + $0x4] sm:$0xf]
        %v5008 = vld [vmem:[%s289 + $0x8] sm:$0xf]
        %v5009 = vld [vmem:[%s289 + $0xc] sm:$0xf]
        %v5010 = vld [vmem:[%s289 + $0x10] sm:$0xf]
        %v5011 = vld [vmem:[%s289 + $0x14] sm:$0xf]
        %v5012 = vld [vmem:[%s289 + $0x18] sm:$0xf]
        %v5013 = vld [vmem:[%s289 + $0x1c] sm:$0xf]
        %v5014 = vld [vmem:[%s289 + $0x20] sm:$0xf]
        %v5015 = vld [vmem:[%s289 + $0x24] sm:$0xf]
        %v5016 = vld [vmem:[%s289 + $0x28] sm:$0xf]
        %v5017 = vld [vmem:[%s289 + $0x2c] sm:$0xf]
        %v5018 = vld [vmem:[%s289 + $0x30] sm:$0xf]
        %v5019 = vld [vmem:[%s289 + $0x34] sm:$0xf]
        %v5020 = vld [vmem:[%s289 + $0x38] sm:$0xf]
        %v5021 = vld [vmem:[%s289 + $0x3c] sm:$0xf]
        %v5022 = vld [vmem:[%s289 + $0x40] sm:$0xf]
        %v5023 = vld [vmem:[%s289 + $0x44] sm:$0xf]
        %v5024 = vld [vmem:[%s289 + $0x48] sm:$0xf]
        %v5025 = vld [vmem:[%s289 + $0x4c] sm:$0xf]
        %v5026 = vld [vmem:[%s289 + $0x50] sm:$0xf]
        %v5027 = vld [vmem:[%s289 + $0x54] sm:$0xf]
        %v5028 = vld [vmem:[%s289 + $0x58] sm:$0xf]
        %v5029 = vld [vmem:[%s289 + $0x5c] sm:$0xf]
        %v5030 = vld [vmem:[%s289 + $0x60] sm:$0xf]
        %v5031 = vld [vmem:[%s289 + $0x64] sm:$0xf]
        %v5032 = vld [vmem:[%s289 + $0x68] sm:$0xf]
        %v5033 = vld [vmem:[%s289 + $0x6c] sm:$0xf]
        %v5034 = vld [vmem:[%s289 + $0x70] sm:$0xf]
        %v5035 = vld [vmem:[%s289 + $0x74] sm:$0xf]
        %v5036 = vld [vmem:[%s289 + $0x78] sm:$0xf]
        %v5037 = vld [vmem:[%s289 + $0x7c] sm:$0xf]
        %v5038 = vld [vmem:[%s289 + $0x80] sm:$0xf]
        %v5039 = vld [vmem:[%s289 + $0x84] sm:$0xf]
        %v5040 = vld [vmem:[%s289 + $0x88] sm:$0xf]
        %v5041 = vld [vmem:[%s289 + $0x8c] sm:$0xf]
        %v5042 = vld [vmem:[%s289 + $0x90] sm:$0xf]
        %v5043 = vld [vmem:[%s289 + $0x94] sm:$0xf]
        %v5044 = vld [vmem:[%s289 + $0x98] sm:$0xf]
        %v5045 = vld [vmem:[%s289 + $0x9c] sm:$0xf]
        %v5046 = vld [vmem:[%s289 + $0xa0] sm:$0xf]
        %v5047 = vld [vmem:[%s289 + $0xa4] sm:$0xf]
        %v5048 = vld [vmem:[%s289 + $0xa8] sm:$0xf]
        %v5049 = vld [vmem:[%s289 + $0xac] sm:$0xf]
        %v5050 = vld [vmem:[%s289 + $0xb0] sm:$0xf]
        %v5051 = vld [vmem:[%s289 + $0xb4] sm:$0xf]
        %v5052 = vld [vmem:[%s289 + $0xb8] sm:$0xf]
        %v5053 = vld [vmem:[%s289 + $0xbc] sm:$0xf]
        %v5054 = vld [vmem:[%s289 + $0xc0] sm:$0xf]
        %v5055 = vld [vmem:[%s289 + $0xc4] sm:$0xf]
        %v5056 = vld [vmem:[%s289 + $0xc8] sm:$0xf]
        %v5057 = vld [vmem:[%s289 + $0xcc] sm:$0xf]
        %v5058 = vld [vmem:[%s289 + $0xd0] sm:$0xf]
        %v5059 = vld [vmem:[%s289 + $0xd4] sm:$0xf]
        %v5060 = vld [vmem:[%s289 + $0xd8] sm:$0xf]
        %v5061 = vld [vmem:[%s289 + $0xdc] sm:$0xf]
        %v5062 = vld [vmem:[%s289 + $0xe0] sm:$0xf]
        %v5063 = vld [vmem:[%s289 + $0xe4] sm:$0xf]
        %v5064 = vld [vmem:[%s289 + $0xe8] sm:$0xf]
        %v5065 = vld [vmem:[%s289 + $0xec] sm:$0xf]
        %v5066 = vld [vmem:[%s289 + $0xf0] sm:$0xf]
        %v5067 = vld [vmem:[%s289 + $0xf4] sm:$0xf]
        %v5068 = vld [vmem:[%s289 + $0xf8] sm:$0xf]
        %v5069 = vld [vmem:[%s289 + $0xfc] sm:$0xf]
        %v5070 = vld [vmem:[%s289 + $0x100] sm:$0xf]
        %v5071 = vld [vmem:[%s289 + $0x104] sm:$0xf]
        %v5072 = vld [vmem:[%s289 + $0x108] sm:$0xf]
        %v5073 = vld [vmem:[%s289 + $0x10c] sm:$0xf]
        %v5074 = vld [vmem:[%s289 + $0x110] sm:$0xf]
        %v5075 = vld [vmem:[%s289 + $0x114] sm:$0xf]
        %v5076 = vld [vmem:[%s289 + $0x118] sm:$0xf]
        %v5077 = vld [vmem:[%s289 + $0x11c] sm:$0xf]
        %v5078 = vld [vmem:[%s289 + $0x120] sm:$0xf]
        %v5079 = vld [vmem:[%s289 + $0x124] sm:$0xf]
        %v5080 = vld [vmem:[%s289 + $0x128] sm:$0xf]
        %v5081 = vld [vmem:[%s289 + $0x12c] sm:$0xf]
        %v5082 = vld [vmem:[%s289 + $0x130] sm:$0xf]
        %v5083 = vld [vmem:[%s289 + $0x134] sm:$0xf]
        %v5084 = vld [vmem:[%s289 + $0x138] sm:$0xf]
        %v5085 = vld [vmem:[%s289 + $0x13c] sm:$0xf]
        %v5086 = vld [vmem:[%s289 + $0x140] sm:$0xf]
        %v5087 = vld [vmem:[%s289 + $0x144] sm:$0xf]
        %v5088 = vld [vmem:[%s289 + $0x148] sm:$0xf]
        %v5089 = vld [vmem:[%s289 + $0x14c] sm:$0xf]
        %v5090 = vld [vmem:[%s289 + $0x150] sm:$0xf]
        %v5091 = vld [vmem:[%s289 + $0x154] sm:$0xf]
        %v5092 = vld [vmem:[%s289 + $0x158] sm:$0xf]
        %v5093 = vld [vmem:[%s289 + $0x15c] sm:$0xf]
        %v5094 = vld [vmem:[%s289 + $0x160] sm:$0xf]
        %v5095 = vld [vmem:[%s289 + $0x164] sm:$0xf]
        %v5096 = vld [vmem:[%s289 + $0x168] sm:$0xf]
        %v5097 = vld [vmem:[%s289 + $0x16c] sm:$0xf]
        %v5098 = vld [vmem:[%s289 + $0x170] sm:$0xf]
        %v5099 = vld [vmem:[%s289 + $0x174] sm:$0xf]
        %v5100 = vld [vmem:[%s289 + $0x178] sm:$0xf]
        %v5101 = vld [vmem:[%s289 + $0x17c] sm:$0xf]
        %v5102 = vld [vmem:[%s289 + $0x180] sm:$0xf]
        %v5103 = vld [vmem:[%s289 + $0x184] sm:$0xf]
        %v5104 = vld [vmem:[%s289 + $0x188] sm:$0xf]
        %v5105 = vld [vmem:[%s289 + $0x18c] sm:$0xf]
        %v5106 = vld [vmem:[%s289 + $0x190] sm:$0xf]
        %v5107 = vld [vmem:[%s289 + $0x194] sm:$0xf]
        %v5108 = vld [vmem:[%s289 + $0x198] sm:$0xf]
        %v5109 = vld [vmem:[%s289 + $0x19c] sm:$0xf]
        %v5110 = vld [vmem:[%s289 + $0x1a0] sm:$0xf]
        %v5111 = vld [vmem:[%s289 + $0x1a4] sm:$0xf]
        %v5112 = vld [vmem:[%s289 + $0x1a8] sm:$0xf]
        %v5113 = vld [vmem:[%s289 + $0x1ac] sm:$0xf]
        %v5114 = vld [vmem:[%s289 + $0x1b0] sm:$0xf]
        %v5115 = vld [vmem:[%s289 + $0x1b4] sm:$0xf]
        %v5116 = vld [vmem:[%s289 + $0x1b8] sm:$0xf]
        %v5117 = vld [vmem:[%s289 + $0x1bc] sm:$0xf]
        %v5118 = vld [vmem:[%s289 + $0x1c0] sm:$0xf]
        %v5119 = vld [vmem:[%s289 + $0x1c4] sm:$0xf]
        %v5120 = vld [vmem:[%s289 + $0x1c8] sm:$0xf]
        %v5121 = vld [vmem:[%s289 + $0x1cc] sm:$0xf]
        %v5122 = vld [vmem:[%s289 + $0x1d0] sm:$0xf]
        %v5123 = vld [vmem:[%s289 + $0x1d4] sm:$0xf]
        %v5124 = vld [vmem:[%s289 + $0x1d8] sm:$0xf]
        %v5125 = vld [vmem:[%s289 + $0x1dc] sm:$0xf]
        %v5126 = vld [vmem:[%s289 + $0x1e0] sm:$0xf]
        %v5127 = vld [vmem:[%s289 + $0x1e4] sm:$0xf]
        %v5128 = vld [vmem:[%s289 + $0x1e8] sm:$0xf]
        %v5129 = vld [vmem:[%s289 + $0x1ec] sm:$0xf]
        %v5130 = vld [vmem:[%s289 + $0x1f0] sm:$0xf]
        %v5131 = vld [vmem:[%s289 + $0x1f4] sm:$0xf]
        %v5132 = vld [vmem:[%s289 + $0x1f8] sm:$0xf]
        %v5133 = vld [vmem:[%s289 + $0x1fc] sm:$0xf]
        %v5134 = vld [vmem:[%s289 + $0x200] sm:$0xf]
        %v5135 = vld [vmem:[%s289 + $0x204] sm:$0xf]
        %v5136 = vld [vmem:[%s289 + $0x208] sm:$0xf]
        %v5137 = vld [vmem:[%s289 + $0x20c] sm:$0xf]
        %v5138 = vld [vmem:[%s289 + $0x210] sm:$0xf]
        %v5139 = vld [vmem:[%s289 + $0x214] sm:$0xf]
        %v5140 = vld [vmem:[%s289 + $0x218] sm:$0xf]
        %v5141 = vld [vmem:[%s289 + $0x21c] sm:$0xf]
        %v5142 = vld [vmem:[%s289 + $0x220] sm:$0xf]
        %v5143 = vld [vmem:[%s289 + $0x224] sm:$0xf]
        %v5144 = vld [vmem:[%s289 + $0x228] sm:$0xf]
        %v5145 = vld [vmem:[%s289 + $0x22c] sm:$0xf]
        %v5146 = vld [vmem:[%s289 + $0x230] sm:$0xf]
        %v5147 = vld [vmem:[%s289 + $0x234] sm:$0xf]
        %v5148 = vld [vmem:[%s289 + $0x238] sm:$0xf]
        %v5149 = vld [vmem:[%s289 + $0x23c] sm:$0xf]
        %v5150 = vld [vmem:[%s289 + $0x240] sm:$0xf]
        %v5151 = vld [vmem:[%s289 + $0x244] sm:$0xf]
        %v5152 = vld [vmem:[%s289 + $0x248] sm:$0xf]
        %v5153 = vld [vmem:[%s289 + $0x24c] sm:$0xf]
        %v5154 = vld [vmem:[%s289 + $0x250] sm:$0xf]
        %v5155 = vld [vmem:[%s289 + $0x254] sm:$0xf]
        %v5156 = vld [vmem:[%s289 + $0x258] sm:$0xf]
        %v5157 = vld [vmem:[%s289 + $0x25c] sm:$0xf]
        %v5158 = vld [vmem:[%s289 + $0x260] sm:$0xf]
        %v5159 = vld [vmem:[%s289 + $0x264] sm:$0xf]
        %v5160 = vld [vmem:[%s289 + $0x268] sm:$0xf]
        %v5161 = vld [vmem:[%s289 + $0x26c] sm:$0xf]
        %v5162 = vld [vmem:[%s289 + $0x270] sm:$0xf]
        %v5163 = vld [vmem:[%s289 + $0x274] sm:$0xf]
        %v5164 = vld [vmem:[%s289 + $0x278] sm:$0xf]
        %v5165 = vld [vmem:[%s289 + $0x27c] sm:$0xf]
        %v5166 = vld [vmem:[%s289 + $0x280] sm:$0xf]
        %v5167 = vld [vmem:[%s289 + $0x284] sm:$0xf]
        %v5168 = vld [vmem:[%s289 + $0x288] sm:$0xf]
        %v5169 = vld [vmem:[%s289 + $0x28c] sm:$0xf]
        %v5170 = vld [vmem:[%s289 + $0x290] sm:$0xf]
        %v5171 = vld [vmem:[%s289 + $0x294] sm:$0xf]
        %v5172 = vld [vmem:[%s289 + $0x298] sm:$0xf]
        %v5173 = vld [vmem:[%s289 + $0x29c] sm:$0xf]
        %v5174 = vld [vmem:[%s289 + $0x2a0] sm:$0xf]
        %v5175 = vld [vmem:[%s289 + $0x2a4] sm:$0xf]
        %v5176 = vld [vmem:[%s289 + $0x2a8] sm:$0xf]
        %v5177 = vld [vmem:[%s289 + $0x2ac] sm:$0xf]
        %v5178 = vld [vmem:[%s289 + $0x2b0] sm:$0xf]
        %v5179 = vld [vmem:[%s289 + $0x2b4] sm:$0xf]
        %v5180 = vld [vmem:[%s289 + $0x2b8] sm:$0xf]
        %v5181 = vld [vmem:[%s289 + $0x2bc] sm:$0xf]
        %v5182 = vld [vmem:[%s289 + $0x2c0] sm:$0xf]
        %v5183 = vld [vmem:[%s289 + $0x2c4] sm:$0xf]
        %v5184 = vld [vmem:[%s289 + $0x2c8] sm:$0xf]
        %v5185 = vld [vmem:[%s289 + $0x2cc] sm:$0xf]
        %v5186 = vld [vmem:[%s289 + $0x2d0] sm:$0xf]
        %v5187 = vld [vmem:[%s289 + $0x2d4] sm:$0xf]
        %v5188 = vld [vmem:[%s289 + $0x2d8] sm:$0xf]
        %v5189 = vld [vmem:[%s289 + $0x2dc] sm:$0xf]
        %v5190 = vld [vmem:[%s289 + $0x2e0] sm:$0xf]
        %v5191 = vld [vmem:[%s289 + $0x2e4] sm:$0xf]
        %v5192 = vld [vmem:[%s289 + $0x2e8] sm:$0xf]
        %v5193 = vld [vmem:[%s289 + $0x2ec] sm:$0xf]
        %v5194 = vld [vmem:[%s289 + $0x2f0] sm:$0xf]
        %v5195 = vld [vmem:[%s289 + $0x2f4] sm:$0xf]
        %v5196 = vld [vmem:[%s289 + $0x2f8] sm:$0xf]
        %v5197 = vld [vmem:[%s289 + $0x2fc] sm:$0xf]
        %v5198 = vld [vmem:[%s289 + $0x300] sm:$0xf]
        %v5199 = vld [vmem:[%s289 + $0x304] sm:$0xf]
        %v5200 = vld [vmem:[%s289 + $0x308] sm:$0xf]
        %v5201 = vld [vmem:[%s289 + $0x30c] sm:$0xf]
        %v5202 = vld [vmem:[%s289 + $0x310] sm:$0xf]
        %v5203 = vld [vmem:[%s289 + $0x314] sm:$0xf]
        %v5204 = vld [vmem:[%s289 + $0x318] sm:$0xf]
        %v5205 = vld [vmem:[%s289 + $0x31c] sm:$0xf]
        %v5206 = vld [vmem:[%s289 + $0x320] sm:$0xf]
        %v5207 = vld [vmem:[%s289 + $0x324] sm:$0xf]
        %v5208 = vld [vmem:[%s289 + $0x328] sm:$0xf]
        %v5209 = vld [vmem:[%s289 + $0x32c] sm:$0xf]
        %v5210 = vld [vmem:[%s289 + $0x330] sm:$0xf]
        %v5211 = vld [vmem:[%s289 + $0x334] sm:$0xf]
        %v5212 = vld [vmem:[%s289 + $0x338] sm:$0xf]
        %v5213 = vld [vmem:[%s289 + $0x33c] sm:$0xf]
        %v5214 = vld [vmem:[%s289 + $0x340] sm:$0xf]
        %v5215 = vld [vmem:[%s289 + $0x344] sm:$0xf]
        %v5216 = vld [vmem:[%s289 + $0x348] sm:$0xf]
        %v5217 = vld [vmem:[%s289 + $0x34c] sm:$0xf]
        %v5218 = vld [vmem:[%s289 + $0x350] sm:$0xf]
        %v5219 = vld [vmem:[%s289 + $0x354] sm:$0xf]
        %v5220 = vld [vmem:[%s289 + $0x358] sm:$0xf]
        %v5221 = vld [vmem:[%s289 + $0x35c] sm:$0xf]
        %v5222 = vld [vmem:[%s289 + $0x360] sm:$0xf]
        %v5223 = vld [vmem:[%s289 + $0x364] sm:$0xf]
        %v5224 = vld [vmem:[%s289 + $0x368] sm:$0xf]
        %v5225 = vld [vmem:[%s289 + $0x36c] sm:$0xf]
        %v5226 = vld [vmem:[%s289 + $0x370] sm:$0xf]
        %v5227 = vld [vmem:[%s289 + $0x374] sm:$0xf]
        %v5228 = vld [vmem:[%s289 + $0x378] sm:$0xf]
        %v5229 = vld [vmem:[%s289 + $0x37c] sm:$0xf]
        %v5230 = vld [vmem:[%s289 + $0x380] sm:$0xf]
        %v5231 = vld [vmem:[%s289 + $0x384] sm:$0xf]
        %v5232 = vld [vmem:[%s289 + $0x388] sm:$0xf]
        %v5233 = vld [vmem:[%s289 + $0x38c] sm:$0xf]
        %v5234 = vld [vmem:[%s289 + $0x390] sm:$0xf]
        %v5235 = vld [vmem:[%s289 + $0x394] sm:$0xf]
        %v5236 = vld [vmem:[%s289 + $0x398] sm:$0xf]
        %v5237 = vld [vmem:[%s289 + $0x39c] sm:$0xf]
        %v5238 = vld [vmem:[%s289 + $0x3a0] sm:$0xf]
        %v5239 = vld [vmem:[%s289 + $0x3a4] sm:$0xf]
        %v5240 = vld [vmem:[%s289 + $0x3a8] sm:$0xf]
        %v5241 = vld [vmem:[%s289 + $0x3ac] sm:$0xf]
        %v5242 = vld [vmem:[%s289 + $0x3b0] sm:$0xf]
        %v5243 = vld [vmem:[%s289 + $0x3b4] sm:$0xf]
        %v5244 = vld [vmem:[%s289 + $0x3b8] sm:$0xf]
        %v5245 = vld [vmem:[%s289 + $0x3bc] sm:$0xf]
        %v5246 = vld [vmem:[%s289 + $0x3c0] sm:$0xf]
        %v5247 = vld [vmem:[%s289 + $0x3c4] sm:$0xf]
        %v5248 = vld [vmem:[%s289 + $0x3c8] sm:$0xf]
        %v5249 = vld [vmem:[%s289 + $0x3cc] sm:$0xf]
        %v5250 = vld [vmem:[%s289 + $0x3d0] sm:$0xf]
        %v5251 = vld [vmem:[%s289 + $0x3d4] sm:$0xf]
        %v5252 = vld [vmem:[%s289 + $0x3d8] sm:$0xf]
        %v5253 = vld [vmem:[%s289 + $0x3dc] sm:$0xf]
        %v5254 = vld [vmem:[%s289 + $0x3e0] sm:$0xf]
        %v5255 = vld [vmem:[%s289 + $0x3e4] sm:$0xf]
        %v5256 = vld [vmem:[%s289 + $0x3e8] sm:$0xf]
        %v5257 = vld [vmem:[%s289 + $0x3ec] sm:$0xf]
        %v5258 = vld [vmem:[%s289 + $0x3f0] sm:$0xf]
        %v5259 = vld [vmem:[%s289 + $0x3f4] sm:$0xf]
        %v5260 = vld [vmem:[%s289 + $0x3f8] sm:$0xf]
        %v5261 = vld [vmem:[%s289 + $0x3fc] sm:$0xf]
        %v5518 = vunpack.c.l.b16 %v5006
        %v5519 = vunpack.c.l.b16 %v5007
        %v5520 = vunpack.c.l.b16 %v5008
        %v5521 = vunpack.c.l.b16 %v5009
        %v5522 = vunpack.c.l.b16 %v5010
        %v5523 = vunpack.c.l.b16 %v5011
        %v5524 = vunpack.c.l.b16 %v5012
        %v5525 = vunpack.c.l.b16 %v5013
        %v5526 = vunpack.c.l.b16 %v5014
        %v5527 = vunpack.c.l.b16 %v5015
        %v5528 = vunpack.c.l.b16 %v5016
        %v5529 = vunpack.c.l.b16 %v5017
        %v5530 = vunpack.c.l.b16 %v5018
        %v5531 = vunpack.c.l.b16 %v5019
        %v5532 = vunpack.c.l.b16 %v5020
        %v5533 = vunpack.c.l.b16 %v5021
        %v5534 = vunpack.c.l.b16 %v5022
        %v5535 = vunpack.c.l.b16 %v5023
        %v5536 = vunpack.c.l.b16 %v5024
        %v5537 = vunpack.c.l.b16 %v5025
        %v5538 = vunpack.c.l.b16 %v5026
        %v5539 = vunpack.c.l.b16 %v5027
        %v5540 = vunpack.c.l.b16 %v5028
        %v5541 = vunpack.c.l.b16 %v5029
        %v5542 = vunpack.c.l.b16 %v5030
        %v5543 = vunpack.c.l.b16 %v5031
        %v5544 = vunpack.c.l.b16 %v5032
        %v5545 = vunpack.c.l.b16 %v5033
        %v5546 = vunpack.c.l.b16 %v5034
        %v5547 = vunpack.c.l.b16 %v5035
        %v5548 = vunpack.c.l.b16 %v5036
        %v5549 = vunpack.c.l.b16 %v5037
        %v5550 = vunpack.c.l.b16 %v5038
        %v5551 = vunpack.c.l.b16 %v5039
        %v5552 = vunpack.c.l.b16 %v5040
        %v5553 = vunpack.c.l.b16 %v5041
        %v5554 = vunpack.c.l.b16 %v5042
        %v5555 = vunpack.c.l.b16 %v5043
        %v5556 = vunpack.c.l.b16 %v5044
        %v5557 = vunpack.c.l.b16 %v5045
        %v5558 = vunpack.c.l.b16 %v5046
        %v5559 = vunpack.c.l.b16 %v5047
        %v5560 = vunpack.c.l.b16 %v5048
        %v5561 = vunpack.c.l.b16 %v5049
        %v5562 = vunpack.c.l.b16 %v5050
        %v5563 = vunpack.c.l.b16 %v5051
        %v5564 = vunpack.c.l.b16 %v5052
        %v5565 = vunpack.c.l.b16 %v5053
        %v5566 = vunpack.c.l.b16 %v5054
        %v5567 = vunpack.c.l.b16 %v5055
        %v5568 = vunpack.c.l.b16 %v5056
        %v5569 = vunpack.c.l.b16 %v5057
        %v5570 = vunpack.c.l.b16 %v5058
        %v5571 = vunpack.c.l.b16 %v5059
        %v5572 = vunpack.c.l.b16 %v5060
        %v5573 = vunpack.c.l.b16 %v5061
        %v5574 = vunpack.c.l.b16 %v5062
        %v5575 = vunpack.c.l.b16 %v5063
        %v5576 = vunpack.c.l.b16 %v5064
        %v5577 = vunpack.c.l.b16 %v5065
        %v5578 = vunpack.c.l.b16 %v5066
        %v5579 = vunpack.c.l.b16 %v5067
        %v5580 = vunpack.c.l.b16 %v5068
        %v5581 = vunpack.c.l.b16 %v5069
        %v5582 = vunpack.c.l.b16 %v5070
        %v5583 = vunpack.c.l.b16 %v5071
        %v5584 = vunpack.c.l.b16 %v5072
        %v5585 = vunpack.c.l.b16 %v5073
        %v5586 = vunpack.c.l.b16 %v5074
        %v5587 = vunpack.c.l.b16 %v5075
        %v5588 = vunpack.c.l.b16 %v5076
        %v5589 = vunpack.c.l.b16 %v5077
        %v5590 = vunpack.c.l.b16 %v5078
        %v5591 = vunpack.c.l.b16 %v5079
        %v5592 = vunpack.c.l.b16 %v5080
        %v5593 = vunpack.c.l.b16 %v5081
        %v5594 = vunpack.c.l.b16 %v5082
        %v5595 = vunpack.c.l.b16 %v5083
        %v5596 = vunpack.c.l.b16 %v5084
        %v5597 = vunpack.c.l.b16 %v5085
        %v5598 = vunpack.c.l.b16 %v5086
        %v5599 = vunpack.c.l.b16 %v5087
        %v5600 = vunpack.c.l.b16 %v5088
        %v5601 = vunpack.c.l.b16 %v5089
        %v5602 = vunpack.c.l.b16 %v5090
        %v5603 = vunpack.c.l.b16 %v5091
        %v5604 = vunpack.c.l.b16 %v5092
        %v5605 = vunpack.c.l.b16 %v5093
        %v5606 = vunpack.c.l.b16 %v5094
        %v5607 = vunpack.c.l.b16 %v5095
        %v5608 = vunpack.c.l.b16 %v5096
        %v5609 = vunpack.c.l.b16 %v5097
        %v5610 = vunpack.c.l.b16 %v5098
        %v5611 = vunpack.c.l.b16 %v5099
        %v5612 = vunpack.c.l.b16 %v5100
        %v5613 = vunpack.c.l.b16 %v5101
        %v5614 = vunpack.c.l.b16 %v5102
        %v5615 = vunpack.c.l.b16 %v5103
        %v5616 = vunpack.c.l.b16 %v5104
        %v5617 = vunpack.c.l.b16 %v5105
        %v5618 = vunpack.c.l.b16 %v5106
        %v5619 = vunpack.c.l.b16 %v5107
        %v5620 = vunpack.c.l.b16 %v5108
        %v5621 = vunpack.c.l.b16 %v5109
        %v5622 = vunpack.c.l.b16 %v5110
        %v5623 = vunpack.c.l.b16 %v5111
        %v5624 = vunpack.c.l.b16 %v5112
        %v5625 = vunpack.c.l.b16 %v5113
        %v5626 = vunpack.c.l.b16 %v5114
        %v5627 = vunpack.c.l.b16 %v5115
        %v5628 = vunpack.c.l.b16 %v5116
        %v5629 = vunpack.c.l.b16 %v5117
        %v5630 = vunpack.c.l.b16 %v5118
        %v5631 = vunpack.c.l.b16 %v5119
        %v5632 = vunpack.c.l.b16 %v5120
        %v5633 = vunpack.c.l.b16 %v5121
        %v5634 = vunpack.c.l.b16 %v5122
        %v5635 = vunpack.c.l.b16 %v5123
        %v5636 = vunpack.c.l.b16 %v5124
        %v5637 = vunpack.c.l.b16 %v5125
        %v5638 = vunpack.c.l.b16 %v5126
        %v5639 = vunpack.c.l.b16 %v5127
        %v5640 = vunpack.c.l.b16 %v5128
        %v5641 = vunpack.c.l.b16 %v5129
        %v5642 = vunpack.c.l.b16 %v5130
        %v5643 = vunpack.c.l.b16 %v5131
        %v5644 = vunpack.c.l.b16 %v5132
        %v5645 = vunpack.c.l.b16 %v5133
        %v5646 = vunpack.c.l.b16 %v5134
        %v5647 = vunpack.c.l.b16 %v5135
        %v5648 = vunpack.c.l.b16 %v5136
        %v5649 = vunpack.c.l.b16 %v5137
        %v5650 = vunpack.c.l.b16 %v5138
        %v5651 = vunpack.c.l.b16 %v5139
        %v5652 = vunpack.c.l.b16 %v5140
        %v5653 = vunpack.c.l.b16 %v5141
        %v5654 = vunpack.c.l.b16 %v5142
        %v5655 = vunpack.c.l.b16 %v5143
        %v5656 = vunpack.c.l.b16 %v5144
        %v5657 = vunpack.c.l.b16 %v5145
        %v5658 = vunpack.c.l.b16 %v5146
        %v5659 = vunpack.c.l.b16 %v5147
        %v5660 = vunpack.c.l.b16 %v5148
        %v5661 = vunpack.c.l.b16 %v5149
        %v5662 = vunpack.c.l.b16 %v5150
        %v5663 = vunpack.c.l.b16 %v5151
        %v5664 = vunpack.c.l.b16 %v5152
        %v5665 = vunpack.c.l.b16 %v5153
        %v5666 = vunpack.c.l.b16 %v5154
        %v5667 = vunpack.c.l.b16 %v5155
        %v5668 = vunpack.c.l.b16 %v5156
        %v5669 = vunpack.c.l.b16 %v5157
        %v5670 = vunpack.c.l.b16 %v5158
        %v5671 = vunpack.c.l.b16 %v5159
        %v5672 = vunpack.c.l.b16 %v5160
        %v5673 = vunpack.c.l.b16 %v5161
        %v5674 = vunpack.c.l.b16 %v5162
        %v5675 = vunpack.c.l.b16 %v5163
        %v5676 = vunpack.c.l.b16 %v5164
        %v5677 = vunpack.c.l.b16 %v5165
        %v5678 = vunpack.c.l.b16 %v5166
        %v5679 = vunpack.c.l.b16 %v5167
        %v5680 = vunpack.c.l.b16 %v5168
        %v5681 = vunpack.c.l.b16 %v5169
        %v5682 = vunpack.c.l.b16 %v5170
        %v5683 = vunpack.c.l.b16 %v5171
        %v5684 = vunpack.c.l.b16 %v5172
        %v5685 = vunpack.c.l.b16 %v5173
        %v5686 = vunpack.c.l.b16 %v5174
        %v5687 = vunpack.c.l.b16 %v5175
        %v5688 = vunpack.c.l.b16 %v5176
        %v5689 = vunpack.c.l.b16 %v5177
        %v5690 = vunpack.c.l.b16 %v5178
        %v5691 = vunpack.c.l.b16 %v5179
        %v5692 = vunpack.c.l.b16 %v5180
        %v5693 = vunpack.c.l.b16 %v5181
        %v5694 = vunpack.c.l.b16 %v5182
        %v5695 = vunpack.c.l.b16 %v5183
        %v5696 = vunpack.c.l.b16 %v5184
        %v5697 = vunpack.c.l.b16 %v5185
        %v5698 = vunpack.c.l.b16 %v5186
        %v5699 = vunpack.c.l.b16 %v5187
        %v5700 = vunpack.c.l.b16 %v5188
        %v5701 = vunpack.c.l.b16 %v5189
        %v5702 = vunpack.c.l.b16 %v5190
        %v5703 = vunpack.c.l.b16 %v5191
        %v5704 = vunpack.c.l.b16 %v5192
        %v5705 = vunpack.c.l.b16 %v5193
        %v5706 = vunpack.c.l.b16 %v5194
        %v5707 = vunpack.c.l.b16 %v5195
        %v5708 = vunpack.c.l.b16 %v5196
        %v5709 = vunpack.c.l.b16 %v5197
        %v5710 = vunpack.c.l.b16 %v5198
        %v5711 = vunpack.c.l.b16 %v5199
        %v5712 = vunpack.c.l.b16 %v5200
        %v5713 = vunpack.c.l.b16 %v5201
        %v5714 = vunpack.c.l.b16 %v5202
        %v5715 = vunpack.c.l.b16 %v5203
        %v5716 = vunpack.c.l.b16 %v5204
        %v5717 = vunpack.c.l.b16 %v5205
        %v5718 = vunpack.c.l.b16 %v5206
        %v5719 = vunpack.c.l.b16 %v5207
        %v5720 = vunpack.c.l.b16 %v5208
        %v5721 = vunpack.c.l.b16 %v5209
        %v5722 = vunpack.c.l.b16 %v5210
        %v5723 = vunpack.c.l.b16 %v5211
        %v5724 = vunpack.c.l.b16 %v5212
        %v5725 = vunpack.c.l.b16 %v5213
        %v5726 = vunpack.c.l.b16 %v5214
        %v5727 = vunpack.c.l.b16 %v5215
        %v5728 = vunpack.c.l.b16 %v5216
        %v5729 = vunpack.c.l.b16 %v5217
        %v5730 = vunpack.c.l.b16 %v5218
        %v5731 = vunpack.c.l.b16 %v5219
        %v5732 = vunpack.c.l.b16 %v5220
        %v5733 = vunpack.c.l.b16 %v5221
        %v5734 = vunpack.c.l.b16 %v5222
        %v5735 = vunpack.c.l.b16 %v5223
        %v5736 = vunpack.c.l.b16 %v5224
        %v5737 = vunpack.c.l.b16 %v5225
        %v5738 = vunpack.c.l.b16 %v5226
        %v5739 = vunpack.c.l.b16 %v5227
        %v5740 = vunpack.c.l.b16 %v5228
        %v5741 = vunpack.c.l.b16 %v5229
        %v5742 = vunpack.c.l.b16 %v5230
        %v5743 = vunpack.c.l.b16 %v5231
        %v5744 = vunpack.c.l.b16 %v5232
        %v5745 = vunpack.c.l.b16 %v5233
        %v5746 = vunpack.c.l.b16 %v5234
        %v5747 = vunpack.c.l.b16 %v5235
        %v5748 = vunpack.c.l.b16 %v5236
        %v5749 = vunpack.c.l.b16 %v5237
        %v5750 = vunpack.c.l.b16 %v5238
        %v5751 = vunpack.c.l.b16 %v5239
        %v5752 = vunpack.c.l.b16 %v5240
        %v5753 = vunpack.c.l.b16 %v5241
        %v5754 = vunpack.c.l.b16 %v5242
        %v5755 = vunpack.c.l.b16 %v5243
        %v5756 = vunpack.c.l.b16 %v5244
        %v5757 = vunpack.c.l.b16 %v5245
        %v5758 = vunpack.c.l.b16 %v5246
        %v5759 = vunpack.c.l.b16 %v5247
        %v5760 = vunpack.c.l.b16 %v5248
        %v5761 = vunpack.c.l.b16 %v5249
        %v5762 = vunpack.c.l.b16 %v5250
        %v5763 = vunpack.c.l.b16 %v5251
        %v5764 = vunpack.c.l.b16 %v5252
        %v5765 = vunpack.c.l.b16 %v5253
        %v5766 = vunpack.c.l.b16 %v5254
        %v5767 = vunpack.c.l.b16 %v5255
        %v5768 = vunpack.c.l.b16 %v5256
        %v5769 = vunpack.c.l.b16 %v5257
        %v5770 = vunpack.c.l.b16 %v5258
        %v5771 = vunpack.c.l.b16 %v5259
        %v5772 = vunpack.c.l.b16 %v5260
        %v5773 = vunpack.c.l.b16 %v5261
        %v5774 = vpack.c.b16 %v5519, %v5518
        %v5775 = vpack.c.b16 %v5521, %v5520
        %v5776 = vpack.c.b16 %v5523, %v5522
        %v5777 = vpack.c.b16 %v5525, %v5524
        %v5778 = vpack.c.b16 %v5527, %v5526
        %v5779 = vpack.c.b16 %v5529, %v5528
        %v5780 = vpack.c.b16 %v5531, %v5530
        %v5781 = vpack.c.b16 %v5533, %v5532
        %v5782 = vpack.c.b16 %v5535, %v5534
        %v5783 = vpack.c.b16 %v5537, %v5536
        %v5784 = vpack.c.b16 %v5539, %v5538
        %v5785 = vpack.c.b16 %v5541, %v5540
        %v5786 = vpack.c.b16 %v5543, %v5542
        %v5787 = vpack.c.b16 %v5545, %v5544
        %v5788 = vpack.c.b16 %v5547, %v5546
        %v5789 = vpack.c.b16 %v5549, %v5548
        %v5790 = vpack.c.b16 %v5551, %v5550
        %v5791 = vpack.c.b16 %v5553, %v5552
        %v5792 = vpack.c.b16 %v5555, %v5554
        %v5793 = vpack.c.b16 %v5557, %v5556
        %v5794 = vpack.c.b16 %v5559, %v5558
        %v5795 = vpack.c.b16 %v5561, %v5560
        %v5796 = vpack.c.b16 %v5563, %v5562
        %v5797 = vpack.c.b16 %v5565, %v5564
        %v5798 = vpack.c.b16 %v5567, %v5566
        %v5799 = vpack.c.b16 %v5569, %v5568
        %v5800 = vpack.c.b16 %v5571, %v5570
        %v5801 = vpack.c.b16 %v5573, %v5572
        %v5802 = vpack.c.b16 %v5575, %v5574
        %v5803 = vpack.c.b16 %v5577, %v5576
        %v5804 = vpack.c.b16 %v5579, %v5578
        %v5805 = vpack.c.b16 %v5581, %v5580
        %v5806 = vpack.c.b16 %v5583, %v5582
        %v5807 = vpack.c.b16 %v5585, %v5584
        %v5808 = vpack.c.b16 %v5587, %v5586
        %v5809 = vpack.c.b16 %v5589, %v5588
        %v5810 = vpack.c.b16 %v5591, %v5590
        %v5811 = vpack.c.b16 %v5593, %v5592
        %v5812 = vpack.c.b16 %v5595, %v5594
        %v5813 = vpack.c.b16 %v5597, %v5596
        %v5814 = vpack.c.b16 %v5599, %v5598
        %v5815 = vpack.c.b16 %v5601, %v5600
        %v5816 = vpack.c.b16 %v5603, %v5602
        %v5817 = vpack.c.b16 %v5605, %v5604
        %v5818 = vpack.c.b16 %v5607, %v5606
        %v5819 = vpack.c.b16 %v5609, %v5608
        %v5820 = vpack.c.b16 %v5611, %v5610
        %v5821 = vpack.c.b16 %v5613, %v5612
        %v5822 = vpack.c.b16 %v5615, %v5614
        %v5823 = vpack.c.b16 %v5617, %v5616
        %v5824 = vpack.c.b16 %v5619, %v5618
        %v5825 = vpack.c.b16 %v5621, %v5620
        %v5826 = vpack.c.b16 %v5623, %v5622
        %v5827 = vpack.c.b16 %v5625, %v5624
        %v5828 = vpack.c.b16 %v5627, %v5626
        %v5829 = vpack.c.b16 %v5629, %v5628
        %v5830 = vpack.c.b16 %v5631, %v5630
        %v5831 = vpack.c.b16 %v5633, %v5632
        %v5832 = vpack.c.b16 %v5635, %v5634
        %v5833 = vpack.c.b16 %v5637, %v5636
        %v5834 = vpack.c.b16 %v5639, %v5638
        %v5835 = vpack.c.b16 %v5641, %v5640
        %v5836 = vpack.c.b16 %v5643, %v5642
        %v5837 = vpack.c.b16 %v5645, %v5644
        %v5838 = vpack.c.b16 %v5647, %v5646
        %v5839 = vpack.c.b16 %v5649, %v5648
        %v5840 = vpack.c.b16 %v5651, %v5650
        %v5841 = vpack.c.b16 %v5653, %v5652
        %v5842 = vpack.c.b16 %v5655, %v5654
        %v5843 = vpack.c.b16 %v5657, %v5656
        %v5844 = vpack.c.b16 %v5659, %v5658
        %v5845 = vpack.c.b16 %v5661, %v5660
        %v5846 = vpack.c.b16 %v5663, %v5662
        %v5847 = vpack.c.b16 %v5665, %v5664
        %v5848 = vpack.c.b16 %v5667, %v5666
        %v5849 = vpack.c.b16 %v5669, %v5668
        %v5850 = vpack.c.b16 %v5671, %v5670
        %v5851 = vpack.c.b16 %v5673, %v5672
        %v5852 = vpack.c.b16 %v5675, %v5674
        %v5853 = vpack.c.b16 %v5677, %v5676
        %v5854 = vpack.c.b16 %v5679, %v5678
        %v5855 = vpack.c.b16 %v5681, %v5680
        %v5856 = vpack.c.b16 %v5683, %v5682
        %v5857 = vpack.c.b16 %v5685, %v5684
        %v5858 = vpack.c.b16 %v5687, %v5686
        %v5859 = vpack.c.b16 %v5689, %v5688
        %v5860 = vpack.c.b16 %v5691, %v5690
        %v5861 = vpack.c.b16 %v5693, %v5692
        %v5862 = vpack.c.b16 %v5695, %v5694
        %v5863 = vpack.c.b16 %v5697, %v5696
        %v5864 = vpack.c.b16 %v5699, %v5698
        %v5865 = vpack.c.b16 %v5701, %v5700
        %v5866 = vpack.c.b16 %v5703, %v5702
        %v5867 = vpack.c.b16 %v5705, %v5704
        %v5868 = vpack.c.b16 %v5707, %v5706
        %v5869 = vpack.c.b16 %v5709, %v5708
        %v5870 = vpack.c.b16 %v5711, %v5710
        %v5871 = vpack.c.b16 %v5713, %v5712
        %v5872 = vpack.c.b16 %v5715, %v5714
        %v5873 = vpack.c.b16 %v5717, %v5716
        %v5874 = vpack.c.b16 %v5719, %v5718
        %v5875 = vpack.c.b16 %v5721, %v5720
        %v5876 = vpack.c.b16 %v5723, %v5722
        %v5877 = vpack.c.b16 %v5725, %v5724
        %v5878 = vpack.c.b16 %v5727, %v5726
        %v5879 = vpack.c.b16 %v5729, %v5728
        %v5880 = vpack.c.b16 %v5731, %v5730
        %v5881 = vpack.c.b16 %v5733, %v5732
        %v5882 = vpack.c.b16 %v5735, %v5734
        %v5883 = vpack.c.b16 %v5737, %v5736
        %v5884 = vpack.c.b16 %v5739, %v5738
        %v5885 = vpack.c.b16 %v5741, %v5740
        %v5886 = vpack.c.b16 %v5743, %v5742
        %v5887 = vpack.c.b16 %v5745, %v5744
        %v5888 = vpack.c.b16 %v5747, %v5746
        %v5889 = vpack.c.b16 %v5749, %v5748
        %v5890 = vpack.c.b16 %v5751, %v5750
        %v5891 = vpack.c.b16 %v5753, %v5752
        %v5892 = vpack.c.b16 %v5755, %v5754
        %v5893 = vpack.c.b16 %v5757, %v5756
        %v5894 = vpack.c.b16 %v5759, %v5758
        %v5895 = vpack.c.b16 %v5761, %v5760
        %v5896 = vpack.c.b16 %v5763, %v5762
        %v5897 = vpack.c.b16 %v5765, %v5764
        %v5898 = vpack.c.b16 %v5767, %v5766
        %v5899 = vpack.c.b16 %v5769, %v5768
        %v5900 = vpack.c.b16 %v5771, %v5770
        %v5901 = vpack.c.b16 %v5773, %v5772
        %6030 = vmatpush.bf16.msra.mxu0 %v5781
        %6031 = vmatpush.bf16.msra.mxu0 %v5780
        %6032 = vmatpush.bf16.msra.mxu0 %v5779
        %6033 = vmatpush.bf16.msra.mxu0 %v5778
        %6034 = vmatpush.bf16.msra.mxu0 %v5777
        %6035 = vmatpush.bf16.msra.mxu0 %v5776
        %6036 = vmatpush.bf16.msra.mxu0 %v5775
        %6037 = vmatpush.bf16.msra.mxu0 %v5774
        %6038 = vmatmul.bf16.gmra.mxu0 %v4990
        %v6039 = vpop.f32.mrf.mxu0
        %v6040 = vadd.f32 0.0, %v6039
        %v6041 = vpop.f32.mrf.mxu0
        %6042 = vdwg.mxu0
        %6043 = vmatpush.bf16.msra.mxu0 %v5789
        %6044 = vmatpush.bf16.msra.mxu0 %v5788
        %6045 = vmatpush.bf16.msra.mxu0 %v5787
        %6046 = vmatpush.bf16.msra.mxu0 %v5786
        %6047 = vmatpush.bf16.msra.mxu0 %v5785
        %6048 = vmatpush.bf16.msra.mxu0 %v5784
        %6049 = vmatpush.bf16.msra.mxu0 %v5783
        %6050 = vmatpush.bf16.msra.mxu0 %v5782
        %6051 = vmatmul.bf16.gmra.mxu0 %v4991
        %v6052 = vpop.f32.mrf.mxu0
        %v6053 = vadd.f32 %v6040, %v6052
        %v6054 = vpop.f32.mrf.mxu0
        %6055 = vdwg.mxu0
        %6056 = vmatpush.bf16.msra.mxu0 %v5797
        %6057 = vmatpush.bf16.msra.mxu0 %v5796
        %6058 = vmatpush.bf16.msra.mxu0 %v5795
        %6059 = vmatpush.bf16.msra.mxu0 %v5794
        %6060 = vmatpush.bf16.msra.mxu0 %v5793
        %6061 = vmatpush.bf16.msra.mxu0 %v5792
        %6062 = vmatpush.bf16.msra.mxu0 %v5791
        %6063 = vmatpush.bf16.msra.mxu0 %v5790
        %6064 = vmatmul.bf16.gmra.mxu0 %v4992
        %v6065 = vpop.f32.mrf.mxu0
        %v6066 = vadd.f32 %v6053, %v6065
        %v6067 = vpop.f32.mrf.mxu0
        %6068 = vdwg.mxu0
        %6069 = vmatpush.bf16.msra.mxu0 %v5805
        %6070 = vmatpush.bf16.msra.mxu0 %v5804
        %6071 = vmatpush.bf16.msra.mxu0 %v5803
        %6072 = vmatpush.bf16.msra.mxu0 %v5802
        %6073 = vmatpush.bf16.msra.mxu0 %v5801
        %6074 = vmatpush.bf16.msra.mxu0 %v5800
        %6075 = vmatpush.bf16.msra.mxu0 %v5799
        %6076 = vmatpush.bf16.msra.mxu0 %v5798
        %6077 = vmatmul.bf16.gmra.mxu0 %v4993
        %v6078 = vpop.f32.mrf.mxu0
        %v6079 = vadd.f32 %v6066, %v6078
        %v6080 = vpop.f32.mrf.mxu0
        %6081 = vdwg.mxu0
        %6082 = vmatpush.bf16.msra.mxu0 %v5813
        %6083 = vmatpush.bf16.msra.mxu0 %v5812
        %6084 = vmatpush.bf16.msra.mxu0 %v5811
        %6085 = vmatpush.bf16.msra.mxu0 %v5810
        %6086 = vmatpush.bf16.msra.mxu0 %v5809
        %6087 = vmatpush.bf16.msra.mxu0 %v5808
        %6088 = vmatpush.bf16.msra.mxu0 %v5807
        %6089 = vmatpush.bf16.msra.mxu0 %v5806
        %6090 = vmatmul.bf16.gmra.mxu0 %v4994
        %v6091 = vpop.f32.mrf.mxu0
        %v6092 = vadd.f32 %v6079, %v6091
        %v6093 = vpop.f32.mrf.mxu0
        %6094 = vdwg.mxu0
        %6095 = vmatpush.bf16.msra.mxu0 %v5821
        %6096 = vmatpush.bf16.msra.mxu0 %v5820
        %6097 = vmatpush.bf16.msra.mxu0 %v5819
        %6098 = vmatpush.bf16.msra.mxu0 %v5818
        %6099 = vmatpush.bf16.msra.mxu0 %v5817
        %6100 = vmatpush.bf16.msra.mxu0 %v5816
        %6101 = vmatpush.bf16.msra.mxu0 %v5815
        %6102 = vmatpush.bf16.msra.mxu0 %v5814
        %6103 = vmatmul.bf16.gmra.mxu0 %v4995
        %v6104 = vpop.f32.mrf.mxu0
        %v6105 = vadd.f32 %v6092, %v6104
        %v6106 = vpop.f32.mrf.mxu0
        %6107 = vdwg.mxu0
        %6108 = vmatpush.bf16.msra.mxu0 %v5829
        %6109 = vmatpush.bf16.msra.mxu0 %v5828
        %6110 = vmatpush.bf16.msra.mxu0 %v5827
        %6111 = vmatpush.bf16.msra.mxu0 %v5826
        %6112 = vmatpush.bf16.msra.mxu0 %v5825
        %6113 = vmatpush.bf16.msra.mxu0 %v5824
        %6114 = vmatpush.bf16.msra.mxu0 %v5823
        %6115 = vmatpush.bf16.msra.mxu0 %v5822
        %6116 = vmatmul.bf16.gmra.mxu0 %v4996
        %v6117 = vpop.f32.mrf.mxu0
        %v6118 = vadd.f32 %v6105, %v6117
        %v6119 = vpop.f32.mrf.mxu0
        %6120 = vdwg.mxu0
        %6121 = vmatpush.bf16.msra.mxu0 %v5837
        %6122 = vmatpush.bf16.msra.mxu0 %v5836
        %6123 = vmatpush.bf16.msra.mxu0 %v5835
        %6124 = vmatpush.bf16.msra.mxu0 %v5834
        %6125 = vmatpush.bf16.msra.mxu0 %v5833
        %6126 = vmatpush.bf16.msra.mxu0 %v5832
        %6127 = vmatpush.bf16.msra.mxu0 %v5831
        %6128 = vmatpush.bf16.msra.mxu0 %v5830
        %6129 = vmatmul.bf16.gmra.mxu0 %v4997
        %v6130 = vpop.f32.mrf.mxu0
        %v6131 = vadd.f32 %v6118, %v6130
        %v6132 = vpop.f32.mrf.mxu0
        %6133 = vdwg.mxu0
        %6134 = vmatpush.bf16.msra.mxu0 %v5845
        %6135 = vmatpush.bf16.msra.mxu0 %v5844
        %6136 = vmatpush.bf16.msra.mxu0 %v5843
        %6137 = vmatpush.bf16.msra.mxu0 %v5842
        %6138 = vmatpush.bf16.msra.mxu0 %v5841
        %6139 = vmatpush.bf16.msra.mxu0 %v5840
        %6140 = vmatpush.bf16.msra.mxu0 %v5839
        %6141 = vmatpush.bf16.msra.mxu0 %v5838
        %6142 = vmatmul.bf16.gmra.mxu0 %v4998
        %v6143 = vpop.f32.mrf.mxu0
        %v6144 = vadd.f32 %v6131, %v6143
        %v6145 = vpop.f32.mrf.mxu0
        %6146 = vdwg.mxu0
        %6147 = vmatpush.bf16.msra.mxu0 %v5853
        %6148 = vmatpush.bf16.msra.mxu0 %v5852
        %6149 = vmatpush.bf16.msra.mxu0 %v5851
        %6150 = vmatpush.bf16.msra.mxu0 %v5850
        %6151 = vmatpush.bf16.msra.mxu0 %v5849
        %6152 = vmatpush.bf16.msra.mxu0 %v5848
        %6153 = vmatpush.bf16.msra.mxu0 %v5847
        %6154 = vmatpush.bf16.msra.mxu0 %v5846
        %6155 = vmatmul.bf16.gmra.mxu0 %v4999
        %v6156 = vpop.f32.mrf.mxu0
        %v6157 = vadd.f32 %v6144, %v6156
        %v6158 = vpop.f32.mrf.mxu0
        %6159 = vdwg.mxu0
        %6160 = vmatpush.bf16.msra.mxu0 %v5861
        %6161 = vmatpush.bf16.msra.mxu0 %v5860
        %6162 = vmatpush.bf16.msra.mxu0 %v5859
        %6163 = vmatpush.bf16.msra.mxu0 %v5858
        %6164 = vmatpush.bf16.msra.mxu0 %v5857
        %6165 = vmatpush.bf16.msra.mxu0 %v5856
        %6166 = vmatpush.bf16.msra.mxu0 %v5855
        %6167 = vmatpush.bf16.msra.mxu0 %v5854
        %6168 = vmatmul.bf16.gmra.mxu0 %v5000
        %v6169 = vpop.f32.mrf.mxu0
        %v6170 = vadd.f32 %v6157, %v6169
        %v6171 = vpop.f32.mrf.mxu0
        %6172 = vdwg.mxu0
        %6173 = vmatpush.bf16.msra.mxu0 %v5869
        %6174 = vmatpush.bf16.msra.mxu0 %v5868
        %6175 = vmatpush.bf16.msra.mxu0 %v5867
        %6176 = vmatpush.bf16.msra.mxu0 %v5866
        %6177 = vmatpush.bf16.msra.mxu0 %v5865
        %6178 = vmatpush.bf16.msra.mxu0 %v5864
        %6179 = vmatpush.bf16.msra.mxu0 %v5863
        %6180 = vmatpush.bf16.msra.mxu0 %v5862
        %6181 = vmatmul.bf16.gmra.mxu0 %v5001
        %v6182 = vpop.f32.mrf.mxu0
        %v6183 = vadd.f32 %v6170, %v6182
        %v6184 = vpop.f32.mrf.mxu0
        %6185 = vdwg.mxu0
        %6186 = vmatpush.bf16.msra.mxu0 %v5877
        %6187 = vmatpush.bf16.msra.mxu0 %v5876
        %6188 = vmatpush.bf16.msra.mxu0 %v5875
        %6189 = vmatpush.bf16.msra.mxu0 %v5874
        %6190 = vmatpush.bf16.msra.mxu0 %v5873
        %6191 = vmatpush.bf16.msra.mxu0 %v5872
        %6192 = vmatpush.bf16.msra.mxu0 %v5871
        %6193 = vmatpush.bf16.msra.mxu0 %v5870
        %6194 = vmatmul.bf16.gmra.mxu0 %v5002
        %v6195 = vpop.f32.mrf.mxu0
        %v6196 = vadd.f32 %v6183, %v6195
        %v6197 = vpop.f32.mrf.mxu0
        %6198 = vdwg.mxu0
        %6199 = vmatpush.bf16.msra.mxu0 %v5885
        %6200 = vmatpush.bf16.msra.mxu0 %v5884
        %6201 = vmatpush.bf16.msra.mxu0 %v5883
        %6202 = vmatpush.bf16.msra.mxu0 %v5882
        %6203 = vmatpush.bf16.msra.mxu0 %v5881
        %6204 = vmatpush.bf16.msra.mxu0 %v5880
        %6205 = vmatpush.bf16.msra.mxu0 %v5879
        %6206 = vmatpush.bf16.msra.mxu0 %v5878
        %6207 = vmatmul.bf16.gmra.mxu0 %v5003
        %v6208 = vpop.f32.mrf.mxu0
        %v6209 = vadd.f32 %v6196, %v6208
        %v6210 = vpop.f32.mrf.mxu0
        %6211 = vdwg.mxu0
        %6212 = vmatpush.bf16.msra.mxu0 %v5893
        %6213 = vmatpush.bf16.msra.mxu0 %v5892
        %6214 = vmatpush.bf16.msra.mxu0 %v5891
        %6215 = vmatpush.bf16.msra.mxu0 %v5890
        %6216 = vmatpush.bf16.msra.mxu0 %v5889
        %6217 = vmatpush.bf16.msra.mxu0 %v5888
        %6218 = vmatpush.bf16.msra.mxu0 %v5887
        %6219 = vmatpush.bf16.msra.mxu0 %v5886
        %6220 = vmatmul.bf16.gmra.mxu0 %v5004
        %v6221 = vpop.f32.mrf.mxu0
        %v6222 = vadd.f32 %v6209, %v6221
        %v6223 = vpop.f32.mrf.mxu0
        %6224 = vdwg.mxu0
        %6225 = vmatpush.bf16.msra.mxu0 %v5901
        %6226 = vmatpush.bf16.msra.mxu0 %v5900
        %6227 = vmatpush.bf16.msra.mxu0 %v5899
        %6228 = vmatpush.bf16.msra.mxu0 %v5898
        %6229 = vmatpush.bf16.msra.mxu0 %v5897
        %6230 = vmatpush.bf16.msra.mxu0 %v5896
        %6231 = vmatpush.bf16.msra.mxu0 %v5895
        %6232 = vmatpush.bf16.msra.mxu0 %v5894
        %6233 = vmatmul.bf16.gmra.mxu0 %v5005
        %v6234 = vpop.f32.mrf.mxu0
        %v6235 = vadd.f32 %v6222, %v6234
        %v6236 = vpop.f32.mrf.mxu0
        %6237 = vdwg.mxu0
        %v6238 = vadd.f32 %v4989, %v6235
        %6239 = vst [vmem:[#allocation10] sm:$0xff] %v6238
        %p6240 = scmp.eq.s32.totalorder %s24, 1
        // Predicated region
        $region61: #{manifold_embedding.1} parent=39 // pred_check
          %p6241 = pneg %p6240
        $region62: #{manifold_embedding.1} parent=39 // pred_check_branch
          %6243 = sbr.rel (%p6241) target = $region64
        $region63: #{manifold_embedding.1} parent=39 // pred_region
          %v6244 = vld [vmem:[#allocation10] sm:$0xff]
          %v6245 = vld [vmem:[#allocation8] sm:$0x1]
          %v6247 = vperm.slane %v6245, 0
          %v6249 = vadd.f32 %v6244, %v6247
          %v6250 = vmul.f32 %v6249, %v6249
          %6251 = vadd.xlane.f32.xlu0 %v6250
          %v6252 = vpop.xlane.xlu0 %6251
          %v6253 = vmax.f32 %v6252, 1e-24
          %v6254 = vrsqrt.pop %v6253
          %v6255 = vmul.f32 %v6254, %v6253
          %v6256 = vmul.f32 %v6255, %v6254
          %v6257 = vmul.f32 0.5, %v6256
          %v6258 = vsub.f32 1.5, %v6257
          %v6259 = vmul.f32 %v6254, %v6258
          %vm6260 = vweird.f32 %v6253
          %vm6261 = vweird.f32 %v6254
          %vm6262 = vmor %vm6260, %vm6261
          %v6263 = vsel %vm6262, %v6254, %v6259
          %v6264 = vmul.f32 %v6249, %v6263
          %6265 = vst [vmem:[#allocation10] sm:$0xff] %v6264
        $region64: #{manifold_embedding.1} parent=39 // pred_fallthru
          _
        // Predicated region
        $region65: #{manifold_embedding.1} parent=39 // pred_check
          %p6266 = pneg %p157
        $region66: #{manifold_embedding.1} parent=39 // pred_check_branch
          %6268 = sbr.rel (%p6266) target = $region68
        $region67: #{manifold_embedding.1} parent=39 // pred_region
          %6270 = vsyncadd [#allocation4], 0
          %s6272 = sshll.u32 [#allocation10], 4
          %s6273 = int_to_ptr.vmem [resolvable:$true] %s6272
          %s6274 = sshll.u32 %s5, 4
          %s6275 = int_to_ptr.hbm [resolvable:$true] %s6274
          %6277 = dma.vmem_to_hbm [thread:$0]  %s6273, 128, %s6275, [#allocation4]
        $region68: #{manifold_embedding.1} parent=39 // pred_fallthru
          _
        // Predicated region
        $region69: #{manifold_embedding.1} parent=39 // pred_check
          %p6278 = pneg %p157
        $region70: #{manifold_embedding.1} parent=39 // pred_check_branch
          %6280 = sbr.rel (%p6278) target = $region72
        $region71: #{manifold_embedding.1} parent=39 // pred_region
          %6282 = dma.done [#allocation4], 128
        $region72: #{manifold_embedding.1} parent=39 // pred_fallthru
          _
      $region40: #{manifold_embedding.1} parent=5 // pred_fallthru
        _
      %p6283 = scmp.le.s32.totalorder 2, %s19
      // Predicated region
      $region73: #{manifold_embedding.1} parent=5 // pred_check
        %p6284 = pneg %p6283
      $region74: #{manifold_embedding.1} parent=5 // pred_check_branch
        %6286 = sbr.rel (%p6284) target = $region76
      $region75: #{manifold_embedding.1} parent=5 // pred_region
        %s6287 = ssub.s32 %s19, 2
      $region76: #{manifold_embedding.1} parent=5 // pred_fallthru
        _
    $region6: #{manifold_embedding.1} parent=1 // loop_footer
      %s23 = sadd.s32 1, %s19
    $region7: #{manifold_embedding.1} parent=1 // loop_footer_branch
      %18 = sbr.rel target = $region3
    $region8: #{manifold_embedding.1} parent=1 // loop_exit
      _
    %6288 = vsyncpa [#allocation3], 1
    %s6289 = scalar_lea.sflag [#allocation3], 1
    %6290 = vsyncpa %s6289, 1
    %6291 = vsyncpa [#allocation6], 1
    %s6292 = scalar_lea.sflag [#allocation6], 1
    %6293 = vsyncpa %s6292, 1
    %6294 = vsyncpa [#allocation9], 1
    %6295 = vsyncpa [#allocation4], 1
    %s6296 = scalar_lea.sflag [#allocation4], 1
    %6297 = vsyncpa %s6296, 1

</llo_original>
